<compile_context>
chip_gen: v5e
topology: v5e:2x2
jax: 0.10.0
libtpu: 0.0.40
codegen_flags: <defaults>
</compile_context>

<pallas_src>
import functools

import jax
import jax.numpy as jnp
from jax import lax
from jax.experimental import pallas as pl
from jax.experimental.pallas import tpu as pltpu


def _round_up(x, m):
    return ((x + m - 1) // m) * m


def _pick_batch_tile(b_pad):
    """Largest sublane-aligned batch tile <= 64 that divides the padded batch."""
    for bt in (64, 32, 16, 8):
        if b_pad % bt == 0:
            return bt
    return b_pad


def _lstm_detector_kernel(num_layers, *refs):
    """refs = (x_ref,                                   # (T, bt, D) time-major
               [w_ih_ref, w_hh_ref, b_ref] * L,         # (Din, 4HP), (HP, 4HP), (1, 4HP)
               w_fc_ref, b_fc_ref,                      # (HP, 128), (1, 128)
               out_ref,                                 # (bt, 128)
               gates_scr,                               # VMEM (T, bt, 4HP)
               seq_scr)                                 # VMEM (T, bt, HP)
    """
    x_ref = refs[0]
    layer_refs = refs[1:1 + 3 * num_layers]
    w_fc_ref = refs[1 + 3 * num_layers]
    b_fc_ref = refs[2 + 3 * num_layers]
    out_ref = refs[3 + 3 * num_layers]
    gates_scr = refs[4 + 3 * num_layers]
    seq_scr = refs[5 + 3 * num_layers]

    T, bt, _ = x_ref.shape
    HP = seq_scr.shape[-1]          # padded hidden size (multiple of 128)
    G = gates_scr.shape[-1]         # 4 * HP

    h = None
    for l in range(num_layers):
        w_ih_ref = layer_refs[3 * l + 0]
        w_hh_ref = layer_refs[3 * l + 1]
        b_ref = layer_refs[3 * l + 2]

        # ---- Batched input projection for all timesteps (off the serial
        # chain): one M = T*bt MXU matmul.  bt is a multiple of 8, so the
        # leading-dim reshape is tile-preserving (no relayout).
        inp = x_ref[...] if l == 0 else seq_scr[...]
        d_in = inp.shape[-1]
        gates_scr[...] = (
            jnp.dot(inp.reshape(T * bt, d_in), w_ih_ref[...],
                    preferred_element_type=jnp.float32)
            + b_ref[...]
        ).reshape(T, bt, G)

        # ---- Serial recurrence: only h @ W_hh (K = HP) + elementwise.
        write_seq = l < num_layers - 1   # last layer only needs the final h

        def step(t, carry, w_hh_ref=w_hh_ref, write_seq=write_seq):
            h_t, c_t = carry
            gates = gates_scr[t] + jnp.dot(
                h_t, w_hh_ref[...], preferred_element_type=jnp.float32)
            # 128-lane-aligned gate slices (PyTorch order i, f, g, o).
            i_g = jax.nn.sigmoid(gates[:, 0 * HP:1 * HP])
            f_g = jax.nn.sigmoid(gates[:, 1 * HP:2 * HP])
            g_g = jnp.tanh(gates[:, 2 * HP:3 * HP])
            o_g = jax.nn.sigmoid(gates[:, 3 * HP:4 * HP])
            c_t = f_g * c_t + i_g * g_g
            h_t = o_g * jnp.tanh(c_t)
            if write_seq:
                seq_scr[t] = h_t        # leading-dim store, zero-cost view
            return h_t, c_t

        h0 = jnp.zeros((bt, HP), jnp.float32)
        c0 = jnp.zeros((bt, HP), jnp.float32)
        h, _ = lax.fori_loop(0, T, step, (h0, c0), unroll=min(T, 8))

    # fc on the final hidden state of the top layer (lane-dense 128-wide out).
    out_ref[...] = (jnp.dot(h, w_fc_ref[...], preferred_element_type=jnp.float32)
                    + b_fc_ref[...])


def prepare_lstm_params(params, input_size, hidden_size, num_layers, num_classes):
    """One-time weight transforms: transpose, gate-column padding to HP=128k,
    bias folding, fc lane padding.  Padding is with zeros -> numerically exact
    (padded hidden units stay identically 0 through the recurrence)."""
    H = hidden_size
    HP = _round_up(H, 128)
    C_PAD = 128

    def pad_gate_cols(w_t, k_pad):
        # w_t: (K, 4H) -> (k_pad, 4*HP); gate g cols [g*H:(g+1)*H] -> [g*HP : g*HP+H]
        K = w_t.shape[0]
        out = jnp.zeros((k_pad, 4 * HP), jnp.float32)
        for g in range(4):
            out = out.at[:K, g * HP:g * HP + H].set(w_t[:, g * H:(g + 1) * H])
        return out

    prepped = []
    for l in range(num_layers):
        w_ih, w_hh, b_ih, b_hh = params[f"layer{l}"]
        k_in_pad = input_size if l == 0 else HP
        w_ih_p = pad_gate_cols(w_ih.T.astype(jnp.float32), k_in_pad)   # (Din, 4HP)
        w_hh_p = pad_gate_cols(w_hh.T.astype(jnp.float32), HP)         # (HP, 4HP)
        b = (b_ih + b_hh).astype(jnp.float32)
        b_p = jnp.zeros((1, 4 * HP), jnp.float32)
        for g in range(4):
            b_p = b_p.at[0, g * HP:g * HP + H].set(b[g * H:(g + 1) * H])
        prepped += [w_ih_p, w_hh_p, b_p]

    w_fc, b_fc = params["fc"]
    w_fc_p = jnp.zeros((HP, C_PAD), jnp.float32).at[:H, :num_classes].set(
        w_fc.T.astype(jnp.float32))
    b_fc_p = jnp.zeros((1, C_PAD), jnp.float32).at[0, :num_classes].set(
        b_fc.astype(jnp.float32))
    prepped += [w_fc_p, b_fc_p]
    return prepped, HP


def lstm_detector_forward(x, prepped, hidden_pad, num_layers, num_classes):
    """x: (B, T, input_size) float32 (PyTorch batch_first convention)."""
    B, T, D = x.shape
    HP = hidden_pad
    C_PAD = 128

    # Pad batch to a sublane multiple; padded rows are sliced off afterwards.
    B_pad = _round_up(max(B, 8), 8)
    bt = _pick_batch_tile(B_pad)
    grid = (B_pad // bt,)

    # Time-major layout so per-step reads are leading-dim views in-kernel.
    x_tm = jnp.transpose(x.astype(jnp.float32), (1, 0, 2))       # (T, B, D)
    if B_pad != B:
        x_tm = jnp.pad(x_tm, ((0, 0), (0, B_pad - B), (0, 0)))

    in_specs = [pl.BlockSpec((T, bt, D), lambda b: (0, b, 0))]
    for arr in prepped:
        # Grid-invariant weight/bias blocks (whole array).
        # TODO(synk): pipeline_mode=pl.Buffered(1) + bf16 weights for
        # production sizes to fit v7x's 64 MiB VMEM.
        in_specs.append(pl.BlockSpec(arr.shape, lambda b: (0, 0)))

    scratch_shapes = [
        pltpu.VMEM((T, bt, 4 * HP), jnp.float32),   # per-layer gate pre-activations
        pltpu.VMEM((T, bt, HP), jnp.float32),       # inter-layer hidden sequence
    ]

    kernel = functools.partial(_lstm_detector_kernel, num_layers)

    out_padded = pl.pallas_call(
        kernel,
        out_shape=jax.ShapeDtypeStruct((B_pad, C_PAD), jnp.float32),
        grid=grid,
        in_specs=in_specs,
        out_specs=pl.BlockSpec((bt, C_PAD), lambda b: (b, 0)),
        scratch_shapes=scratch_shapes,
        compiler_params=pltpu.CompilerParams(
            dimension_semantics=("parallel",),
            vmem_limit_bytes=32 * 1024 * 1024,
        ),
    )(x_tm, *prepped)

    return out_padded[:B, :num_classes]


def reference_forward(x, params, hidden_size, num_layers):
    """Pure-JAX reference replicating torch nn.LSTM(batch_first) + fc."""
    H = hidden_size
    B, T, _ = x.shape
    seq = x
    for l in range(num_layers):
        w_ih, w_hh, b_ih, b_hh = params[f"layer{l}"]
        h = jnp.zeros((B, H), jnp.float32)
        c = jnp.zeros((B, H), jnp.float32)
        outs = []
        for t in range(T):
            gates = seq[:, t, :] @ w_ih.T + b_ih + h @ w_hh.T + b_hh
            i = jax.nn.sigmoid(gates[:, :H])
            f = jax.nn.sigmoid(gates[:, H:2 * H])
            g = jnp.tanh(gates[:, 2 * H:3 * H])
            o = jax.nn.sigmoid(gates[:, 3 * H:])
            c = f * c + i * g
            h = o * jnp.tanh(c)
            outs.append(h)
        seq = jnp.stack(outs, axis=1)
    w_fc, b_fc = params["fc"]
    return seq[:, -1, :] @ w_fc.T + b_fc


if __name__ == "__main__":
    B, T = 2, 8                 # batch, sequence length
    INPUT_SIZE = 16
    HIDDEN = 32
    NUM_LAYERS = 2
    NUM_CLASSES = 2

    key = jax.random.PRNGKey(0)
    keys = jax.random.split(key, 4 * NUM_LAYERS + 3)
    bound = 1.0 / (HIDDEN ** 0.5)   # PyTorch LSTM/Linear uniform init bound

    params = {}
    idx = 0
    for l in range(NUM_LAYERS):
        d_in = INPUT_SIZE if l == 0 else HIDDEN
        w_ih = jax.random.uniform(keys[idx], (4 * HIDDEN, d_in),
                                  minval=-bound, maxval=bound); idx += 1
        w_hh = jax.random.uniform(keys[idx], (4 * HIDDEN, HIDDEN),
                                  minval=-bound, maxval=bound); idx += 1
        b_ih = jax.random.uniform(keys[idx], (4 * HIDDEN,),
                                  minval=-bound, maxval=bound); idx += 1
        b_hh = jax.random.uniform(keys[idx], (4 * HIDDEN,),
                                  minval=-bound, maxval=bound); idx += 1
        params[f"layer{l}"] = (w_ih, w_hh, b_ih, b_hh)
    w_fc = jax.random.uniform(keys[idx], (NUM_CLASSES, HIDDEN),
                              minval=-bound, maxval=bound); idx += 1
    b_fc = jax.random.uniform(keys[idx], (NUM_CLASSES,),
                              minval=-bound, maxval=bound); idx += 1
    params["fc"] = (w_fc, b_fc)

    x = jax.random.normal(keys[idx], (B, T, INPUT_SIZE), jnp.float32)

    # Weight transforms done once (cached across forward calls).
    prepped, HP = prepare_lstm_params(params, INPUT_SIZE, HIDDEN,
                                      NUM_LAYERS, NUM_CLASSES)

    out = lstm_detector_forward(x, prepped, HP, NUM_LAYERS, NUM_CLASSES)
    out = jax.block_until_ready(out)

    ref = reference_forward(x, params, HIDDEN, NUM_LAYERS)
    assert out.shape == (B, NUM_CLASSES)
    assert jnp.allclose(out, ref, atol=1e-4, rtol=1e-4), (out, ref)

    print("KERNEL_OK")
</pallas_src>

<mosaic_0001>
module attributes {stable_mosaic.version = 11 : i64} {
  func.func @_lstm_detector_kernel(%arg0: i32, %arg1: memref<8x8x16xf32, #tpu.memory_space<vmem>>, %arg2: memref<16x512xf32, #tpu.memory_space<vmem>>, %arg3: memref<128x512xf32, #tpu.memory_space<vmem>>, %arg4: memref<1x512xf32, #tpu.memory_space<vmem>>, %arg5: memref<128x512xf32, #tpu.memory_space<vmem>>, %arg6: memref<128x512xf32, #tpu.memory_space<vmem>>, %arg7: memref<1x512xf32, #tpu.memory_space<vmem>>, %arg8: memref<128x128xf32, #tpu.memory_space<vmem>>, %arg9: memref<1x128xf32, #tpu.memory_space<vmem>>, %arg10: memref<8x128xf32, #tpu.memory_space<vmem>>, %arg11: memref<8x8x512xf32, #tpu.memory_space<vmem>>, %arg12: memref<8x8x128xf32, #tpu.memory_space<vmem>>) attributes {dimension_semantics = [#tpu.dimension_semantics<parallel>], iteration_bounds = array<i64: 1>, scalar_prefetch = 0 : i64, scratch_operands = 2 : i64, tpu.core_type = #tpu.core_type<tc>, window_params = [{transform_indices = @transform_0, window_bounds = array<i64: 8, 8, 16>}, {pipeline_mode = #tpu.pipeline_mode<synchronous>, transform_indices = @transform_1, window_bounds = array<i64: 16, 512>}, {pipeline_mode = #tpu.pipeline_mode<synchronous>, transform_indices = @transform_2, window_bounds = array<i64: 128, 512>}, {pipeline_mode = #tpu.pipeline_mode<synchronous>, transform_indices = @transform_3, window_bounds = array<i64: 1, 512>}, {pipeline_mode = #tpu.pipeline_mode<synchronous>, transform_indices = @transform_4, window_bounds = array<i64: 128, 512>}, {pipeline_mode = #tpu.pipeline_mode<synchronous>, transform_indices = @transform_5, window_bounds = array<i64: 128, 512>}, {pipeline_mode = #tpu.pipeline_mode<synchronous>, transform_indices = @transform_6, window_bounds = array<i64: 1, 512>}, {pipeline_mode = #tpu.pipeline_mode<synchronous>, transform_indices = @transform_7, window_bounds = array<i64: 128, 128>}, {pipeline_mode = #tpu.pipeline_mode<synchronous>, transform_indices = @transform_8, window_bounds = array<i64: 1, 128>}, {transform_indices = @transform_9, window_bounds = array<i64: 8, 128>}]} {
    %c0 = arith.constant 0 : index
    %c0_0 = arith.constant 0 : index
    %c0_1 = arith.constant 0 : index
    %0 = vector.load %arg1[%c0, %c0_0, %c0_1] : memref<8x8x16xf32, #tpu.memory_space<vmem>>, vector<8x8x16xf32>
    %1 = vector.shape_cast %0 : vector<8x8x16xf32> to vector<64x16xf32>
    %c0_2 = arith.constant 0 : index
    %c0_3 = arith.constant 0 : index
    %2 = vector.load %arg2[%c0_2, %c0_3] : memref<16x512xf32, #tpu.memory_space<vmem>>, vector<16x512xf32>
    %cst = arith.constant dense<0.000000e+00> : vector<64x512xf32>
    %3 = tpu.matmul %1, %2, %cst {dimension_numbers = #tpu.dot_dimension_numbers<[1], [0], [0], [1], [0, 0, 1, 1], [], []>} : vector<64x16xf32>, vector<16x512xf32>, vector<64x512xf32> -> vector<64x512xf32>
    %c0_4 = arith.constant 0 : index
    %c0_5 = arith.constant 0 : index
    %4 = vector.load %arg4[%c0_4, %c0_5] : memref<1x512xf32, #tpu.memory_space<vmem>>, vector<1x512xf32>
    %5 = vector.broadcast %4 : vector<1x512xf32> to vector<64x512xf32>
    %6 = arith.addf %3, %5 : vector<64x512xf32>
    %7 = vector.shape_cast %6 : vector<64x512xf32> to vector<8x8x512xf32>
    %c0_6 = arith.constant 0 : index
    %c0_7 = arith.constant 0 : index
    %c0_8 = arith.constant 0 : index
    %8 = vector.load %arg11[%c0_6, %c0_7, %c0_8] : memref<8x8x512xf32, #tpu.memory_space<vmem>>, vector<8x8x512xf32>
    tpu.vector_store %arg11[%c0_6, %c0_7, %c0_8], %7 {strides = array<i32>} : memref<8x8x512xf32, #tpu.memory_space<vmem>>, vector<8x8x512xf32>,
    %cst_9 = arith.constant 0.000000e+00 : f32
    %9 = vector.broadcast %cst_9 : f32 to vector<8x128xf32>
    %cst_10 = arith.constant 0.000000e+00 : f32
    %10 = vector.broadcast %cst_10 : f32 to vector<8x128xf32>
    %c0_i32 = arith.constant 0 : i32
    %11 = arith.index_cast %c0_i32 : i32 to index
    %c0_11 = arith.constant 0 : index
    %c0_12 = arith.constant 0 : index
    %12 = vector.load %arg11[%11, %c0_11, %c0_12] : memref<8x8x512xf32, #tpu.memory_space<vmem>>, vector<1x8x512xf32>
    %13 = vector.shape_cast %12 : vector<1x8x512xf32> to vector<8x512xf32>
    %c0_13 = arith.constant 0 : index
    %c0_14 = arith.constant 0 : index
    %14 = vector.load %arg3[%c0_13, %c0_14] : memref<128x512xf32, #tpu.memory_space<vmem>>, vector<128x512xf32>
    %cst_15 = arith.constant dense<0.000000e+00> : vector<8x512xf32>
    %15 = tpu.matmul %9, %14, %cst_15 {dimension_numbers = #tpu.dot_dimension_numbers<[1], [0], [0], [1], [0, 0, 1, 1], [], []>} : vector<8x128xf32>, vector<128x512xf32>, vector<8x512xf32> -> vector<8x512xf32>
    %16 = arith.addf %13, %15 : vector<8x512xf32>
    %17 = vector.extract_strided_slice %16 {offsets = [0, 0], sizes = [8, 128], strides = [1, 1]} : vector<8x512xf32> to vector<8x128xf32>
    %18 = arith.negf %17 : vector<8x128xf32>
    %19 = math.exp %18 : vector<8x128xf32>
    %cst_16 = arith.constant 1.000000e+00 : f32
    %20 = vector.broadcast %cst_16 : f32 to vector<8x128xf32>
    %21 = arith.addf %20, %19 : vector<8x128xf32>
    %22 = arith.divf %20, %21 : vector<8x128xf32>
    %23 = vector.extract_strided_slice %16 {offsets = [0, 128], sizes = [8, 128], strides = [1, 1]} : vector<8x512xf32> to vector<8x128xf32>
    %24 = arith.negf %23 : vector<8x128xf32>
    %25 = math.exp %24 : vector<8x128xf32>
    %cst_17 = arith.constant 1.000000e+00 : f32
    %26 = vector.broadcast %cst_17 : f32 to vector<8x128xf32>
    %27 = arith.addf %26, %25 : vector<8x128xf32>
    %28 = arith.divf %26, %27 : vector<8x128xf32>
    %29 = vector.extract_strided_slice %16 {offsets = [0, 256], sizes = [8, 128], strides = [1, 1]} : vector<8x512xf32> to vector<8x128xf32>
    %30 = math.tanh %29 : vector<8x128xf32>
    %31 = vector.extract_strided_slice %16 {offsets = [0, 384], sizes = [8, 128], strides = [1, 1]} : vector<8x512xf32> to vector<8x128xf32>
    %32 = arith.negf %31 : vector<8x128xf32>
    %33 = math.exp %32 : vector<8x128xf32>
    %cst_18 = arith.constant 1.000000e+00 : f32
    %34 = vector.broadcast %cst_18 : f32 to vector<8x128xf32>
    %35 = arith.addf %34, %33 : vector<8x128xf32>
    %36 = arith.divf %34, %35 : vector<8x128xf32>
    %37 = arith.mulf %28, %10 : vector<8x128xf32>
    %38 = arith.mulf %22, %30 : vector<8x128xf32>
    %39 = arith.addf %37, %38 : vector<8x128xf32>
    %40 = math.tanh %39 : vector<8x128xf32>
    %41 = arith.mulf %36, %40 : vector<8x128xf32>
    %42 = arith.index_cast %c0_i32 : i32 to index
    %c0_19 = arith.constant 0 : index
    %c0_20 = arith.constant 0 : index
    %43 = vector.load %arg12[%42, %c0_19, %c0_20] : memref<8x8x128xf32, #tpu.memory_space<vmem>>, vector<1x8x128xf32>
    %44 = vector.shape_cast %43 : vector<1x8x128xf32> to vector<8x128xf32>
    %45 = vector.shape_cast %41 : vector<8x128xf32> to vector<1x8x128xf32>
    tpu.vector_store %arg12[%42, %c0_19, %c0_20], %45 {strides = array<i32>} : memref<8x8x128xf32, #tpu.memory_space<vmem>>, vector<1x8x128xf32>,
    %c1_i32 = arith.constant 1 : i32
    %46 = arith.index_cast %c1_i32 : i32 to index
    %c0_21 = arith.constant 0 : index
    %c0_22 = arith.constant 0 : index
    %47 = vector.load %arg11[%46, %c0_21, %c0_22] : memref<8x8x512xf32, #tpu.memory_space<vmem>>, vector<1x8x512xf32>
    %48 = vector.shape_cast %47 : vector<1x8x512xf32> to vector<8x512xf32>
    %c0_23 = arith.constant 0 : index
    %c0_24 = arith.constant 0 : index
    %49 = vector.load %arg3[%c0_23, %c0_24] : memref<128x512xf32, #tpu.memory_space<vmem>>, vector<128x512xf32>
    %cst_25 = arith.constant dense<0.000000e+00> : vector<8x512xf32>
    %50 = tpu.matmul %41, %49, %cst_25 {dimension_numbers = #tpu.dot_dimension_numbers<[1], [0], [0], [1], [0, 0, 1, 1], [], []>} : vector<8x128xf32>, vector<128x512xf32>, vector<8x512xf32> -> vector<8x512xf32>
    %51 = arith.addf %48, %50 : vector<8x512xf32>
    %52 = vector.extract_strided_slice %51 {offsets = [0, 0], sizes = [8, 128], strides = [1, 1]} : vector<8x512xf32> to vector<8x128xf32>
    %53 = arith.negf %52 : vector<8x128xf32>
    %54 = math.exp %53 : vector<8x128xf32>
    %cst_26 = arith.constant 1.000000e+00 : f32
    %55 = vector.broadcast %cst_26 : f32 to vector<8x128xf32>
    %56 = arith.addf %55, %54 : vector<8x128xf32>
    %57 = arith.divf %55, %56 : vector<8x128xf32>
    %58 = vector.extract_strided_slice %51 {offsets = [0, 128], sizes = [8, 128], strides = [1, 1]} : vector<8x512xf32> to vector<8x128xf32>
    %59 = arith.negf %58 : vector<8x128xf32>
    %60 = math.exp %59 : vector<8x128xf32>
    %cst_27 = arith.constant 1.000000e+00 : f32
    %61 = vector.broadcast %cst_27 : f32 to vector<8x128xf32>
    %62 = arith.addf %61, %60 : vector<8x128xf32>
    %63 = arith.divf %61, %62 : vector<8x128xf32>
    %64 = vector.extract_strided_slice %51 {offsets = [0, 256], sizes = [8, 128], strides = [1, 1]} : vector<8x512xf32> to vector<8x128xf32>
    %65 = math.tanh %64 : vector<8x128xf32>
    %66 = vector.extract_strided_slice %51 {offsets = [0, 384], sizes = [8, 128], strides = [1, 1]} : vector<8x512xf32> to vector<8x128xf32>
    %67 = arith.negf %66 : vector<8x128xf32>
    %68 = math.exp %67 : vector<8x128xf32>
    %cst_28 = arith.constant 1.000000e+00 : f32
    %69 = vector.broadcast %cst_28 : f32 to vector<8x128xf32>
    %70 = arith.addf %69, %68 : vector<8x128xf32>
    %71 = arith.divf %69, %70 : vector<8x128xf32>
    %72 = arith.mulf %63, %39 : vector<8x128xf32>
    %73 = arith.mulf %57, %65 : vector<8x128xf32>
    %74 = arith.addf %72, %73 : vector<8x128xf32>
    %75 = math.tanh %74 : vector<8x128xf32>
    %76 = arith.mulf %71, %75 : vector<8x128xf32>
    %77 = arith.index_cast %c1_i32 : i32 to index
    %c0_29 = arith.constant 0 : index
    %c0_30 = arith.constant 0 : index
    %78 = vector.load %arg12[%77, %c0_29, %c0_30] : memref<8x8x128xf32, #tpu.memory_space<vmem>>, vector<1x8x128xf32>
    %79 = vector.shape_cast %78 : vector<1x8x128xf32> to vector<8x128xf32>
    %80 = vector.shape_cast %76 : vector<8x128xf32> to vector<1x8x128xf32>
    tpu.vector_store %arg12[%77, %c0_29, %c0_30], %80 {strides = array<i32>} : memref<8x8x128xf32, #tpu.memory_space<vmem>>, vector<1x8x128xf32>,
    %c2_i32 = arith.constant 2 : i32
    %81 = arith.index_cast %c2_i32 : i32 to index
    %c0_31 = arith.constant 0 : index
    %c0_32 = arith.constant 0 : index
    %82 = vector.load %arg11[%81, %c0_31, %c0_32] : memref<8x8x512xf32, #tpu.memory_space<vmem>>, vector<1x8x512xf32>
    %83 = vector.shape_cast %82 : vector<1x8x512xf32> to vector<8x512xf32>
    %c0_33 = arith.constant 0 : index
    %c0_34 = arith.constant 0 : index
    %84 = vector.load %arg3[%c0_33, %c0_34] : memref<128x512xf32, #tpu.memory_space<vmem>>, vector<128x512xf32>
    %cst_35 = arith.constant dense<0.000000e+00> : vector<8x512xf32>
    %85 = tpu.matmul %76, %84, %cst_35 {dimension_numbers = #tpu.dot_dimension_numbers<[1], [0], [0], [1], [0, 0, 1, 1], [], []>} : vector<8x128xf32>, vector<128x512xf32>, vector<8x512xf32> -> vector<8x512xf32>
    %86 = arith.addf %83, %85 : vector<8x512xf32>
    %87 = vector.extract_strided_slice %86 {offsets = [0, 0], sizes = [8, 128], strides = [1, 1]} : vector<8x512xf32> to vector<8x128xf32>
    %88 = arith.negf %87 : vector<8x128xf32>
    %89 = math.exp %88 : vector<8x128xf32>
    %cst_36 = arith.constant 1.000000e+00 : f32
    %90 = vector.broadcast %cst_36 : f32 to vector<8x128xf32>
    %91 = arith.addf %90, %89 : vector<8x128xf32>
    %92 = arith.divf %90, %91 : vector<8x128xf32>
    %93 = vector.extract_strided_slice %86 {offsets = [0, 128], sizes = [8, 128], strides = [1, 1]} : vector<8x512xf32> to vector<8x128xf32>
    %94 = arith.negf %93 : vector<8x128xf32>
    %95 = math.exp %94 : vector<8x128xf32>
    %cst_37 = arith.constant 1.000000e+00 : f32
    %96 = vector.broadcast %cst_37 : f32 to vector<8x128xf32>
    %97 = arith.addf %96, %95 : vector<8x128xf32>
    %98 = arith.divf %96, %97 : vector<8x128xf32>
    %99 = vector.extract_strided_slice %86 {offsets = [0, 256], sizes = [8, 128], strides = [1, 1]} : vector<8x512xf32> to vector<8x128xf32>
    %100 = math.tanh %99 : vector<8x128xf32>
    %101 = vector.extract_strided_slice %86 {offsets = [0, 384], sizes = [8, 128], strides = [1, 1]} : vector<8x512xf32> to vector<8x128xf32>
    %102 = arith.negf %101 : vector<8x128xf32>
    %103 = math.exp %102 : vector<8x128xf32>
    %cst_38 = arith.constant 1.000000e+00 : f32
    %104 = vector.broadcast %cst_38 : f32 to vector<8x128xf32>
    %105 = arith.addf %104, %103 : vector<8x128xf32>
    %106 = arith.divf %104, %105 : vector<8x128xf32>
    %107 = arith.mulf %98, %74 : vector<8x128xf32>
    %108 = arith.mulf %92, %100 : vector<8x128xf32>
    %109 = arith.addf %107, %108 : vector<8x128xf32>
    %110 = math.tanh %109 : vector<8x128xf32>
    %111 = arith.mulf %106, %110 : vector<8x128xf32>
    %112 = arith.index_cast %c2_i32 : i32 to index
    %c0_39 = arith.constant 0 : index
    %c0_40 = arith.constant 0 : index
    %113 = vector.load %arg12[%112, %c0_39, %c0_40] : memref<8x8x128xf32, #tpu.memory_space<vmem>>, vector<1x8x128xf32>
    %114 = vector.shape_cast %113 : vector<1x8x128xf32> to vector<8x128xf32>
    %115 = vector.shape_cast %111 : vector<8x128xf32> to vector<1x8x128xf32>
    tpu.vector_store %arg12[%112, %c0_39, %c0_40], %115 {strides = array<i32>} : memref<8x8x128xf32, #tpu.memory_space<vmem>>, vector<1x8x128xf32>,
    %c3_i32 = arith.constant 3 : i32
    %116 = arith.index_cast %c3_i32 : i32 to index
    %c0_41 = arith.constant 0 : index
    %c0_42 = arith.constant 0 : index
    %117 = vector.load %arg11[%116, %c0_41, %c0_42] : memref<8x8x512xf32, #tpu.memory_space<vmem>>, vector<1x8x512xf32>
    %118 = vector.shape_cast %117 : vector<1x8x512xf32> to vector<8x512xf32>
    %c0_43 = arith.constant 0 : index
    %c0_44 = arith.constant 0 : index
    %119 = vector.load %arg3[%c0_43, %c0_44] : memref<128x512xf32, #tpu.memory_space<vmem>>, vector<128x512xf32>
    %cst_45 = arith.constant dense<0.000000e+00> : vector<8x512xf32>
    %120 = tpu.matmul %111, %119, %cst_45 {dimension_numbers = #tpu.dot_dimension_numbers<[1], [0], [0], [1], [0, 0, 1, 1], [], []>} : vector<8x128xf32>, vector<128x512xf32>, vector<8x512xf32> -> vector<8x512xf32>
    %121 = arith.addf %118, %120 : vector<8x512xf32>
    %122 = vector.extract_strided_slice %121 {offsets = [0, 0], sizes = [8, 128], strides = [1, 1]} : vector<8x512xf32> to vector<8x128xf32>
    %123 = arith.negf %122 : vector<8x128xf32>
    %124 = math.exp %123 : vector<8x128xf32>
    %cst_46 = arith.constant 1.000000e+00 : f32
    %125 = vector.broadcast %cst_46 : f32 to vector<8x128xf32>
    %126 = arith.addf %125, %124 : vector<8x128xf32>
    %127 = arith.divf %125, %126 : vector<8x128xf32>
    %128 = vector.extract_strided_slice %121 {offsets = [0, 128], sizes = [8, 128], strides = [1, 1]} : vector<8x512xf32> to vector<8x128xf32>
    %129 = arith.negf %128 : vector<8x128xf32>
    %130 = math.exp %129 : vector<8x128xf32>
    %cst_47 = arith.constant 1.000000e+00 : f32
    %131 = vector.broadcast %cst_47 : f32 to vector<8x128xf32>
    %132 = arith.addf %131, %130 : vector<8x128xf32>
    %133 = arith.divf %131, %132 : vector<8x128xf32>
    %134 = vector.extract_strided_slice %121 {offsets = [0, 256], sizes = [8, 128], strides = [1, 1]} : vector<8x512xf32> to vector<8x128xf32>
    %135 = math.tanh %134 : vector<8x128xf32>
    %136 = vector.extract_strided_slice %121 {offsets = [0, 384], sizes = [8, 128], strides = [1, 1]} : vector<8x512xf32> to vector<8x128xf32>
    %137 = arith.negf %136 : vector<8x128xf32>
    %138 = math.exp %137 : vector<8x128xf32>
    %cst_48 = arith.constant 1.000000e+00 : f32
    %139 = vector.broadcast %cst_48 : f32 to vector<8x128xf32>
    %140 = arith.addf %139, %138 : vector<8x128xf32>
    %141 = arith.divf %139, %140 : vector<8x128xf32>
    %142 = arith.mulf %133, %109 : vector<8x128xf32>
    %143 = arith.mulf %127, %135 : vector<8x128xf32>
    %144 = arith.addf %142, %143 : vector<8x128xf32>
    %145 = math.tanh %144 : vector<8x128xf32>
    %146 = arith.mulf %141, %145 : vector<8x128xf32>
    %147 = arith.index_cast %c3_i32 : i32 to index
    %c0_49 = arith.constant 0 : index
    %c0_50 = arith.constant 0 : index
    %148 = vector.load %arg12[%147, %c0_49, %c0_50] : memref<8x8x128xf32, #tpu.memory_space<vmem>>, vector<1x8x128xf32>
    %149 = vector.shape_cast %148 : vector<1x8x128xf32> to vector<8x128xf32>
    %150 = vector.shape_cast %146 : vector<8x128xf32> to vector<1x8x128xf32>
    tpu.vector_store %arg12[%147, %c0_49, %c0_50], %150 {strides = array<i32>} : memref<8x8x128xf32, #tpu.memory_space<vmem>>, vector<1x8x128xf32>,
    %c4_i32 = arith.constant 4 : i32
    %151 = arith.index_cast %c4_i32 : i32 to index
    %c0_51 = arith.constant 0 : index
    %c0_52 = arith.constant 0 : index
    %152 = vector.load %arg11[%151, %c0_51, %c0_52] : memref<8x8x512xf32, #tpu.memory_space<vmem>>, vector<1x8x512xf32>
    %153 = vector.shape_cast %152 : vector<1x8x512xf32> to vector<8x512xf32>
    %c0_53 = arith.constant 0 : index
    %c0_54 = arith.constant 0 : index
    %154 = vector.load %arg3[%c0_53, %c0_54] : memref<128x512xf32, #tpu.memory_space<vmem>>, vector<128x512xf32>
    %cst_55 = arith.constant dense<0.000000e+00> : vector<8x512xf32>
    %155 = tpu.matmul %146, %154, %cst_55 {dimension_numbers = #tpu.dot_dimension_numbers<[1], [0], [0], [1], [0, 0, 1, 1], [], []>} : vector<8x128xf32>, vector<128x512xf32>, vector<8x512xf32> -> vector<8x512xf32>
    %156 = arith.addf %153, %155 : vector<8x512xf32>
    %157 = vector.extract_strided_slice %156 {offsets = [0, 0], sizes = [8, 128], strides = [1, 1]} : vector<8x512xf32> to vector<8x128xf32>
    %158 = arith.negf %157 : vector<8x128xf32>
    %159 = math.exp %158 : vector<8x128xf32>
    %cst_56 = arith.constant 1.000000e+00 : f32
    %160 = vector.broadcast %cst_56 : f32 to vector<8x128xf32>
    %161 = arith.addf %160, %159 : vector<8x128xf32>
    %162 = arith.divf %160, %161 : vector<8x128xf32>
    %163 = vector.extract_strided_slice %156 {offsets = [0, 128], sizes = [8, 128], strides = [1, 1]} : vector<8x512xf32> to vector<8x128xf32>
    %164 = arith.negf %163 : vector<8x128xf32>
    %165 = math.exp %164 : vector<8x128xf32>
    %cst_57 = arith.constant 1.000000e+00 : f32
    %166 = vector.broadcast %cst_57 : f32 to vector<8x128xf32>
    %167 = arith.addf %166, %165 : vector<8x128xf32>
    %168 = arith.divf %166, %167 : vector<8x128xf32>
    %169 = vector.extract_strided_slice %156 {offsets = [0, 256], sizes = [8, 128], strides = [1, 1]} : vector<8x512xf32> to vector<8x128xf32>
    %170 = math.tanh %169 : vector<8x128xf32>
    %171 = vector.extract_strided_slice %156 {offsets = [0, 384], sizes = [8, 128], strides = [1, 1]} : vector<8x512xf32> to vector<8x128xf32>
    %172 = arith.negf %171 : vector<8x128xf32>
    %173 = math.exp %172 : vector<8x128xf32>
    %cst_58 = arith.constant 1.000000e+00 : f32
    %174 = vector.broadcast %cst_58 : f32 to vector<8x128xf32>
    %175 = arith.addf %174, %173 : vector<8x128xf32>
    %176 = arith.divf %174, %175 : vector<8x128xf32>
    %177 = arith.mulf %168, %144 : vector<8x128xf32>
    %178 = arith.mulf %162, %170 : vector<8x128xf32>
    %179 = arith.addf %177, %178 : vector<8x128xf32>
    %180 = math.tanh %179 : vector<8x128xf32>
    %181 = arith.mulf %176, %180 : vector<8x128xf32>
    %182 = arith.index_cast %c4_i32 : i32 to index
    %c0_59 = arith.constant 0 : index
    %c0_60 = arith.constant 0 : index
    %183 = vector.load %arg12[%182, %c0_59, %c0_60] : memref<8x8x128xf32, #tpu.memory_space<vmem>>, vector<1x8x128xf32>
    %184 = vector.shape_cast %183 : vector<1x8x128xf32> to vector<8x128xf32>
    %185 = vector.shape_cast %181 : vector<8x128xf32> to vector<1x8x128xf32>
    tpu.vector_store %arg12[%182, %c0_59, %c0_60], %185 {strides = array<i32>} : memref<8x8x128xf32, #tpu.memory_space<vmem>>, vector<1x8x128xf32>,
    %c5_i32 = arith.constant 5 : i32
    %186 = arith.index_cast %c5_i32 : i32 to index
    %c0_61 = arith.constant 0 : index
    %c0_62 = arith.constant 0 : index
    %187 = vector.load %arg11[%186, %c0_61, %c0_62] : memref<8x8x512xf32, #tpu.memory_space<vmem>>, vector<1x8x512xf32>
    %188 = vector.shape_cast %187 : vector<1x8x512xf32> to vector<8x512xf32>
    %c0_63 = arith.constant 0 : index
    %c0_64 = arith.constant 0 : index
    %189 = vector.load %arg3[%c0_63, %c0_64] : memref<128x512xf32, #tpu.memory_space<vmem>>, vector<128x512xf32>
    %cst_65 = arith.constant dense<0.000000e+00> : vector<8x512xf32>
    %190 = tpu.matmul %181, %189, %cst_65 {dimension_numbers = #tpu.dot_dimension_numbers<[1], [0], [0], [1], [0, 0, 1, 1], [], []>} : vector<8x128xf32>, vector<128x512xf32>, vector<8x512xf32> -> vector<8x512xf32>
    %191 = arith.addf %188, %190 : vector<8x512xf32>
    %192 = vector.extract_strided_slice %191 {offsets = [0, 0], sizes = [8, 128], strides = [1, 1]} : vector<8x512xf32> to vector<8x128xf32>
    %193 = arith.negf %192 : vector<8x128xf32>
    %194 = math.exp %193 : vector<8x128xf32>
    %cst_66 = arith.constant 1.000000e+00 : f32
    %195 = vector.broadcast %cst_66 : f32 to vector<8x128xf32>
    %196 = arith.addf %195, %194 : vector<8x128xf32>
    %197 = arith.divf %195, %196 : vector<8x128xf32>
    %198 = vector.extract_strided_slice %191 {offsets = [0, 128], sizes = [8, 128], strides = [1, 1]} : vector<8x512xf32> to vector<8x128xf32>
    %199 = arith.negf %198 : vector<8x128xf32>
    %200 = math.exp %199 : vector<8x128xf32>
    %cst_67 = arith.constant 1.000000e+00 : f32
    %201 = vector.broadcast %cst_67 : f32 to vector<8x128xf32>
    %202 = arith.addf %201, %200 : vector<8x128xf32>
    %203 = arith.divf %201, %202 : vector<8x128xf32>
    %204 = vector.extract_strided_slice %191 {offsets = [0, 256], sizes = [8, 128], strides = [1, 1]} : vector<8x512xf32> to vector<8x128xf32>
    %205 = math.tanh %204 : vector<8x128xf32>
    %206 = vector.extract_strided_slice %191 {offsets = [0, 384], sizes = [8, 128], strides = [1, 1]} : vector<8x512xf32> to vector<8x128xf32>
    %207 = arith.negf %206 : vector<8x128xf32>
    %208 = math.exp %207 : vector<8x128xf32>
    %cst_68 = arith.constant 1.000000e+00 : f32
    %209 = vector.broadcast %cst_68 : f32 to vector<8x128xf32>
    %210 = arith.addf %209, %208 : vector<8x128xf32>
    %211 = arith.divf %209, %210 : vector<8x128xf32>
    %212 = arith.mulf %203, %179 : vector<8x128xf32>
    %213 = arith.mulf %197, %205 : vector<8x128xf32>
    %214 = arith.addf %212, %213 : vector<8x128xf32>
    %215 = math.tanh %214 : vector<8x128xf32>
    %216 = arith.mulf %211, %215 : vector<8x128xf32>
    %217 = arith.index_cast %c5_i32 : i32 to index
    %c0_69 = arith.constant 0 : index
    %c0_70 = arith.constant 0 : index
    %218 = vector.load %arg12[%217, %c0_69, %c0_70] : memref<8x8x128xf32, #tpu.memory_space<vmem>>, vector<1x8x128xf32>
    %219 = vector.shape_cast %218 : vector<1x8x128xf32> to vector<8x128xf32>
    %220 = vector.shape_cast %216 : vector<8x128xf32> to vector<1x8x128xf32>
    tpu.vector_store %arg12[%217, %c0_69, %c0_70], %220 {strides = array<i32>} : memref<8x8x128xf32, #tpu.memory_space<vmem>>, vector<1x8x128xf32>,
    %c6_i32 = arith.constant 6 : i32
    %221 = arith.index_cast %c6_i32 : i32 to index
    %c0_71 = arith.constant 0 : index
    %c0_72 = arith.constant 0 : index
    %222 = vector.load %arg11[%221, %c0_71, %c0_72] : memref<8x8x512xf32, #tpu.memory_space<vmem>>, vector<1x8x512xf32>
    %223 = vector.shape_cast %222 : vector<1x8x512xf32> to vector<8x512xf32>
    %c0_73 = arith.constant 0 : index
    %c0_74 = arith.constant 0 : index
    %224 = vector.load %arg3[%c0_73, %c0_74] : memref<128x512xf32, #tpu.memory_space<vmem>>, vector<128x512xf32>
    %cst_75 = arith.constant dense<0.000000e+00> : vector<8x512xf32>
    %225 = tpu.matmul %216, %224, %cst_75 {dimension_numbers = #tpu.dot_dimension_numbers<[1], [0], [0], [1], [0, 0, 1, 1], [], []>} : vector<8x128xf32>, vector<128x512xf32>, vector<8x512xf32> -> vector<8x512xf32>
    %226 = arith.addf %223, %225 : vector<8x512xf32>
    %227 = vector.extract_strided_slice %226 {offsets = [0, 0], sizes = [8, 128], strides = [1, 1]} : vector<8x512xf32> to vector<8x128xf32>
    %228 = arith.negf %227 : vector<8x128xf32>
    %229 = math.exp %228 : vector<8x128xf32>
    %cst_76 = arith.constant 1.000000e+00 : f32
    %230 = vector.broadcast %cst_76 : f32 to vector<8x128xf32>
    %231 = arith.addf %230, %229 : vector<8x128xf32>
    %232 = arith.divf %230, %231 : vector<8x128xf32>
    %233 = vector.extract_strided_slice %226 {offsets = [0, 128], sizes = [8, 128], strides = [1, 1]} : vector<8x512xf32> to vector<8x128xf32>
    %234 = arith.negf %233 : vector<8x128xf32>
    %235 = math.exp %234 : vector<8x128xf32>
    %cst_77 = arith.constant 1.000000e+00 : f32
    %236 = vector.broadcast %cst_77 : f32 to vector<8x128xf32>
    %237 = arith.addf %236, %235 : vector<8x128xf32>
    %238 = arith.divf %236, %237 : vector<8x128xf32>
    %239 = vector.extract_strided_slice %226 {offsets = [0, 256], sizes = [8, 128], strides = [1, 1]} : vector<8x512xf32> to vector<8x128xf32>
    %240 = math.tanh %239 : vector<8x128xf32>
    %241 = vector.extract_strided_slice %226 {offsets = [0, 384], sizes = [8, 128], strides = [1, 1]} : vector<8x512xf32> to vector<8x128xf32>
    %242 = arith.negf %241 : vector<8x128xf32>
    %243 = math.exp %242 : vector<8x128xf32>
    %cst_78 = arith.constant 1.000000e+00 : f32
    %244 = vector.broadcast %cst_78 : f32 to vector<8x128xf32>
    %245 = arith.addf %244, %243 : vector<8x128xf32>
    %246 = arith.divf %244, %245 : vector<8x128xf32>
    %247 = arith.mulf %238, %214 : vector<8x128xf32>
    %248 = arith.mulf %232, %240 : vector<8x128xf32>
    %249 = arith.addf %247, %248 : vector<8x128xf32>
    %250 = math.tanh %249 : vector<8x128xf32>
    %251 = arith.mulf %246, %250 : vector<8x128xf32>
    %252 = arith.index_cast %c6_i32 : i32 to index
    %c0_79 = arith.constant 0 : index
    %c0_80 = arith.constant 0 : index
    %253 = vector.load %arg12[%252, %c0_79, %c0_80] : memref<8x8x128xf32, #tpu.memory_space<vmem>>, vector<1x8x128xf32>
    %254 = vector.shape_cast %253 : vector<1x8x128xf32> to vector<8x128xf32>
    %255 = vector.shape_cast %251 : vector<8x128xf32> to vector<1x8x128xf32>
    tpu.vector_store %arg12[%252, %c0_79, %c0_80], %255 {strides = array<i32>} : memref<8x8x128xf32, #tpu.memory_space<vmem>>, vector<1x8x128xf32>,
    %c7_i32 = arith.constant 7 : i32
    %256 = arith.index_cast %c7_i32 : i32 to index
    %c0_81 = arith.constant 0 : index
    %c0_82 = arith.constant 0 : index
    %257 = vector.load %arg11[%256, %c0_81, %c0_82] : memref<8x8x512xf32, #tpu.memory_space<vmem>>, vector<1x8x512xf32>
    %258 = vector.shape_cast %257 : vector<1x8x512xf32> to vector<8x512xf32>
    %c0_83 = arith.constant 0 : index
    %c0_84 = arith.constant 0 : index
    %259 = vector.load %arg3[%c0_83, %c0_84] : memref<128x512xf32, #tpu.memory_space<vmem>>, vector<128x512xf32>
    %cst_85 = arith.constant dense<0.000000e+00> : vector<8x512xf32>
    %260 = tpu.matmul %251, %259, %cst_85 {dimension_numbers = #tpu.dot_dimension_numbers<[1], [0], [0], [1], [0, 0, 1, 1], [], []>} : vector<8x128xf32>, vector<128x512xf32>, vector<8x512xf32> -> vector<8x512xf32>
    %261 = arith.addf %258, %260 : vector<8x512xf32>
    %262 = vector.extract_strided_slice %261 {offsets = [0, 0], sizes = [8, 128], strides = [1, 1]} : vector<8x512xf32> to vector<8x128xf32>
    %263 = arith.negf %262 : vector<8x128xf32>
    %264 = math.exp %263 : vector<8x128xf32>
    %cst_86 = arith.constant 1.000000e+00 : f32
    %265 = vector.broadcast %cst_86 : f32 to vector<8x128xf32>
    %266 = arith.addf %265, %264 : vector<8x128xf32>
    %267 = arith.divf %265, %266 : vector<8x128xf32>
    %268 = vector.extract_strided_slice %261 {offsets = [0, 128], sizes = [8, 128], strides = [1, 1]} : vector<8x512xf32> to vector<8x128xf32>
    %269 = arith.negf %268 : vector<8x128xf32>
    %270 = math.exp %269 : vector<8x128xf32>
    %cst_87 = arith.constant 1.000000e+00 : f32
    %271 = vector.broadcast %cst_87 : f32 to vector<8x128xf32>
    %272 = arith.addf %271, %270 : vector<8x128xf32>
    %273 = arith.divf %271, %272 : vector<8x128xf32>
    %274 = vector.extract_strided_slice %261 {offsets = [0, 256], sizes = [8, 128], strides = [1, 1]} : vector<8x512xf32> to vector<8x128xf32>
    %275 = math.tanh %274 : vector<8x128xf32>
    %276 = vector.extract_strided_slice %261 {offsets = [0, 384], sizes = [8, 128], strides = [1, 1]} : vector<8x512xf32> to vector<8x128xf32>
    %277 = arith.negf %276 : vector<8x128xf32>
    %278 = math.exp %277 : vector<8x128xf32>
    %cst_88 = arith.constant 1.000000e+00 : f32
    %279 = vector.broadcast %cst_88 : f32 to vector<8x128xf32>
    %280 = arith.addf %279, %278 : vector<8x128xf32>
    %281 = arith.divf %279, %280 : vector<8x128xf32>
    %282 = arith.mulf %273, %249 : vector<8x128xf32>
    %283 = arith.mulf %267, %275 : vector<8x128xf32>
    %284 = arith.addf %282, %283 : vector<8x128xf32>
    %285 = math.tanh %284 : vector<8x128xf32>
    %286 = arith.mulf %281, %285 : vector<8x128xf32>
    %287 = arith.index_cast %c7_i32 : i32 to index
    %c0_89 = arith.constant 0 : index
    %c0_90 = arith.constant 0 : index
    %288 = vector.load %arg12[%287, %c0_89, %c0_90] : memref<8x8x128xf32, #tpu.memory_space<vmem>>, vector<1x8x128xf32>
    %289 = vector.shape_cast %288 : vector<1x8x128xf32> to vector<8x128xf32>
    %290 = vector.shape_cast %286 : vector<8x128xf32> to vector<1x8x128xf32>
    tpu.vector_store %arg12[%287, %c0_89, %c0_90], %290 {strides = array<i32>} : memref<8x8x128xf32, #tpu.memory_space<vmem>>, vector<1x8x128xf32>,
    %c8_i32 = arith.constant 8 : i32
    %c0_91 = arith.constant 0 : index
    %c0_92 = arith.constant 0 : index
    %c0_93 = arith.constant 0 : index
    %291 = vector.load %arg12[%c0_91, %c0_92, %c0_93] : memref<8x8x128xf32, #tpu.memory_space<vmem>>, vector<8x8x128xf32>
    %292 = vector.shape_cast %291 : vector<8x8x128xf32> to vector<64x128xf32>
    %c0_94 = arith.constant 0 : index
    %c0_95 = arith.constant 0 : index
    %293 = vector.load %arg5[%c0_94, %c0_95] : memref<128x512xf32, #tpu.memory_space<vmem>>, vector<128x512xf32>
    %cst_96 = arith.constant dense<0.000000e+00> : vector<64x512xf32>
    %294 = tpu.matmul %292, %293, %cst_96 {dimension_numbers = #tpu.dot_dimension_numbers<[1], [0], [0], [1], [0, 0, 1, 1], [], []>} : vector<64x128xf32>, vector<128x512xf32>, vector<64x512xf32> -> vector<64x512xf32>
    %c0_97 = arith.constant 0 : index
    %c0_98 = arith.constant 0 : index
    %295 = vector.load %arg7[%c0_97, %c0_98] : memref<1x512xf32, #tpu.memory_space<vmem>>, vector<1x512xf32>
    %296 = vector.broadcast %295 : vector<1x512xf32> to vector<64x512xf32>
    %297 = arith.addf %294, %296 : vector<64x512xf32>
    %298 = vector.shape_cast %297 : vector<64x512xf32> to vector<8x8x512xf32>
    %c0_99 = arith.constant 0 : index
    %c0_100 = arith.constant 0 : index
    %c0_101 = arith.constant 0 : index
    %299 = vector.load %arg11[%c0_99, %c0_100, %c0_101] : memref<8x8x512xf32, #tpu.memory_space<vmem>>, vector<8x8x512xf32>
    tpu.vector_store %arg11[%c0_99, %c0_100, %c0_101], %298 {strides = array<i32>} : memref<8x8x512xf32, #tpu.memory_space<vmem>>, vector<8x8x512xf32>,
    %cst_102 = arith.constant 0.000000e+00 : f32
    %300 = vector.broadcast %cst_102 : f32 to vector<8x128xf32>
    %cst_103 = arith.constant 0.000000e+00 : f32
    %301 = vector.broadcast %cst_103 : f32 to vector<8x128xf32>
    %c0_i32_104 = arith.constant 0 : i32
    %302 = arith.index_cast %c0_i32_104 : i32 to index
    %c0_105 = arith.constant 0 : index
    %c0_106 = arith.constant 0 : index
    %303 = vector.load %arg11[%302, %c0_105, %c0_106] : memref<8x8x512xf32, #tpu.memory_space<vmem>>, vector<1x8x512xf32>
    %304 = vector.shape_cast %303 : vector<1x8x512xf32> to vector<8x512xf32>
    %c0_107 = arith.constant 0 : index
    %c0_108 = arith.constant 0 : index
    %305 = vector.load %arg6[%c0_107, %c0_108] : memref<128x512xf32, #tpu.memory_space<vmem>>, vector<128x512xf32>
    %cst_109 = arith.constant dense<0.000000e+00> : vector<8x512xf32>
    %306 = tpu.matmul %300, %305, %cst_109 {dimension_numbers = #tpu.dot_dimension_numbers<[1], [0], [0], [1], [0, 0, 1, 1], [], []>} : vector<8x128xf32>, vector<128x512xf32>, vector<8x512xf32> -> vector<8x512xf32>
    %307 = arith.addf %304, %306 : vector<8x512xf32>
    %308 = vector.extract_strided_slice %307 {offsets = [0, 0], sizes = [8, 128], strides = [1, 1]} : vector<8x512xf32> to vector<8x128xf32>
    %309 = arith.negf %308 : vector<8x128xf32>
    %310 = math.exp %309 : vector<8x128xf32>
    %cst_110 = arith.constant 1.000000e+00 : f32
    %311 = vector.broadcast %cst_110 : f32 to vector<8x128xf32>
    %312 = arith.addf %311, %310 : vector<8x128xf32>
    %313 = arith.divf %311, %312 : vector<8x128xf32>
    %314 = vector.extract_strided_slice %307 {offsets = [0, 128], sizes = [8, 128], strides = [1, 1]} : vector<8x512xf32> to vector<8x128xf32>
    %315 = arith.negf %314 : vector<8x128xf32>
    %316 = math.exp %315 : vector<8x128xf32>
    %cst_111 = arith.constant 1.000000e+00 : f32
    %317 = vector.broadcast %cst_111 : f32 to vector<8x128xf32>
    %318 = arith.addf %317, %316 : vector<8x128xf32>
    %319 = arith.divf %317, %318 : vector<8x128xf32>
    %320 = vector.extract_strided_slice %307 {offsets = [0, 256], sizes = [8, 128], strides = [1, 1]} : vector<8x512xf32> to vector<8x128xf32>
    %321 = math.tanh %320 : vector<8x128xf32>
    %322 = vector.extract_strided_slice %307 {offsets = [0, 384], sizes = [8, 128], strides = [1, 1]} : vector<8x512xf32> to vector<8x128xf32>
    %323 = arith.negf %322 : vector<8x128xf32>
    %324 = math.exp %323 : vector<8x128xf32>
    %cst_112 = arith.constant 1.000000e+00 : f32
    %325 = vector.broadcast %cst_112 : f32 to vector<8x128xf32>
    %326 = arith.addf %325, %324 : vector<8x128xf32>
    %327 = arith.divf %325, %326 : vector<8x128xf32>
    %328 = arith.mulf %319, %301 : vector<8x128xf32>
    %329 = arith.mulf %313, %321 : vector<8x128xf32>
    %330 = arith.addf %328, %329 : vector<8x128xf32>
    %331 = math.tanh %330 : vector<8x128xf32>
    %332 = arith.mulf %327, %331 : vector<8x128xf32>
    %c1_i32_113 = arith.constant 1 : i32
    %333 = arith.index_cast %c1_i32_113 : i32 to index
    %c0_114 = arith.constant 0 : index
    %c0_115 = arith.constant 0 : index
    %334 = vector.load %arg11[%333, %c0_114, %c0_115] : memref<8x8x512xf32, #tpu.memory_space<vmem>>, vector<1x8x512xf32>
    %335 = vector.shape_cast %334 : vector<1x8x512xf32> to vector<8x512xf32>
    %c0_116 = arith.constant 0 : index
    %c0_117 = arith.constant 0 : index
    %336 = vector.load %arg6[%c0_116, %c0_117] : memref<128x512xf32, #tpu.memory_space<vmem>>, vector<128x512xf32>
    %cst_118 = arith.constant dense<0.000000e+00> : vector<8x512xf32>
    %337 = tpu.matmul %332, %336, %cst_118 {dimension_numbers = #tpu.dot_dimension_numbers<[1], [0], [0], [1], [0, 0, 1, 1], [], []>} : vector<8x128xf32>, vector<128x512xf32>, vector<8x512xf32> -> vector<8x512xf32>
    %338 = arith.addf %335, %337 : vector<8x512xf32>
    %339 = vector.extract_strided_slice %338 {offsets = [0, 0], sizes = [8, 128], strides = [1, 1]} : vector<8x512xf32> to vector<8x128xf32>
    %340 = arith.negf %339 : vector<8x128xf32>
    %341 = math.exp %340 : vector<8x128xf32>
    %cst_119 = arith.constant 1.000000e+00 : f32
    %342 = vector.broadcast %cst_119 : f32 to vector<8x128xf32>
    %343 = arith.addf %342, %341 : vector<8x128xf32>
    %344 = arith.divf %342, %343 : vector<8x128xf32>
    %345 = vector.extract_strided_slice %338 {offsets = [0, 128], sizes = [8, 128], strides = [1, 1]} : vector<8x512xf32> to vector<8x128xf32>
    %346 = arith.negf %345 : vector<8x128xf32>
    %347 = math.exp %346 : vector<8x128xf32>
    %cst_120 = arith.constant 1.000000e+00 : f32
    %348 = vector.broadcast %cst_120 : f32 to vector<8x128xf32>
    %349 = arith.addf %348, %347 : vector<8x128xf32>
    %350 = arith.divf %348, %349 : vector<8x128xf32>
    %351 = vector.extract_strided_slice %338 {offsets = [0, 256], sizes = [8, 128], strides = [1, 1]} : vector<8x512xf32> to vector<8x128xf32>
    %352 = math.tanh %351 : vector<8x128xf32>
    %353 = vector.extract_strided_slice %338 {offsets = [0, 384], sizes = [8, 128], strides = [1, 1]} : vector<8x512xf32> to vector<8x128xf32>
    %354 = arith.negf %353 : vector<8x128xf32>
    %355 = math.exp %354 : vector<8x128xf32>
    %cst_121 = arith.constant 1.000000e+00 : f32
    %356 = vector.broadcast %cst_121 : f32 to vector<8x128xf32>
    %357 = arith.addf %356, %355 : vector<8x128xf32>
    %358 = arith.divf %356, %357 : vector<8x128xf32>
    %359 = arith.mulf %350, %330 : vector<8x128xf32>
    %360 = arith.mulf %344, %352 : vector<8x128xf32>
    %361 = arith.addf %359, %360 : vector<8x128xf32>
    %362 = math.tanh %361 : vector<8x128xf32>
    %363 = arith.mulf %358, %362 : vector<8x128xf32>
    %c2_i32_122 = arith.constant 2 : i32
    %364 = arith.index_cast %c2_i32_122 : i32 to index
    %c0_123 = arith.constant 0 : index
    %c0_124 = arith.constant 0 : index
    %365 = vector.load %arg11[%364, %c0_123, %c0_124] : memref<8x8x512xf32, #tpu.memory_space<vmem>>, vector<1x8x512xf32>
    %366 = vector.shape_cast %365 : vector<1x8x512xf32> to vector<8x512xf32>
    %c0_125 = arith.constant 0 : index
    %c0_126 = arith.constant 0 : index
    %367 = vector.load %arg6[%c0_125, %c0_126] : memref<128x512xf32, #tpu.memory_space<vmem>>, vector<128x512xf32>
    %cst_127 = arith.constant dense<0.000000e+00> : vector<8x512xf32>
    %368 = tpu.matmul %363, %367, %cst_127 {dimension_numbers = #tpu.dot_dimension_numbers<[1], [0], [0], [1], [0, 0, 1, 1], [], []>} : vector<8x128xf32>, vector<128x512xf32>, vector<8x512xf32> -> vector<8x512xf32>
    %369 = arith.addf %366, %368 : vector<8x512xf32>
    %370 = vector.extract_strided_slice %369 {offsets = [0, 0], sizes = [8, 128], strides = [1, 1]} : vector<8x512xf32> to vector<8x128xf32>
    %371 = arith.negf %370 : vector<8x128xf32>
    %372 = math.exp %371 : vector<8x128xf32>
    %cst_128 = arith.constant 1.000000e+00 : f32
    %373 = vector.broadcast %cst_128 : f32 to vector<8x128xf32>
    %374 = arith.addf %373, %372 : vector<8x128xf32>
    %375 = arith.divf %373, %374 : vector<8x128xf32>
    %376 = vector.extract_strided_slice %369 {offsets = [0, 128], sizes = [8, 128], strides = [1, 1]} : vector<8x512xf32> to vector<8x128xf32>
    %377 = arith.negf %376 : vector<8x128xf32>
    %378 = math.exp %377 : vector<8x128xf32>
    %cst_129 = arith.constant 1.000000e+00 : f32
    %379 = vector.broadcast %cst_129 : f32 to vector<8x128xf32>
    %380 = arith.addf %379, %378 : vector<8x128xf32>
    %381 = arith.divf %379, %380 : vector<8x128xf32>
    %382 = vector.extract_strided_slice %369 {offsets = [0, 256], sizes = [8, 128], strides = [1, 1]} : vector<8x512xf32> to vector<8x128xf32>
    %383 = math.tanh %382 : vector<8x128xf32>
    %384 = vector.extract_strided_slice %369 {offsets = [0, 384], sizes = [8, 128], strides = [1, 1]} : vector<8x512xf32> to vector<8x128xf32>
    %385 = arith.negf %384 : vector<8x128xf32>
    %386 = math.exp %385 : vector<8x128xf32>
    %cst_130 = arith.constant 1.000000e+00 : f32
    %387 = vector.broadcast %cst_130 : f32 to vector<8x128xf32>
    %388 = arith.addf %387, %386 : vector<8x128xf32>
    %389 = arith.divf %387, %388 : vector<8x128xf32>
    %390 = arith.mulf %381, %361 : vector<8x128xf32>
    %391 = arith.mulf %375, %383 : vector<8x128xf32>
    %392 = arith.addf %390, %391 : vector<8x128xf32>
    %393 = math.tanh %392 : vector<8x128xf32>
    %394 = arith.mulf %389, %393 : vector<8x128xf32>
    %c3_i32_131 = arith.constant 3 : i32
    %395 = arith.index_cast %c3_i32_131 : i32 to index
    %c0_132 = arith.constant 0 : index
    %c0_133 = arith.constant 0 : index
    %396 = vector.load %arg11[%395, %c0_132, %c0_133] : memref<8x8x512xf32, #tpu.memory_space<vmem>>, vector<1x8x512xf32>
    %397 = vector.shape_cast %396 : vector<1x8x512xf32> to vector<8x512xf32>
    %c0_134 = arith.constant 0 : index
    %c0_135 = arith.constant 0 : index
    %398 = vector.load %arg6[%c0_134, %c0_135] : memref<128x512xf32, #tpu.memory_space<vmem>>, vector<128x512xf32>
    %cst_136 = arith.constant dense<0.000000e+00> : vector<8x512xf32>
    %399 = tpu.matmul %394, %398, %cst_136 {dimension_numbers = #tpu.dot_dimension_numbers<[1], [0], [0], [1], [0, 0, 1, 1], [], []>} : vector<8x128xf32>, vector<128x512xf32>, vector<8x512xf32> -> vector<8x512xf32>
    %400 = arith.addf %397, %399 : vector<8x512xf32>
    %401 = vector.extract_strided_slice %400 {offsets = [0, 0], sizes = [8, 128], strides = [1, 1]} : vector<8x512xf32> to vector<8x128xf32>
    %402 = arith.negf %401 : vector<8x128xf32>
    %403 = math.exp %402 : vector<8x128xf32>
    %cst_137 = arith.constant 1.000000e+00 : f32
    %404 = vector.broadcast %cst_137 : f32 to vector<8x128xf32>
    %405 = arith.addf %404, %403 : vector<8x128xf32>
    %406 = arith.divf %404, %405 : vector<8x128xf32>
    %407 = vector.extract_strided_slice %400 {offsets = [0, 128], sizes = [8, 128], strides = [1, 1]} : vector<8x512xf32> to vector<8x128xf32>
    %408 = arith.negf %407 : vector<8x128xf32>
    %409 = math.exp %408 : vector<8x128xf32>
    %cst_138 = arith.constant 1.000000e+00 : f32
    %410 = vector.broadcast %cst_138 : f32 to vector<8x128xf32>
    %411 = arith.addf %410, %409 : vector<8x128xf32>
    %412 = arith.divf %410, %411 : vector<8x128xf32>
    %413 = vector.extract_strided_slice %400 {offsets = [0, 256], sizes = [8, 128], strides = [1, 1]} : vector<8x512xf32> to vector<8x128xf32>
    %414 = math.tanh %413 : vector<8x128xf32>
    %415 = vector.extract_strided_slice %400 {offsets = [0, 384], sizes = [8, 128], strides = [1, 1]} : vector<8x512xf32> to vector<8x128xf32>
    %416 = arith.negf %415 : vector<8x128xf32>
    %417 = math.exp %416 : vector<8x128xf32>
    %cst_139 = arith.constant 1.000000e+00 : f32
    %418 = vector.broadcast %cst_139 : f32 to vector<8x128xf32>
    %419 = arith.addf %418, %417 : vector<8x128xf32>
    %420 = arith.divf %418, %419 : vector<8x128xf32>
    %421 = arith.mulf %412, %392 : vector<8x128xf32>
    %422 = arith.mulf %406, %414 : vector<8x128xf32>
    %423 = arith.addf %421, %422 : vector<8x128xf32>
    %424 = math.tanh %423 : vector<8x128xf32>
    %425 = arith.mulf %420, %424 : vector<8x128xf32>
    %c4_i32_140 = arith.constant 4 : i32
    %426 = arith.index_cast %c4_i32_140 : i32 to index
    %c0_141 = arith.constant 0 : index
    %c0_142 = arith.constant 0 : index
    %427 = vector.load %arg11[%426, %c0_141, %c0_142] : memref<8x8x512xf32, #tpu.memory_space<vmem>>, vector<1x8x512xf32>
    %428 = vector.shape_cast %427 : vector<1x8x512xf32> to vector<8x512xf32>
    %c0_143 = arith.constant 0 : index
    %c0_144 = arith.constant 0 : index
    %429 = vector.load %arg6[%c0_143, %c0_144] : memref<128x512xf32, #tpu.memory_space<vmem>>, vector<128x512xf32>
    %cst_145 = arith.constant dense<0.000000e+00> : vector<8x512xf32>
    %430 = tpu.matmul %425, %429, %cst_145 {dimension_numbers = #tpu.dot_dimension_numbers<[1], [0], [0], [1], [0, 0, 1, 1], [], []>} : vector<8x128xf32>, vector<128x512xf32>, vector<8x512xf32> -> vector<8x512xf32>
    %431 = arith.addf %428, %430 : vector<8x512xf32>
    %432 = vector.extract_strided_slice %431 {offsets = [0, 0], sizes = [8, 128], strides = [1, 1]} : vector<8x512xf32> to vector<8x128xf32>
    %433 = arith.negf %432 : vector<8x128xf32>
    %434 = math.exp %433 : vector<8x128xf32>
    %cst_146 = arith.constant 1.000000e+00 : f32
    %435 = vector.broadcast %cst_146 : f32 to vector<8x128xf32>
    %436 = arith.addf %435, %434 : vector<8x128xf32>
    %437 = arith.divf %435, %436 : vector<8x128xf32>
    %438 = vector.extract_strided_slice %431 {offsets = [0, 128], sizes = [8, 128], strides = [1, 1]} : vector<8x512xf32> to vector<8x128xf32>
    %439 = arith.negf %438 : vector<8x128xf32>
    %440 = math.exp %439 : vector<8x128xf32>
    %cst_147 = arith.constant 1.000000e+00 : f32
    %441 = vector.broadcast %cst_147 : f32 to vector<8x128xf32>
    %442 = arith.addf %441, %440 : vector<8x128xf32>
    %443 = arith.divf %441, %442 : vector<8x128xf32>
    %444 = vector.extract_strided_slice %431 {offsets = [0, 256], sizes = [8, 128], strides = [1, 1]} : vector<8x512xf32> to vector<8x128xf32>
    %445 = math.tanh %444 : vector<8x128xf32>
    %446 = vector.extract_strided_slice %431 {offsets = [0, 384], sizes = [8, 128], strides = [1, 1]} : vector<8x512xf32> to vector<8x128xf32>
    %447 = arith.negf %446 : vector<8x128xf32>
    %448 = math.exp %447 : vector<8x128xf32>
    %cst_148 = arith.constant 1.000000e+00 : f32
    %449 = vector.broadcast %cst_148 : f32 to vector<8x128xf32>
    %450 = arith.addf %449, %448 : vector<8x128xf32>
    %451 = arith.divf %449, %450 : vector<8x128xf32>
    %452 = arith.mulf %443, %423 : vector<8x128xf32>
    %453 = arith.mulf %437, %445 : vector<8x128xf32>
    %454 = arith.addf %452, %453 : vector<8x128xf32>
    %455 = math.tanh %454 : vector<8x128xf32>
    %456 = arith.mulf %451, %455 : vector<8x128xf32>
    %c5_i32_149 = arith.constant 5 : i32
    %457 = arith.index_cast %c5_i32_149 : i32 to index
    %c0_150 = arith.constant 0 : index
    %c0_151 = arith.constant 0 : index
    %458 = vector.load %arg11[%457, %c0_150, %c0_151] : memref<8x8x512xf32, #tpu.memory_space<vmem>>, vector<1x8x512xf32>
    %459 = vector.shape_cast %458 : vector<1x8x512xf32> to vector<8x512xf32>
    %c0_152 = arith.constant 0 : index
    %c0_153 = arith.constant 0 : index
    %460 = vector.load %arg6[%c0_152, %c0_153] : memref<128x512xf32, #tpu.memory_space<vmem>>, vector<128x512xf32>
    %cst_154 = arith.constant dense<0.000000e+00> : vector<8x512xf32>
    %461 = tpu.matmul %456, %460, %cst_154 {dimension_numbers = #tpu.dot_dimension_numbers<[1], [0], [0], [1], [0, 0, 1, 1], [], []>} : vector<8x128xf32>, vector<128x512xf32>, vector<8x512xf32> -> vector<8x512xf32>
    %462 = arith.addf %459, %461 : vector<8x512xf32>
    %463 = vector.extract_strided_slice %462 {offsets = [0, 0], sizes = [8, 128], strides = [1, 1]} : vector<8x512xf32> to vector<8x128xf32>
    %464 = arith.negf %463 : vector<8x128xf32>
    %465 = math.exp %464 : vector<8x128xf32>
    %cst_155 = arith.constant 1.000000e+00 : f32
    %466 = vector.broadcast %cst_155 : f32 to vector<8x128xf32>
    %467 = arith.addf %466, %465 : vector<8x128xf32>
    %468 = arith.divf %466, %467 : vector<8x128xf32>
    %469 = vector.extract_strided_slice %462 {offsets = [0, 128], sizes = [8, 128], strides = [1, 1]} : vector<8x512xf32> to vector<8x128xf32>
    %470 = arith.negf %469 : vector<8x128xf32>
    %471 = math.exp %470 : vector<8x128xf32>
    %cst_156 = arith.constant 1.000000e+00 : f32
    %472 = vector.broadcast %cst_156 : f32 to vector<8x128xf32>
    %473 = arith.addf %472, %471 : vector<8x128xf32>
    %474 = arith.divf %472, %473 : vector<8x128xf32>
    %475 = vector.extract_strided_slice %462 {offsets = [0, 256], sizes = [8, 128], strides = [1, 1]} : vector<8x512xf32> to vector<8x128xf32>
    %476 = math.tanh %475 : vector<8x128xf32>
    %477 = vector.extract_strided_slice %462 {offsets = [0, 384], sizes = [8, 128], strides = [1, 1]} : vector<8x512xf32> to vector<8x128xf32>
    %478 = arith.negf %477 : vector<8x128xf32>
    %479 = math.exp %478 : vector<8x128xf32>
    %cst_157 = arith.constant 1.000000e+00 : f32
    %480 = vector.broadcast %cst_157 : f32 to vector<8x128xf32>
    %481 = arith.addf %480, %479 : vector<8x128xf32>
    %482 = arith.divf %480, %481 : vector<8x128xf32>
    %483 = arith.mulf %474, %454 : vector<8x128xf32>
    %484 = arith.mulf %468, %476 : vector<8x128xf32>
    %485 = arith.addf %483, %484 : vector<8x128xf32>
    %486 = math.tanh %485 : vector<8x128xf32>
    %487 = arith.mulf %482, %486 : vector<8x128xf32>
    %c6_i32_158 = arith.constant 6 : i32
    %488 = arith.index_cast %c6_i32_158 : i32 to index
    %c0_159 = arith.constant 0 : index
    %c0_160 = arith.constant 0 : index
    %489 = vector.load %arg11[%488, %c0_159, %c0_160] : memref<8x8x512xf32, #tpu.memory_space<vmem>>, vector<1x8x512xf32>
    %490 = vector.shape_cast %489 : vector<1x8x512xf32> to vector<8x512xf32>
    %c0_161 = arith.constant 0 : index
    %c0_162 = arith.constant 0 : index
    %491 = vector.load %arg6[%c0_161, %c0_162] : memref<128x512xf32, #tpu.memory_space<vmem>>, vector<128x512xf32>
    %cst_163 = arith.constant dense<0.000000e+00> : vector<8x512xf32>
    %492 = tpu.matmul %487, %491, %cst_163 {dimension_numbers = #tpu.dot_dimension_numbers<[1], [0], [0], [1], [0, 0, 1, 1], [], []>} : vector<8x128xf32>, vector<128x512xf32>, vector<8x512xf32> -> vector<8x512xf32>
    %493 = arith.addf %490, %492 : vector<8x512xf32>
    %494 = vector.extract_strided_slice %493 {offsets = [0, 0], sizes = [8, 128], strides = [1, 1]} : vector<8x512xf32> to vector<8x128xf32>
    %495 = arith.negf %494 : vector<8x128xf32>
    %496 = math.exp %495 : vector<8x128xf32>
    %cst_164 = arith.constant 1.000000e+00 : f32
    %497 = vector.broadcast %cst_164 : f32 to vector<8x128xf32>
    %498 = arith.addf %497, %496 : vector<8x128xf32>
    %499 = arith.divf %497, %498 : vector<8x128xf32>
    %500 = vector.extract_strided_slice %493 {offsets = [0, 128], sizes = [8, 128], strides = [1, 1]} : vector<8x512xf32> to vector<8x128xf32>
    %501 = arith.negf %500 : vector<8x128xf32>
    %502 = math.exp %501 : vector<8x128xf32>
    %cst_165 = arith.constant 1.000000e+00 : f32
    %503 = vector.broadcast %cst_165 : f32 to vector<8x128xf32>
    %504 = arith.addf %503, %502 : vector<8x128xf32>
    %505 = arith.divf %503, %504 : vector<8x128xf32>
    %506 = vector.extract_strided_slice %493 {offsets = [0, 256], sizes = [8, 128], strides = [1, 1]} : vector<8x512xf32> to vector<8x128xf32>
    %507 = math.tanh %506 : vector<8x128xf32>
    %508 = vector.extract_strided_slice %493 {offsets = [0, 384], sizes = [8, 128], strides = [1, 1]} : vector<8x512xf32> to vector<8x128xf32>
    %509 = arith.negf %508 : vector<8x128xf32>
    %510 = math.exp %509 : vector<8x128xf32>
    %cst_166 = arith.constant 1.000000e+00 : f32
    %511 = vector.broadcast %cst_166 : f32 to vector<8x128xf32>
    %512 = arith.addf %511, %510 : vector<8x128xf32>
    %513 = arith.divf %511, %512 : vector<8x128xf32>
    %514 = arith.mulf %505, %485 : vector<8x128xf32>
    %515 = arith.mulf %499, %507 : vector<8x128xf32>
    %516 = arith.addf %514, %515 : vector<8x128xf32>
    %517 = math.tanh %516 : vector<8x128xf32>
    %518 = arith.mulf %513, %517 : vector<8x128xf32>
    %c7_i32_167 = arith.constant 7 : i32
    %519 = arith.index_cast %c7_i32_167 : i32 to index
    %c0_168 = arith.constant 0 : index
    %c0_169 = arith.constant 0 : index
    %520 = vector.load %arg11[%519, %c0_168, %c0_169] : memref<8x8x512xf32, #tpu.memory_space<vmem>>, vector<1x8x512xf32>
    %521 = vector.shape_cast %520 : vector<1x8x512xf32> to vector<8x512xf32>
    %c0_170 = arith.constant 0 : index
    %c0_171 = arith.constant 0 : index
    %522 = vector.load %arg6[%c0_170, %c0_171] : memref<128x512xf32, #tpu.memory_space<vmem>>, vector<128x512xf32>
    %cst_172 = arith.constant dense<0.000000e+00> : vector<8x512xf32>
    %523 = tpu.matmul %518, %522, %cst_172 {dimension_numbers = #tpu.dot_dimension_numbers<[1], [0], [0], [1], [0, 0, 1, 1], [], []>} : vector<8x128xf32>, vector<128x512xf32>, vector<8x512xf32> -> vector<8x512xf32>
    %524 = arith.addf %521, %523 : vector<8x512xf32>
    %525 = vector.extract_strided_slice %524 {offsets = [0, 0], sizes = [8, 128], strides = [1, 1]} : vector<8x512xf32> to vector<8x128xf32>
    %526 = arith.negf %525 : vector<8x128xf32>
    %527 = math.exp %526 : vector<8x128xf32>
    %cst_173 = arith.constant 1.000000e+00 : f32
    %528 = vector.broadcast %cst_173 : f32 to vector<8x128xf32>
    %529 = arith.addf %528, %527 : vector<8x128xf32>
    %530 = arith.divf %528, %529 : vector<8x128xf32>
    %531 = vector.extract_strided_slice %524 {offsets = [0, 128], sizes = [8, 128], strides = [1, 1]} : vector<8x512xf32> to vector<8x128xf32>
    %532 = arith.negf %531 : vector<8x128xf32>
    %533 = math.exp %532 : vector<8x128xf32>
    %cst_174 = arith.constant 1.000000e+00 : f32
    %534 = vector.broadcast %cst_174 : f32 to vector<8x128xf32>
    %535 = arith.addf %534, %533 : vector<8x128xf32>
    %536 = arith.divf %534, %535 : vector<8x128xf32>
    %537 = vector.extract_strided_slice %524 {offsets = [0, 256], sizes = [8, 128], strides = [1, 1]} : vector<8x512xf32> to vector<8x128xf32>
    %538 = math.tanh %537 : vector<8x128xf32>
    %539 = vector.extract_strided_slice %524 {offsets = [0, 384], sizes = [8, 128], strides = [1, 1]} : vector<8x512xf32> to vector<8x128xf32>
    %540 = arith.negf %539 : vector<8x128xf32>
    %541 = math.exp %540 : vector<8x128xf32>
    %cst_175 = arith.constant 1.000000e+00 : f32
    %542 = vector.broadcast %cst_175 : f32 to vector<8x128xf32>
    %543 = arith.addf %542, %541 : vector<8x128xf32>
    %544 = arith.divf %542, %543 : vector<8x128xf32>
    %545 = arith.mulf %536, %516 : vector<8x128xf32>
    %546 = arith.mulf %530, %538 : vector<8x128xf32>
    %547 = arith.addf %545, %546 : vector<8x128xf32>
    %548 = math.tanh %547 : vector<8x128xf32>
    %549 = arith.mulf %544, %548 : vector<8x128xf32>
    %c8_i32_176 = arith.constant 8 : i32
    %c0_177 = arith.constant 0 : index
    %c0_178 = arith.constant 0 : index
    %550 = vector.load %arg8[%c0_177, %c0_178] : memref<128x128xf32, #tpu.memory_space<vmem>>, vector<128x128xf32>
    %cst_179 = arith.constant dense<0.000000e+00> : vector<8x128xf32>
    %551 = tpu.matmul %549, %550, %cst_179 {dimension_numbers = #tpu.dot_dimension_numbers<[1], [0], [0], [1], [0, 0, 1, 1], [], []>} : vector<8x128xf32>, vector<128x128xf32>, vector<8x128xf32> -> vector<8x128xf32>
    %c0_180 = arith.constant 0 : index
    %c0_181 = arith.constant 0 : index
    %552 = vector.load %arg9[%c0_180, %c0_181] : memref<1x128xf32, #tpu.memory_space<vmem>>, vector<1x128xf32>
    %553 = vector.broadcast %552 : vector<1x128xf32> to vector<8x128xf32>
    %554 = arith.addf %551, %553 : vector<8x128xf32>
    %c0_182 = arith.constant 0 : index
    %c0_183 = arith.constant 0 : index
    %555 = vector.load %arg10[%c0_182, %c0_183] : memref<8x128xf32, #tpu.memory_space<vmem>>, vector<8x128xf32>
    tpu.vector_store %arg10[%c0_182, %c0_183], %554 {strides = array<i32>} : memref<8x128xf32, #tpu.memory_space<vmem>>, vector<8x128xf32>,
    return
  }
  func.func @transform_0(%arg0: i32) -> (i32, i32, i32) {
    %c0_i32 = arith.constant 0 : i32
    %c0_i32_0 = arith.constant 0 : i32
    %c0_i32_1 = arith.constant 0 : i32
    return %c0_i32, %arg0, %c0_i32_0 : i32, i32, i32
  }
  func.func @transform_1(%arg0: i32) -> (i32, i32) {
    %c0_i32 = arith.constant 0 : i32
    %c0_i32_0 = arith.constant 0 : i32
    %c0_i32_1 = arith.constant 0 : i32
    return %c0_i32, %c0_i32_0 : i32, i32
  }
  func.func @transform_2(%arg0: i32) -> (i32, i32) {
    %c0_i32 = arith.constant 0 : i32
    %c0_i32_0 = arith.constant 0 : i32
    %c0_i32_1 = arith.constant 0 : i32
    return %c0_i32, %c0_i32_0 : i32, i32
  }
  func.func @transform_3(%arg0: i32) -> (i32, i32) {
    %c0_i32 = arith.constant 0 : i32
    %c0_i32_0 = arith.constant 0 : i32
    %c0_i32_1 = arith.constant 0 : i32
    return %c0_i32, %c0_i32_0 : i32, i32
  }
  func.func @transform_4(%arg0: i32) -> (i32, i32) {
    %c0_i32 = arith.constant 0 : i32
    %c0_i32_0 = arith.constant 0 : i32
    %c0_i32_1 = arith.constant 0 : i32
    return %c0_i32, %c0_i32_0 : i32, i32
  }
  func.func @transform_5(%arg0: i32) -> (i32, i32) {
    %c0_i32 = arith.constant 0 : i32
    %c0_i32_0 = arith.constant 0 : i32
    %c0_i32_1 = arith.constant 0 : i32
    return %c0_i32, %c0_i32_0 : i32, i32
  }
  func.func @transform_6(%arg0: i32) -> (i32, i32) {
    %c0_i32 = arith.constant 0 : i32
    %c0_i32_0 = arith.constant 0 : i32
    %c0_i32_1 = arith.constant 0 : i32
    return %c0_i32, %c0_i32_0 : i32, i32
  }
  func.func @transform_7(%arg0: i32) -> (i32, i32) {
    %c0_i32 = arith.constant 0 : i32
    %c0_i32_0 = arith.constant 0 : i32
    %c0_i32_1 = arith.constant 0 : i32
    return %c0_i32, %c0_i32_0 : i32, i32
  }
  func.func @transform_8(%arg0: i32) -> (i32, i32) {
    %c0_i32 = arith.constant 0 : i32
    %c0_i32_0 = arith.constant 0 : i32
    %c0_i32_1 = arith.constant 0 : i32
    return %c0_i32, %c0_i32_0 : i32, i32
  }
  func.func @transform_9(%arg0: i32) -> (i32, i32) {
    %c0_i32 = arith.constant 0 : i32
    %c0_i32_0 = arith.constant 0 : i32
    return %arg0, %c0_i32 : i32, i32
  }
}

</mosaic_0001>

<llo_original>
// kernel: tpu_custom_call.1
$region0: #{tpu_custom_call.1}
  #allocation0 [shape = 'u32[]', space=smem, size = 0x4, offset = 0x4, fixed_abs, tag = 'smem constant byte address 0x4 - core index']
  #allocation1 [shape = 'u32[72,128]{1,0:T(1,128)}', space=vmem, size = 0x9000, scoped, tag = 'internal scratch']
  #allocation2 [shape = 'f32[8,8,512]{2,1,0:T(8,128)}', space=vmem, size = 0x20000, scoped, tag = 'scratch operand']
  #allocation3 [shape = 'f32[8,8,128]{2,1,0:T(8,128)}', space=vmem, size = 0x8000, scoped, tag = 'scratch operand']
  %s0 = inlined_call_operand.hbm [shape: f32[8,8,16], index: 0, kind: input, shape index: {}]
  %s1 = inlined_call_operand.hbm [shape: f32[16,512], index: 1, kind: input, shape index: {}]
  %s2 = inlined_call_operand.hbm [shape: f32[128,512], index: 2, kind: input, shape index: {}]
  %s3 = inlined_call_operand.hbm [shape: f32[1,512], index: 3, kind: input, shape index: {}]
  %s4 = inlined_call_operand.hbm [shape: f32[128,512], index: 4, kind: input, shape index: {}]
  %s5 = inlined_call_operand.hbm [shape: f32[128,512], index: 5, kind: input, shape index: {}]
  %s6 = inlined_call_operand.vmem [shape: f32[1,512], index: 6, kind: input, shape index: {}]
  %s7 = inlined_call_operand.hbm [shape: f32[128,128], index: 7, kind: input, shape index: {}]
  %s8 = inlined_call_operand.vmem [shape: f32[1,128], index: 8, kind: input, shape index: {}]
  %s9 = inlined_call_operand.hbm [shape: f32[8,128], index: 9, kind: output, shape index: {}]
  %s10 = sld [smem:[#allocation0]]
  $region74: #{tpu_custom_call.1} parent=0
    _
  %s12 = ssub.s32 1, %s10
  %s13 = scalar_select 0, %s12, %s10
  $region1: #{tpu_custom_call.1} parent=0
    #allocation4 [shape = 'u8[32768]{0}', space=vmem, size = 0x8000, scoped, tag = 'input window, operand 0, single buffered']
    #allocation5 [shape = 's32[1]{0}', space=sflag, size = 0x4, scoped, tag = 'scoped memory for tpu_custom_call.1']
    #allocation6 [shape = 's32[1]{0}', space=sflag, size = 0x4, scoped, tag = 'scoped memory for tpu_custom_call.1']
    #allocation7 [shape = 'u8[32768]{0}', space=vmem, size = 0x8000, scoped, tag = 'input window, operand 1, single buffered']
    #allocation8 [shape = 's32[1]{0}', space=sflag, size = 0x4, scoped, tag = 'scoped memory for tpu_custom_call.1']
    #allocation9 [shape = 'u8[262144]{0}', space=vmem, size = 0x40000, scoped, tag = 'input window, operand 2, single buffered']
    #allocation10 [shape = 'u8[2048]{0}', space=vmem, size = 0x800, scoped, tag = 'input window, operand 3, single buffered']
    #allocation11 [shape = 's32[1]{0}', space=sflag, size = 0x4, scoped, tag = 'scoped memory for tpu_custom_call.1']
    #allocation12 [shape = 'u8[262144]{0}', space=vmem, size = 0x40000, scoped, tag = 'input window, operand 4, single buffered']
    #allocation13 [shape = 'u8[262144]{0}', space=vmem, size = 0x40000, scoped, tag = 'input window, operand 5, single buffered']
    #allocation14 [shape = 's32[1]{0}', space=sflag, size = 0x4, scoped, tag = 'scoped memory for tpu_custom_call.1']
    #allocation15 [shape = 'u8[65536]{0}', space=vmem, size = 0x10000, scoped, tag = 'input window, operand 7, single buffered']
    #allocation16 [shape = 'u8[4096]{0}', space=vmem, size = 0x1000, scoped, tag = 'output window, operand 0, single buffered']
    %14 = vsyncpa [#allocation5], 0
    %15 = vsyncpa [#allocation8], 0
    %16 = vsyncpa [#allocation11], 0
    %17 = vsyncpa [#allocation14], 0
    %18 = vsyncpa [#allocation6], 0
    // Predicated region
    $region2: #{tpu_custom_call.1} parent=1 // pred_check
      _
    $region3: #{tpu_custom_call.1} parent=1 // pred_check_branch
      %20 = sbr.rel (0) target = $region5
    $region4: #{tpu_custom_call.1} parent=1 // pred_region
      %22 = vsyncadd [#allocation5], 0
      %s23 = sshll.u32 %s0, 4
      %s24 = int_to_ptr.hbm [resolvable:$true] %s23
      %s25 = sshll.u32 [#allocation4], 4
      %s26 = int_to_ptr.vmem [resolvable:$true] %s25
      %31 = dma.hbm_to_vmem [thread:$0]  %s24, 1024, %s26, [#allocation5], 128, 128, 8
    $region5: #{tpu_custom_call.1} parent=1 // pred_fallthru
      _
    // Predicated region
    $region6: #{tpu_custom_call.1} parent=1 // pred_check
      _
    $region7: #{tpu_custom_call.1} parent=1 // pred_check_branch
      %33 = sbr.rel (0) target = $region9
    $region8: #{tpu_custom_call.1} parent=1 // pred_region
      %35 = vsyncadd [#allocation8], 0
      %s36 = sshll.u32 %s1, 4
      %s37 = int_to_ptr.hbm [resolvable:$true] %s36
      %s38 = sshll.u32 [#allocation7], 4
      %s39 = int_to_ptr.vmem [resolvable:$true] %s38
      %44 = dma.hbm_to_vmem [thread:$0]  %s37, 1024, %s39, [#allocation8], 512, 512, 32
    $region9: #{tpu_custom_call.1} parent=1 // pred_fallthru
      _
    // Predicated region
    $region10: #{tpu_custom_call.1} parent=1 // pred_check
      _
    $region11: #{tpu_custom_call.1} parent=1 // pred_check_branch
      %46 = sbr.rel (0) target = $region13
    $region12: #{tpu_custom_call.1} parent=1 // pred_region
      %48 = vsyncadd [#allocation8], 0
      %s49 = sshll.u32 %s2, 4
      %s50 = int_to_ptr.hbm [resolvable:$true] %s49
      %s51 = sshll.u32 [#allocation9], 4
      %s52 = int_to_ptr.vmem [resolvable:$true] %s51
      %57 = dma.hbm_to_vmem [thread:$0]  %s50, 8192, %s52, [#allocation8], 512, 512, 32
    $region13: #{tpu_custom_call.1} parent=1 // pred_fallthru
      _
    // Predicated region
    $region14: #{tpu_custom_call.1} parent=1 // pred_check
      _
    $region15: #{tpu_custom_call.1} parent=1 // pred_check_branch
      %59 = sbr.rel (0) target = $region17
    $region16: #{tpu_custom_call.1} parent=1 // pred_region
      %61 = vsyncadd [#allocation11], 0
      %s63 = sshll.u32 %s3, 4
      %s64 = int_to_ptr.hbm [resolvable:$true] %s63
      %s65 = sshll.u32 [#allocation10], 4
      %s66 = int_to_ptr.vmem [resolvable:$true] %s65
      %68 = dma.hbm_to_vmem [thread:$0]  %s64, 64, %s66, [#allocation11]
    $region17: #{tpu_custom_call.1} parent=1 // pred_fallthru
      _
    // Predicated region
    $region18: #{tpu_custom_call.1} parent=1 // pred_check
      _
    $region19: #{tpu_custom_call.1} parent=1 // pred_check_branch
      %70 = sbr.rel (0) target = $region21
    $region20: #{tpu_custom_call.1} parent=1 // pred_region
      %72 = vsyncadd [#allocation11], 0
      %s73 = sshll.u32 %s4, 4
      %s74 = int_to_ptr.hbm [resolvable:$true] %s73
      %s75 = sshll.u32 [#allocation12], 4
      %s76 = int_to_ptr.vmem [resolvable:$true] %s75
      %81 = dma.hbm_to_vmem [thread:$0]  %s74, 8192, %s76, [#allocation11], 512, 512, 32
    $region21: #{tpu_custom_call.1} parent=1 // pred_fallthru
      _
    // Predicated region
    $region22: #{tpu_custom_call.1} parent=1 // pred_check
      _
    $region23: #{tpu_custom_call.1} parent=1 // pred_check_branch
      %83 = sbr.rel (0) target = $region25
    $region24: #{tpu_custom_call.1} parent=1 // pred_region
      %85 = vsyncadd [#allocation14], 0
      %s86 = sshll.u32 %s5, 4
      %s87 = int_to_ptr.hbm [resolvable:$true] %s86
      %s88 = sshll.u32 [#allocation13], 4
      %s89 = int_to_ptr.vmem [resolvable:$true] %s88
      %94 = dma.hbm_to_vmem [thread:$0]  %s87, 8192, %s89, [#allocation14], 512, 512, 32
    $region25: #{tpu_custom_call.1} parent=1 // pred_fallthru
      _
    // Predicated region
    $region26: #{tpu_custom_call.1} parent=1 // pred_check
      _
    $region27: #{tpu_custom_call.1} parent=1 // pred_check_branch
      %96 = sbr.rel (0) target = $region29
    $region28: #{tpu_custom_call.1} parent=1 // pred_region
      _
    $region29: #{tpu_custom_call.1} parent=1 // pred_fallthru
      _
    // Predicated region
    $region30: #{tpu_custom_call.1} parent=1 // pred_check
      _
    $region31: #{tpu_custom_call.1} parent=1 // pred_check_branch
      %98 = sbr.rel (0) target = $region33
    $region32: #{tpu_custom_call.1} parent=1 // pred_region
      %100 = vsyncadd [#allocation14], 0
      %s101 = sshll.u32 %s7, 4
      %s102 = int_to_ptr.hbm [resolvable:$true] %s101
      %s103 = sshll.u32 [#allocation15], 4
      %s104 = int_to_ptr.vmem [resolvable:$true] %s103
      %109 = dma.hbm_to_vmem [thread:$0]  %s102, 2048, %s104, [#allocation14], 128, 128, 8
    $region33: #{tpu_custom_call.1} parent=1 // pred_fallthru
      _
    // Predicated region
    $region34: #{tpu_custom_call.1} parent=1 // pred_check
      _
    $region35: #{tpu_custom_call.1} parent=1 // pred_check_branch
      %111 = sbr.rel (0) target = $region37
    $region36: #{tpu_custom_call.1} parent=1 // pred_region
      _
    $region37: #{tpu_custom_call.1} parent=1 // pred_fallthru
      _
    // Predicated region
    $region38: #{tpu_custom_call.1} parent=1 // pred_check
      _
    $region39: #{tpu_custom_call.1} parent=1 // pred_check_branch
      %113 = sbr.rel (0) target = $region41
    $region40: #{tpu_custom_call.1} parent=1 // pred_region
      %115 = dma.done [#allocation5], 1024
    $region41: #{tpu_custom_call.1} parent=1 // pred_fallthru
      _
    // Predicated region
    $region42: #{tpu_custom_call.1} parent=1 // pred_check
      _
    $region43: #{tpu_custom_call.1} parent=1 // pred_check_branch
      %117 = sbr.rel (0) target = $region45
    $region44: #{tpu_custom_call.1} parent=1 // pred_region
      %119 = dma.done [#allocation8], 1024
    $region45: #{tpu_custom_call.1} parent=1 // pred_fallthru
      _
    // Predicated region
    $region46: #{tpu_custom_call.1} parent=1 // pred_check
      _
    $region47: #{tpu_custom_call.1} parent=1 // pred_check_branch
      %121 = sbr.rel (0) target = $region49
    $region48: #{tpu_custom_call.1} parent=1 // pred_region
      %123 = dma.done [#allocation8], 8192
    $region49: #{tpu_custom_call.1} parent=1 // pred_fallthru
      _
    // Predicated region
    $region50: #{tpu_custom_call.1} parent=1 // pred_check
      _
    $region51: #{tpu_custom_call.1} parent=1 // pred_check_branch
      %125 = sbr.rel (0) target = $region53
    $region52: #{tpu_custom_call.1} parent=1 // pred_region
      %127 = dma.done [#allocation11], 64
    $region53: #{tpu_custom_call.1} parent=1 // pred_fallthru
      _
    // Predicated region
    $region54: #{tpu_custom_call.1} parent=1 // pred_check
      _
    $region55: #{tpu_custom_call.1} parent=1 // pred_check_branch
      %129 = sbr.rel (0) target = $region57
    $region56: #{tpu_custom_call.1} parent=1 // pred_region
      %131 = dma.done [#allocation11], 8192
    $region57: #{tpu_custom_call.1} parent=1 // pred_fallthru
      _
    // Predicated region
    $region58: #{tpu_custom_call.1} parent=1 // pred_check
      _
    $region59: #{tpu_custom_call.1} parent=1 // pred_check_branch
      %133 = sbr.rel (0) target = $region61
    $region60: #{tpu_custom_call.1} parent=1 // pred_region
      %135 = dma.done [#allocation14], 8192
    $region61: #{tpu_custom_call.1} parent=1 // pred_fallthru
      _
    // Predicated region
    $region62: #{tpu_custom_call.1} parent=1 // pred_check
      _
    $region63: #{tpu_custom_call.1} parent=1 // pred_check_branch
      %137 = sbr.rel (0) target = $region65
    $region64: #{tpu_custom_call.1} parent=1 // pred_region
      %139 = dma.done [#allocation14], 2048
    $region65: #{tpu_custom_call.1} parent=1 // pred_fallthru
      _
    %v140 = vld [vmem:[#allocation4] sm:$0xff]
    %v141 = vld [vmem:[#allocation4 + $0x8] sm:$0xff]
    %v142 = vld [vmem:[#allocation4 + $0x10] sm:$0xff]
    %v143 = vld [vmem:[#allocation4 + $0x18] sm:$0xff]
    %v144 = vld [vmem:[#allocation4 + $0x20] sm:$0xff]
    %v145 = vld [vmem:[#allocation4 + $0x28] sm:$0xff]
    %v146 = vld [vmem:[#allocation4 + $0x30] sm:$0xff]
    %v147 = vld [vmem:[#allocation4 + $0x38] sm:$0xff]
    %v148 = vld [vmem:[#allocation7] sm:$0xff]
    %v149 = vld [vmem:[#allocation7 + $0x8] sm:$0xff]
    %v150 = vld [vmem:[#allocation7 + $0x10] sm:$0xff]
    %v151 = vld [vmem:[#allocation7 + $0x18] sm:$0xff]
    %v152 = vld [vmem:[#allocation7 + $0x20] sm:$0xff]
    %v153 = vld [vmem:[#allocation7 + $0x28] sm:$0xff]
    %v154 = vld [vmem:[#allocation7 + $0x30] sm:$0xff]
    %v155 = vld [vmem:[#allocation7 + $0x38] sm:$0xff]
    %v156 = vld [vmem:[#allocation10] sm:$0xf]
    %v158 = vperm.slane %v156, 0
    %v159 = vperm.slane %v156, 1
    %v160 = vperm.slane %v156, 2
    %v161 = vperm.slane %v156, 3
    %vm166 = vcmask 130048
    %v168 = vsel %vm166, %v140, 0
    %v171 = vsel %vm166, %v141, 0
    %v174 = vsel %vm166, %v142, 0
    %v177 = vsel %vm166, %v143, 0
    %v180 = vsel %vm166, %v144, 0
    %v183 = vsel %vm166, %v145, 0
    %v186 = vsel %vm166, %v146, 0
    %v189 = vsel %vm166, %v147, 0
    %191 = vmatpush.msra.mxu0 0.0
    %192 = vmatpush.msra.mxu0 0.0
    %193 = vmatpush.msra.mxu0 0.0
    %194 = vmatpush.msra.mxu0 0.0
    %195 = vmatpush.msra.mxu0 0.0
    %196 = vmatpush.msra.mxu0 0.0
    %197 = vmatpush.msra.mxu0 0.0
    %198 = vmatpush.msra.mxu0 0.0
    %199 = vmatpush.msra.mxu0 0.0
    %200 = vmatpush.msra.mxu0 0.0
    %201 = vmatpush.msra.mxu0 0.0
    %202 = vmatpush.msra.mxu0 0.0
    %203 = vmatpush.msra.mxu0 0.0
    %204 = vmatpush.msra.mxu0 0.0
    %205 = vmatpush.msra.mxu0 %v152
    %206 = vmatpush.msra.mxu0 %v148
    %207 = vmatmul.f32.gmra.mxu0 %v168
    %v208 = vpop.f32.mrf.mxu0
    %v209 = vadd.f32 %v158, %v208
    %210 = vmatmul.f32.gmra.mxu0 %v171
    %v211 = vpop.f32.mrf.mxu0
    %v212 = vadd.f32 %v158, %v211
    %213 = vmatmul.f32.gmra.mxu0 %v174
    %v214 = vpop.f32.mrf.mxu0
    %v215 = vadd.f32 %v158, %v214
    %216 = vmatmul.f32.gmra.mxu0 %v177
    %v217 = vpop.f32.mrf.mxu0
    %v218 = vadd.f32 %v158, %v217
    %219 = vmatmul.f32.gmra.mxu0 %v180
    %v220 = vpop.f32.mrf.mxu0
    %v221 = vadd.f32 %v158, %v220
    %222 = vmatmul.f32.gmra.mxu0 %v183
    %v223 = vpop.f32.mrf.mxu0
    %v224 = vadd.f32 %v158, %v223
    %225 = vmatmul.f32.gmra.mxu0 %v186
    %v226 = vpop.f32.mrf.mxu0
    %v227 = vadd.f32 %v158, %v226
    %228 = vmatmul.f32.gmra.mxu0 %v189
    %v229 = vpop.f32.mrf.mxu0
    %v230 = vadd.f32 %v158, %v229
    %231 = vdwg.mxu0
    %232 = vmatpush.msra.mxu0 0.0
    %233 = vmatpush.msra.mxu0 0.0
    %234 = vmatpush.msra.mxu0 0.0
    %235 = vmatpush.msra.mxu0 0.0
    %236 = vmatpush.msra.mxu0 0.0
    %237 = vmatpush.msra.mxu0 0.0
    %238 = vmatpush.msra.mxu0 0.0
    %239 = vmatpush.msra.mxu0 0.0
    %240 = vmatpush.msra.mxu0 0.0
    %241 = vmatpush.msra.mxu0 0.0
    %242 = vmatpush.msra.mxu0 0.0
    %243 = vmatpush.msra.mxu0 0.0
    %244 = vmatpush.msra.mxu0 0.0
    %245 = vmatpush.msra.mxu0 0.0
    %246 = vmatpush.msra.mxu0 %v153
    %247 = vmatpush.msra.mxu0 %v149
    %248 = vmatmul.f32.gmra.mxu0 %v168
    %v249 = vpop.f32.mrf.mxu0
    %v250 = vadd.f32 %v159, %v249
    %251 = vmatmul.f32.gmra.mxu0 %v171
    %v252 = vpop.f32.mrf.mxu0
    %v253 = vadd.f32 %v159, %v252
    %254 = vmatmul.f32.gmra.mxu0 %v174
    %v255 = vpop.f32.mrf.mxu0
    %v256 = vadd.f32 %v159, %v255
    %257 = vmatmul.f32.gmra.mxu0 %v177
    %v258 = vpop.f32.mrf.mxu0
    %v259 = vadd.f32 %v159, %v258
    %260 = vmatmul.f32.gmra.mxu0 %v180
    %v261 = vpop.f32.mrf.mxu0
    %v262 = vadd.f32 %v159, %v261
    %263 = vmatmul.f32.gmra.mxu0 %v183
    %v264 = vpop.f32.mrf.mxu0
    %v265 = vadd.f32 %v159, %v264
    %266 = vmatmul.f32.gmra.mxu0 %v186
    %v267 = vpop.f32.mrf.mxu0
    %v268 = vadd.f32 %v159, %v267
    %269 = vmatmul.f32.gmra.mxu0 %v189
    %v270 = vpop.f32.mrf.mxu0
    %v271 = vadd.f32 %v159, %v270
    %272 = vdwg.mxu0
    %273 = vmatpush.msra.mxu0 0.0
    %274 = vmatpush.msra.mxu0 0.0
    %275 = vmatpush.msra.mxu0 0.0
    %276 = vmatpush.msra.mxu0 0.0
    %277 = vmatpush.msra.mxu0 0.0
    %278 = vmatpush.msra.mxu0 0.0
    %279 = vmatpush.msra.mxu0 0.0
    %280 = vmatpush.msra.mxu0 0.0
    %281 = vmatpush.msra.mxu0 0.0
    %282 = vmatpush.msra.mxu0 0.0
    %283 = vmatpush.msra.mxu0 0.0
    %284 = vmatpush.msra.mxu0 0.0
    %285 = vmatpush.msra.mxu0 0.0
    %286 = vmatpush.msra.mxu0 0.0
    %287 = vmatpush.msra.mxu0 %v154
    %288 = vmatpush.msra.mxu0 %v150
    %289 = vmatmul.f32.gmra.mxu0 %v168
    %v290 = vpop.f32.mrf.mxu0
    %v291 = vadd.f32 %v160, %v290
    %292 = vmatmul.f32.gmra.mxu0 %v171
    %v293 = vpop.f32.mrf.mxu0
    %v294 = vadd.f32 %v160, %v293
    %295 = vmatmul.f32.gmra.mxu0 %v174
    %v296 = vpop.f32.mrf.mxu0
    %v297 = vadd.f32 %v160, %v296
    %298 = vmatmul.f32.gmra.mxu0 %v177
    %v299 = vpop.f32.mrf.mxu0
    %v300 = vadd.f32 %v160, %v299
    %301 = vmatmul.f32.gmra.mxu0 %v180
    %v302 = vpop.f32.mrf.mxu0
    %v303 = vadd.f32 %v160, %v302
    %304 = vmatmul.f32.gmra.mxu0 %v183
    %v305 = vpop.f32.mrf.mxu0
    %v306 = vadd.f32 %v160, %v305
    %307 = vmatmul.f32.gmra.mxu0 %v186
    %v308 = vpop.f32.mrf.mxu0
    %v309 = vadd.f32 %v160, %v308
    %310 = vmatmul.f32.gmra.mxu0 %v189
    %v311 = vpop.f32.mrf.mxu0
    %v312 = vadd.f32 %v160, %v311
    %313 = vdwg.mxu0
    %314 = vmatpush.msra.mxu0 0.0
    %315 = vmatpush.msra.mxu0 0.0
    %316 = vmatpush.msra.mxu0 0.0
    %317 = vmatpush.msra.mxu0 0.0
    %318 = vmatpush.msra.mxu0 0.0
    %319 = vmatpush.msra.mxu0 0.0
    %320 = vmatpush.msra.mxu0 0.0
    %321 = vmatpush.msra.mxu0 0.0
    %322 = vmatpush.msra.mxu0 0.0
    %323 = vmatpush.msra.mxu0 0.0
    %324 = vmatpush.msra.mxu0 0.0
    %325 = vmatpush.msra.mxu0 0.0
    %326 = vmatpush.msra.mxu0 0.0
    %327 = vmatpush.msra.mxu0 0.0
    %328 = vmatpush.msra.mxu0 %v155
    %329 = vmatpush.msra.mxu0 %v151
    %330 = vmatmul.f32.gmra.mxu0 %v168
    %v331 = vpop.f32.mrf.mxu0
    %v332 = vadd.f32 %v161, %v331
    %333 = vmatmul.f32.gmra.mxu0 %v171
    %v334 = vpop.f32.mrf.mxu0
    %v335 = vadd.f32 %v161, %v334
    %336 = vmatmul.f32.gmra.mxu0 %v174
    %v337 = vpop.f32.mrf.mxu0
    %v338 = vadd.f32 %v161, %v337
    %339 = vmatmul.f32.gmra.mxu0 %v177
    %v340 = vpop.f32.mrf.mxu0
    %v341 = vadd.f32 %v161, %v340
    %342 = vmatmul.f32.gmra.mxu0 %v180
    %v343 = vpop.f32.mrf.mxu0
    %v344 = vadd.f32 %v161, %v343
    %345 = vmatmul.f32.gmra.mxu0 %v183
    %v346 = vpop.f32.mrf.mxu0
    %v347 = vadd.f32 %v161, %v346
    %348 = vmatmul.f32.gmra.mxu0 %v186
    %v349 = vpop.f32.mrf.mxu0
    %v350 = vadd.f32 %v161, %v349
    %351 = vmatmul.f32.gmra.mxu0 %v189
    %v352 = vpop.f32.mrf.mxu0
    %v353 = vadd.f32 %v161, %v352
    %354 = vdwg.mxu0
    %355 = vst [vmem:[#allocation2] sm:$0xff] %v209
    %356 = vst [vmem:[#allocation2 + $0x8] sm:$0xff] %v250
    %357 = vst [vmem:[#allocation2 + $0x10] sm:$0xff] %v291
    %358 = vst [vmem:[#allocation2 + $0x18] sm:$0xff] %v332
    %359 = vst [vmem:[#allocation2 + $0x20] sm:$0xff] %v212
    %360 = vst [vmem:[#allocation2 + $0x28] sm:$0xff] %v253
    %361 = vst [vmem:[#allocation2 + $0x30] sm:$0xff] %v294
    %362 = vst [vmem:[#allocation2 + $0x38] sm:$0xff] %v335
    %363 = vst [vmem:[#allocation2 + $0x40] sm:$0xff] %v215
    %364 = vst [vmem:[#allocation2 + $0x48] sm:$0xff] %v256
    %365 = vst [vmem:[#allocation2 + $0x50] sm:$0xff] %v297
    %366 = vst [vmem:[#allocation2 + $0x58] sm:$0xff] %v338
    %367 = vst [vmem:[#allocation2 + $0x60] sm:$0xff] %v218
    %368 = vst [vmem:[#allocation2 + $0x68] sm:$0xff] %v259
    %369 = vst [vmem:[#allocation2 + $0x70] sm:$0xff] %v300
    %370 = vst [vmem:[#allocation2 + $0x78] sm:$0xff] %v341
    %371 = vst [vmem:[#allocation2 + $0x80] sm:$0xff] %v221
    %372 = vst [vmem:[#allocation2 + $0x88] sm:$0xff] %v262
    %373 = vst [vmem:[#allocation2 + $0x90] sm:$0xff] %v303
    %374 = vst [vmem:[#allocation2 + $0x98] sm:$0xff] %v344
    %375 = vst [vmem:[#allocation2 + $0xa0] sm:$0xff] %v224
    %376 = vst [vmem:[#allocation2 + $0xa8] sm:$0xff] %v265
    %377 = vst [vmem:[#allocation2 + $0xb0] sm:$0xff] %v306
    %378 = vst [vmem:[#allocation2 + $0xb8] sm:$0xff] %v347
    %379 = vst [vmem:[#allocation2 + $0xc0] sm:$0xff] %v227
    %380 = vst [vmem:[#allocation2 + $0xc8] sm:$0xff] %v268
    %381 = vst [vmem:[#allocation2 + $0xd0] sm:$0xff] %v309
    %382 = vst [vmem:[#allocation2 + $0xd8] sm:$0xff] %v350
    %383 = vst [vmem:[#allocation2 + $0xe0] sm:$0xff] %v230
    %384 = vst [vmem:[#allocation2 + $0xe8] sm:$0xff] %v271
    %385 = vst [vmem:[#allocation2 + $0xf0] sm:$0xff] %v312
    %386 = vst [vmem:[#allocation2 + $0xf8] sm:$0xff] %v353
    %v387 = vld [vmem:[#allocation2] sm:$0xff]
    %v388 = vld [vmem:[#allocation2 + $0x8] sm:$0xff]
    %v389 = vld [vmem:[#allocation2 + $0x10] sm:$0xff]
    %v390 = vld [vmem:[#allocation2 + $0x18] sm:$0xff]
    %v391 = vld [vmem:[#allocation9] sm:$0xff]
    %v392 = vld [vmem:[#allocation9 + $0x8] sm:$0xff]
    %v393 = vld [vmem:[#allocation9 + $0x10] sm:$0xff]
    %v394 = vld [vmem:[#allocation9 + $0x18] sm:$0xff]
    %v395 = vld [vmem:[#allocation9 + $0x20] sm:$0xff]
    %v396 = vld [vmem:[#allocation9 + $0x28] sm:$0xff]
    %v397 = vld [vmem:[#allocation9 + $0x30] sm:$0xff]
    %v398 = vld [vmem:[#allocation9 + $0x38] sm:$0xff]
    %v399 = vld [vmem:[#allocation9 + $0x40] sm:$0xff]
    %v400 = vld [vmem:[#allocation9 + $0x48] sm:$0xff]
    %v401 = vld [vmem:[#allocation9 + $0x50] sm:$0xff]
    %v402 = vld [vmem:[#allocation9 + $0x58] sm:$0xff]
    %v403 = vld [vmem:[#allocation9 + $0x60] sm:$0xff]
    %v404 = vld [vmem:[#allocation9 + $0x68] sm:$0xff]
    %v405 = vld [vmem:[#allocation9 + $0x70] sm:$0xff]
    %v406 = vld [vmem:[#allocation9 + $0x78] sm:$0xff]
    %v407 = vld [vmem:[#allocation9 + $0x80] sm:$0xff]
    %v408 = vld [vmem:[#allocation9 + $0x88] sm:$0xff]
    %v409 = vld [vmem:[#allocation9 + $0x90] sm:$0xff]
    %v410 = vld [vmem:[#allocation9 + $0x98] sm:$0xff]
    %v411 = vld [vmem:[#allocation9 + $0xa0] sm:$0xff]
    %v412 = vld [vmem:[#allocation9 + $0xa8] sm:$0xff]
    %v413 = vld [vmem:[#allocation9 + $0xb0] sm:$0xff]
    %v414 = vld [vmem:[#allocation9 + $0xb8] sm:$0xff]
    %v415 = vld [vmem:[#allocation9 + $0xc0] sm:$0xff]
    %v416 = vld [vmem:[#allocation9 + $0xc8] sm:$0xff]
    %v417 = vld [vmem:[#allocation9 + $0xd0] sm:$0xff]
    %v418 = vld [vmem:[#allocation9 + $0xd8] sm:$0xff]
    %v419 = vld [vmem:[#allocation9 + $0xe0] sm:$0xff]
    %v420 = vld [vmem:[#allocation9 + $0xe8] sm:$0xff]
    %v421 = vld [vmem:[#allocation9 + $0xf0] sm:$0xff]
    %v422 = vld [vmem:[#allocation9 + $0xf8] sm:$0xff]
    %v423 = vld [vmem:[#allocation9 + $0x100] sm:$0xff]
    %v424 = vld [vmem:[#allocation9 + $0x108] sm:$0xff]
    %v425 = vld [vmem:[#allocation9 + $0x110] sm:$0xff]
    %v426 = vld [vmem:[#allocation9 + $0x118] sm:$0xff]
    %v427 = vld [vmem:[#allocation9 + $0x120] sm:$0xff]
    %v428 = vld [vmem:[#allocation9 + $0x128] sm:$0xff]
    %v429 = vld [vmem:[#allocation9 + $0x130] sm:$0xff]
    %v430 = vld [vmem:[#allocation9 + $0x138] sm:$0xff]
    %v431 = vld [vmem:[#allocation9 + $0x140] sm:$0xff]
    %v432 = vld [vmem:[#allocation9 + $0x148] sm:$0xff]
    %v433 = vld [vmem:[#allocation9 + $0x150] sm:$0xff]
    %v434 = vld [vmem:[#allocation9 + $0x158] sm:$0xff]
    %v435 = vld [vmem:[#allocation9 + $0x160] sm:$0xff]
    %v436 = vld [vmem:[#allocation9 + $0x168] sm:$0xff]
    %v437 = vld [vmem:[#allocation9 + $0x170] sm:$0xff]
    %v438 = vld [vmem:[#allocation9 + $0x178] sm:$0xff]
    %v439 = vld [vmem:[#allocation9 + $0x180] sm:$0xff]
    %v440 = vld [vmem:[#allocation9 + $0x188] sm:$0xff]
    %v441 = vld [vmem:[#allocation9 + $0x190] sm:$0xff]
    %v442 = vld [vmem:[#allocation9 + $0x198] sm:$0xff]
    %v443 = vld [vmem:[#allocation9 + $0x1a0] sm:$0xff]
    %v444 = vld [vmem:[#allocation9 + $0x1a8] sm:$0xff]
    %v445 = vld [vmem:[#allocation9 + $0x1b0] sm:$0xff]
    %v446 = vld [vmem:[#allocation9 + $0x1b8] sm:$0xff]
    %v447 = vld [vmem:[#allocation9 + $0x1c0] sm:$0xff]
    %v448 = vld [vmem:[#allocation9 + $0x1c8] sm:$0xff]
    %v449 = vld [vmem:[#allocation9 + $0x1d0] sm:$0xff]
    %v450 = vld [vmem:[#allocation9 + $0x1d8] sm:$0xff]
    %v451 = vld [vmem:[#allocation9 + $0x1e0] sm:$0xff]
    %v452 = vld [vmem:[#allocation9 + $0x1e8] sm:$0xff]
    %v453 = vld [vmem:[#allocation9 + $0x1f0] sm:$0xff]
    %v454 = vld [vmem:[#allocation9 + $0x1f8] sm:$0xff]
    %455 = vmatpush.msra.mxu0 %v451
    %456 = vmatpush.msra.mxu0 %v447
    %457 = vmatpush.msra.mxu0 %v443
    %458 = vmatpush.msra.mxu0 %v439
    %459 = vmatpush.msra.mxu0 %v435
    %460 = vmatpush.msra.mxu0 %v431
    %461 = vmatpush.msra.mxu0 %v427
    %462 = vmatpush.msra.mxu0 %v423
    %463 = vmatpush.msra.mxu0 %v419
    %464 = vmatpush.msra.mxu0 %v415
    %465 = vmatpush.msra.mxu0 %v411
    %466 = vmatpush.msra.mxu0 %v407
    %467 = vmatpush.msra.mxu0 %v403
    %468 = vmatpush.msra.mxu0 %v399
    %469 = vmatpush.msra.mxu0 %v395
    %470 = vmatpush.msra.mxu0 %v391
    %471 = vmatmul.f32.gmra.mxu0 0.0
    %v472 = vpop.f32.mrf.mxu0
    %v473 = vadd.f32 0.0, %v472
    %474 = vdwg.mxu0
    %475 = vmatpush.msra.mxu0 %v452
    %476 = vmatpush.msra.mxu0 %v448
    %477 = vmatpush.msra.mxu0 %v444
    %478 = vmatpush.msra.mxu0 %v440
    %479 = vmatpush.msra.mxu0 %v436
    %480 = vmatpush.msra.mxu0 %v432
    %481 = vmatpush.msra.mxu0 %v428
    %482 = vmatpush.msra.mxu0 %v424
    %483 = vmatpush.msra.mxu0 %v420
    %484 = vmatpush.msra.mxu0 %v416
    %485 = vmatpush.msra.mxu0 %v412
    %486 = vmatpush.msra.mxu0 %v408
    %487 = vmatpush.msra.mxu0 %v404
    %488 = vmatpush.msra.mxu0 %v400
    %489 = vmatpush.msra.mxu0 %v396
    %490 = vmatpush.msra.mxu0 %v392
    %491 = vmatmul.f32.gmra.mxu0 0.0
    %v492 = vpop.f32.mrf.mxu0
    %v493 = vadd.f32 0.0, %v492
    %494 = vdwg.mxu0
    %495 = vmatpush.msra.mxu0 %v453
    %496 = vmatpush.msra.mxu0 %v449
    %497 = vmatpush.msra.mxu0 %v445
    %498 = vmatpush.msra.mxu0 %v441
    %499 = vmatpush.msra.mxu0 %v437
    %500 = vmatpush.msra.mxu0 %v433
    %501 = vmatpush.msra.mxu0 %v429
    %502 = vmatpush.msra.mxu0 %v425
    %503 = vmatpush.msra.mxu0 %v421
    %504 = vmatpush.msra.mxu0 %v417
    %505 = vmatpush.msra.mxu0 %v413
    %506 = vmatpush.msra.mxu0 %v409
    %507 = vmatpush.msra.mxu0 %v405
    %508 = vmatpush.msra.mxu0 %v401
    %509 = vmatpush.msra.mxu0 %v397
    %510 = vmatpush.msra.mxu0 %v393
    %511 = vmatmul.f32.gmra.mxu0 0.0
    %v512 = vpop.f32.mrf.mxu0
    %v513 = vadd.f32 0.0, %v512
    %514 = vdwg.mxu0
    %515 = vmatpush.msra.mxu0 %v454
    %516 = vmatpush.msra.mxu0 %v450
    %517 = vmatpush.msra.mxu0 %v446
    %518 = vmatpush.msra.mxu0 %v442
    %519 = vmatpush.msra.mxu0 %v438
    %520 = vmatpush.msra.mxu0 %v434
    %521 = vmatpush.msra.mxu0 %v430
    %522 = vmatpush.msra.mxu0 %v426
    %523 = vmatpush.msra.mxu0 %v422
    %524 = vmatpush.msra.mxu0 %v418
    %525 = vmatpush.msra.mxu0 %v414
    %526 = vmatpush.msra.mxu0 %v410
    %527 = vmatpush.msra.mxu0 %v406
    %528 = vmatpush.msra.mxu0 %v402
    %529 = vmatpush.msra.mxu0 %v398
    %530 = vmatpush.msra.mxu0 %v394
    %531 = vmatmul.f32.gmra.mxu0 0.0
    %v532 = vpop.f32.mrf.mxu0
    %v533 = vadd.f32 0.0, %v532
    %534 = vdwg.mxu0
    %v535 = vadd.f32 %v387, %v473
    %v536 = vadd.f32 %v388, %v493
    %v537 = vadd.f32 %v389, %v513
    %v538 = vadd.f32 %v390, %v533
    %v539 = vxor.u32 %v535, 2147483648
    %v540 = vmul.f32 %v539, 1.442695
    %v541 = vpow.pop %v540
    %v542 = vadd.f32 %v541, 1.0
    %v543 = vrcp.pop %v542
    %v544 = vmul.f32 %v542, %v543
    %v545 = vsub.f32 1.0, %v544
    %v546 = vmul.f32 %v543, %v545
    %v547 = vadd.f32 %v543, %v546
    %vm548 = vweird.f32 %v542
    %vm549 = vweird.f32 %v543
    %vm550 = vmor %vm548, %vm549
    %v551 = vsel %vm550, %v543, %v547
    %v552 = vand.u32 2147483647, %v542
    %vm553 = vcmp.eq.f32.partialorder %v552, 8.507059e+37
    %v554 = vand.u32 %v542, 2147483648
    %v555 = vor.u32 1.1754944e-38, %v554
    %v556 = vsel %vm553, %v555, %v551
    %v557 = vmul.f32 1.0, %v556
    %v558 = vxor.u32 %v536, 2147483648
    %v559 = vmul.f32 %v558, 1.442695
    %v560 = vpow.pop %v559
    %v561 = vadd.f32 %v560, 1.0
    %v562 = vrcp.pop %v561
    %v563 = vmul.f32 %v561, %v562
    %v564 = vsub.f32 1.0, %v563
    %v565 = vmul.f32 %v562, %v564
    %v566 = vadd.f32 %v562, %v565
    %vm567 = vweird.f32 %v561
    %vm568 = vweird.f32 %v562
    %vm569 = vmor %vm567, %vm568
    %v570 = vsel %vm569, %v562, %v566
    %v571 = vand.u32 2147483647, %v561
    %vm572 = vcmp.eq.f32.partialorder %v571, 8.507059e+37
    %v573 = vand.u32 %v561, 2147483648
    %v574 = vor.u32 1.1754944e-38, %v573
    %v575 = vsel %vm572, %v574, %v570
    %v576 = vmul.f32 1.0, %v575
    %v577 = vtanh.pop %v537
    %v578 = vxor.u32 %v538, 2147483648
    %v579 = vmul.f32 %v578, 1.442695
    %v580 = vpow.pop %v579
    %v581 = vadd.f32 %v580, 1.0
    %v582 = vrcp.pop %v581
    %v583 = vmul.f32 %v581, %v582
    %v584 = vsub.f32 1.0, %v583
    %v585 = vmul.f32 %v582, %v584
    %v586 = vadd.f32 %v582, %v585
    %vm587 = vweird.f32 %v581
    %vm588 = vweird.f32 %v582
    %vm589 = vmor %vm587, %vm588
    %v590 = vsel %vm589, %v582, %v586
    %v591 = vand.u32 2147483647, %v581
    %vm592 = vcmp.eq.f32.partialorder %v591, 8.507059e+37
    %v593 = vand.u32 %v581, 2147483648
    %v594 = vor.u32 1.1754944e-38, %v593
    %v595 = vsel %vm592, %v594, %v590
    %v596 = vmul.f32 1.0, %v595
    %v597 = vmul.f32 %v576, 0.0
    %v598 = vmul.f32 %v557, %v577
    %v599 = vadd.f32 %v597, %v598
    %v600 = vtanh.pop %v599
    %v601 = vmul.f32 %v596, %v600
    %602 = vst [vmem:[#allocation3] sm:$0xff] %v601
    %s603 = scalar_lea.vmem [#allocation2], 32
    %v604 = vld [vmem:[%s603] sm:$0xff]
    %v605 = vld [vmem:[%s603 + $0x8] sm:$0xff]
    %v606 = vld [vmem:[%s603 + $0x10] sm:$0xff]
    %v607 = vld [vmem:[%s603 + $0x18] sm:$0xff]
    %v608 = vld [vmem:[#allocation9] sm:$0xff]
    %v609 = vld [vmem:[#allocation9 + $0x8] sm:$0xff]
    %v610 = vld [vmem:[#allocation9 + $0x10] sm:$0xff]
    %v611 = vld [vmem:[#allocation9 + $0x18] sm:$0xff]
    %v612 = vld [vmem:[#allocation9 + $0x20] sm:$0xff]
    %v613 = vld [vmem:[#allocation9 + $0x28] sm:$0xff]
    %v614 = vld [vmem:[#allocation9 + $0x30] sm:$0xff]
    %v615 = vld [vmem:[#allocation9 + $0x38] sm:$0xff]
    %v616 = vld [vmem:[#allocation9 + $0x40] sm:$0xff]
    %v617 = vld [vmem:[#allocation9 + $0x48] sm:$0xff]
    %v618 = vld [vmem:[#allocation9 + $0x50] sm:$0xff]
    %v619 = vld [vmem:[#allocation9 + $0x58] sm:$0xff]
    %v620 = vld [vmem:[#allocation9 + $0x60] sm:$0xff]
    %v621 = vld [vmem:[#allocation9 + $0x68] sm:$0xff]
    %v622 = vld [vmem:[#allocation9 + $0x70] sm:$0xff]
    %v623 = vld [vmem:[#allocation9 + $0x78] sm:$0xff]
    %v624 = vld [vmem:[#allocation9 + $0x80] sm:$0xff]
    %v625 = vld [vmem:[#allocation9 + $0x88] sm:$0xff]
    %v626 = vld [vmem:[#allocation9 + $0x90] sm:$0xff]
    %v627 = vld [vmem:[#allocation9 + $0x98] sm:$0xff]
    %v628 = vld [vmem:[#allocation9 + $0xa0] sm:$0xff]
    %v629 = vld [vmem:[#allocation9 + $0xa8] sm:$0xff]
    %v630 = vld [vmem:[#allocation9 + $0xb0] sm:$0xff]
    %v631 = vld [vmem:[#allocation9 + $0xb8] sm:$0xff]
    %v632 = vld [vmem:[#allocation9 + $0xc0] sm:$0xff]
    %v633 = vld [vmem:[#allocation9 + $0xc8] sm:$0xff]
    %v634 = vld [vmem:[#allocation9 + $0xd0] sm:$0xff]
    %v635 = vld [vmem:[#allocation9 + $0xd8] sm:$0xff]
    %v636 = vld [vmem:[#allocation9 + $0xe0] sm:$0xff]
    %v637 = vld [vmem:[#allocation9 + $0xe8] sm:$0xff]
    %v638 = vld [vmem:[#allocation9 + $0xf0] sm:$0xff]
    %v639 = vld [vmem:[#allocation9 + $0xf8] sm:$0xff]
    %v640 = vld [vmem:[#allocation9 + $0x100] sm:$0xff]
    %v641 = vld [vmem:[#allocation9 + $0x108] sm:$0xff]
    %v642 = vld [vmem:[#allocation9 + $0x110] sm:$0xff]
    %v643 = vld [vmem:[#allocation9 + $0x118] sm:$0xff]
    %v644 = vld [vmem:[#allocation9 + $0x120] sm:$0xff]
    %v645 = vld [vmem:[#allocation9 + $0x128] sm:$0xff]
    %v646 = vld [vmem:[#allocation9 + $0x130] sm:$0xff]
    %v647 = vld [vmem:[#allocation9 + $0x138] sm:$0xff]
    %v648 = vld [vmem:[#allocation9 + $0x140] sm:$0xff]
    %v649 = vld [vmem:[#allocation9 + $0x148] sm:$0xff]
    %v650 = vld [vmem:[#allocation9 + $0x150] sm:$0xff]
    %v651 = vld [vmem:[#allocation9 + $0x158] sm:$0xff]
    %v652 = vld [vmem:[#allocation9 + $0x160] sm:$0xff]
    %v653 = vld [vmem:[#allocation9 + $0x168] sm:$0xff]
    %v654 = vld [vmem:[#allocation9 + $0x170] sm:$0xff]
    %v655 = vld [vmem:[#allocation9 + $0x178] sm:$0xff]
    %v656 = vld [vmem:[#allocation9 + $0x180] sm:$0xff]
    %v657 = vld [vmem:[#allocation9 + $0x188] sm:$0xff]
    %v658 = vld [vmem:[#allocation9 + $0x190] sm:$0xff]
    %v659 = vld [vmem:[#allocation9 + $0x198] sm:$0xff]
    %v660 = vld [vmem:[#allocation9 + $0x1a0] sm:$0xff]
    %v661 = vld [vmem:[#allocation9 + $0x1a8] sm:$0xff]
    %v662 = vld [vmem:[#allocation9 + $0x1b0] sm:$0xff]
    %v663 = vld [vmem:[#allocation9 + $0x1b8] sm:$0xff]
    %v664 = vld [vmem:[#allocation9 + $0x1c0] sm:$0xff]
    %v665 = vld [vmem:[#allocation9 + $0x1c8] sm:$0xff]
    %v666 = vld [vmem:[#allocation9 + $0x1d0] sm:$0xff]
    %v667 = vld [vmem:[#allocation9 + $0x1d8] sm:$0xff]
    %v668 = vld [vmem:[#allocation9 + $0x1e0] sm:$0xff]
    %v669 = vld [vmem:[#allocation9 + $0x1e8] sm:$0xff]
    %v670 = vld [vmem:[#allocation9 + $0x1f0] sm:$0xff]
    %v671 = vld [vmem:[#allocation9 + $0x1f8] sm:$0xff]
    %672 = vmatpush.msra.mxu0 %v668
    %673 = vmatpush.msra.mxu0 %v664
    %674 = vmatpush.msra.mxu0 %v660
    %675 = vmatpush.msra.mxu0 %v656
    %676 = vmatpush.msra.mxu0 %v652
    %677 = vmatpush.msra.mxu0 %v648
    %678 = vmatpush.msra.mxu0 %v644
    %679 = vmatpush.msra.mxu0 %v640
    %680 = vmatpush.msra.mxu0 %v636
    %681 = vmatpush.msra.mxu0 %v632
    %682 = vmatpush.msra.mxu0 %v628
    %683 = vmatpush.msra.mxu0 %v624
    %684 = vmatpush.msra.mxu0 %v620
    %685 = vmatpush.msra.mxu0 %v616
    %686 = vmatpush.msra.mxu0 %v612
    %687 = vmatpush.msra.mxu0 %v608
    %688 = vmatmul.f32.gmra.mxu0 %v601
    %v689 = vpop.f32.mrf.mxu0
    %v690 = vadd.f32 0.0, %v689
    %691 = vdwg.mxu0
    %692 = vmatpush.msra.mxu0 %v669
    %693 = vmatpush.msra.mxu0 %v665
    %694 = vmatpush.msra.mxu0 %v661
    %695 = vmatpush.msra.mxu0 %v657
    %696 = vmatpush.msra.mxu0 %v653
    %697 = vmatpush.msra.mxu0 %v649
    %698 = vmatpush.msra.mxu0 %v645
    %699 = vmatpush.msra.mxu0 %v641
    %700 = vmatpush.msra.mxu0 %v637
    %701 = vmatpush.msra.mxu0 %v633
    %702 = vmatpush.msra.mxu0 %v629
    %703 = vmatpush.msra.mxu0 %v625
    %704 = vmatpush.msra.mxu0 %v621
    %705 = vmatpush.msra.mxu0 %v617
    %706 = vmatpush.msra.mxu0 %v613
    %707 = vmatpush.msra.mxu0 %v609
    %708 = vmatmul.f32.gmra.mxu0 %v601
    %v709 = vpop.f32.mrf.mxu0
    %v710 = vadd.f32 0.0, %v709
    %711 = vdwg.mxu0
    %712 = vmatpush.msra.mxu0 %v670
    %713 = vmatpush.msra.mxu0 %v666
    %714 = vmatpush.msra.mxu0 %v662
    %715 = vmatpush.msra.mxu0 %v658
    %716 = vmatpush.msra.mxu0 %v654
    %717 = vmatpush.msra.mxu0 %v650
    %718 = vmatpush.msra.mxu0 %v646
    %719 = vmatpush.msra.mxu0 %v642
    %720 = vmatpush.msra.mxu0 %v638
    %721 = vmatpush.msra.mxu0 %v634
    %722 = vmatpush.msra.mxu0 %v630
    %723 = vmatpush.msra.mxu0 %v626
    %724 = vmatpush.msra.mxu0 %v622
    %725 = vmatpush.msra.mxu0 %v618
    %726 = vmatpush.msra.mxu0 %v614
    %727 = vmatpush.msra.mxu0 %v610
    %728 = vmatmul.f32.gmra.mxu0 %v601
    %v729 = vpop.f32.mrf.mxu0
    %v730 = vadd.f32 0.0, %v729
    %731 = vdwg.mxu0
    %732 = vmatpush.msra.mxu0 %v671
    %733 = vmatpush.msra.mxu0 %v667
    %734 = vmatpush.msra.mxu0 %v663
    %735 = vmatpush.msra.mxu0 %v659
    %736 = vmatpush.msra.mxu0 %v655
    %737 = vmatpush.msra.mxu0 %v651
    %738 = vmatpush.msra.mxu0 %v647
    %739 = vmatpush.msra.mxu0 %v643
    %740 = vmatpush.msra.mxu0 %v639
    %741 = vmatpush.msra.mxu0 %v635
    %742 = vmatpush.msra.mxu0 %v631
    %743 = vmatpush.msra.mxu0 %v627
    %744 = vmatpush.msra.mxu0 %v623
    %745 = vmatpush.msra.mxu0 %v619
    %746 = vmatpush.msra.mxu0 %v615
    %747 = vmatpush.msra.mxu0 %v611
    %748 = vmatmul.f32.gmra.mxu0 %v601
    %v749 = vpop.f32.mrf.mxu0
    %v750 = vadd.f32 0.0, %v749
    %751 = vdwg.mxu0
    %v752 = vadd.f32 %v604, %v690
    %v753 = vadd.f32 %v605, %v710
    %v754 = vadd.f32 %v606, %v730
    %v755 = vadd.f32 %v607, %v750
    %v756 = vxor.u32 %v752, 2147483648
    %v757 = vmul.f32 %v756, 1.442695
    %v758 = vpow.pop %v757
    %v759 = vadd.f32 %v758, 1.0
    %v760 = vrcp.pop %v759
    %v761 = vmul.f32 %v759, %v760
    %v762 = vsub.f32 1.0, %v761
    %v763 = vmul.f32 %v760, %v762
    %v764 = vadd.f32 %v760, %v763
    %vm765 = vweird.f32 %v759
    %vm766 = vweird.f32 %v760
    %vm767 = vmor %vm765, %vm766
    %v768 = vsel %vm767, %v760, %v764
    %v769 = vand.u32 2147483647, %v759
    %vm770 = vcmp.eq.f32.partialorder %v769, 8.507059e+37
    %v771 = vand.u32 %v759, 2147483648
    %v772 = vor.u32 1.1754944e-38, %v771
    %v773 = vsel %vm770, %v772, %v768
    %v774 = vmul.f32 1.0, %v773
    %v775 = vxor.u32 %v753, 2147483648
    %v776 = vmul.f32 %v775, 1.442695
    %v777 = vpow.pop %v776
    %v778 = vadd.f32 %v777, 1.0
    %v779 = vrcp.pop %v778
    %v780 = vmul.f32 %v778, %v779
    %v781 = vsub.f32 1.0, %v780
    %v782 = vmul.f32 %v779, %v781
    %v783 = vadd.f32 %v779, %v782
    %vm784 = vweird.f32 %v778
    %vm785 = vweird.f32 %v779
    %vm786 = vmor %vm784, %vm785
    %v787 = vsel %vm786, %v779, %v783
    %v788 = vand.u32 2147483647, %v778
    %vm789 = vcmp.eq.f32.partialorder %v788, 8.507059e+37
    %v790 = vand.u32 %v778, 2147483648
    %v791 = vor.u32 1.1754944e-38, %v790
    %v792 = vsel %vm789, %v791, %v787
    %v793 = vmul.f32 1.0, %v792
    %v794 = vtanh.pop %v754
    %v795 = vxor.u32 %v755, 2147483648
    %v796 = vmul.f32 %v795, 1.442695
    %v797 = vpow.pop %v796
    %v798 = vadd.f32 %v797, 1.0
    %v799 = vrcp.pop %v798
    %v800 = vmul.f32 %v798, %v799
    %v801 = vsub.f32 1.0, %v800
    %v802 = vmul.f32 %v799, %v801
    %v803 = vadd.f32 %v799, %v802
    %vm804 = vweird.f32 %v798
    %vm805 = vweird.f32 %v799
    %vm806 = vmor %vm804, %vm805
    %v807 = vsel %vm806, %v799, %v803
    %v808 = vand.u32 2147483647, %v798
    %vm809 = vcmp.eq.f32.partialorder %v808, 8.507059e+37
    %v810 = vand.u32 %v798, 2147483648
    %v811 = vor.u32 1.1754944e-38, %v810
    %v812 = vsel %vm809, %v811, %v807
    %v813 = vmul.f32 1.0, %v812
    %v814 = vmul.f32 %v793, %v599
    %v815 = vmul.f32 %v774, %v794
    %v816 = vadd.f32 %v814, %v815
    %v817 = vtanh.pop %v816
    %v818 = vmul.f32 %v813, %v817
    %s819 = scalar_lea.vmem [#allocation3], 8
    %820 = vst [vmem:[%s819] sm:$0xff] %v818
    %s821 = scalar_lea.vmem [#allocation2], 64
    %v822 = vld [vmem:[%s821] sm:$0xff]
    %v823 = vld [vmem:[%s821 + $0x8] sm:$0xff]
    %v824 = vld [vmem:[%s821 + $0x10] sm:$0xff]
    %v825 = vld [vmem:[%s821 + $0x18] sm:$0xff]
    %v826 = vld [vmem:[#allocation9] sm:$0xff]
    %v827 = vld [vmem:[#allocation9 + $0x8] sm:$0xff]
    %v828 = vld [vmem:[#allocation9 + $0x10] sm:$0xff]
    %v829 = vld [vmem:[#allocation9 + $0x18] sm:$0xff]
    %v830 = vld [vmem:[#allocation9 + $0x20] sm:$0xff]
    %v831 = vld [vmem:[#allocation9 + $0x28] sm:$0xff]
    %v832 = vld [vmem:[#allocation9 + $0x30] sm:$0xff]
    %v833 = vld [vmem:[#allocation9 + $0x38] sm:$0xff]
    %v834 = vld [vmem:[#allocation9 + $0x40] sm:$0xff]
    %v835 = vld [vmem:[#allocation9 + $0x48] sm:$0xff]
    %v836 = vld [vmem:[#allocation9 + $0x50] sm:$0xff]
    %v837 = vld [vmem:[#allocation9 + $0x58] sm:$0xff]
    %v838 = vld [vmem:[#allocation9 + $0x60] sm:$0xff]
    %v839 = vld [vmem:[#allocation9 + $0x68] sm:$0xff]
    %v840 = vld [vmem:[#allocation9 + $0x70] sm:$0xff]
    %v841 = vld [vmem:[#allocation9 + $0x78] sm:$0xff]
    %v842 = vld [vmem:[#allocation9 + $0x80] sm:$0xff]
    %v843 = vld [vmem:[#allocation9 + $0x88] sm:$0xff]
    %v844 = vld [vmem:[#allocation9 + $0x90] sm:$0xff]
    %v845 = vld [vmem:[#allocation9 + $0x98] sm:$0xff]
    %v846 = vld [vmem:[#allocation9 + $0xa0] sm:$0xff]
    %v847 = vld [vmem:[#allocation9 + $0xa8] sm:$0xff]
    %v848 = vld [vmem:[#allocation9 + $0xb0] sm:$0xff]
    %v849 = vld [vmem:[#allocation9 + $0xb8] sm:$0xff]
    %v850 = vld [vmem:[#allocation9 + $0xc0] sm:$0xff]
    %v851 = vld [vmem:[#allocation9 + $0xc8] sm:$0xff]
    %v852 = vld [vmem:[#allocation9 + $0xd0] sm:$0xff]
    %v853 = vld [vmem:[#allocation9 + $0xd8] sm:$0xff]
    %v854 = vld [vmem:[#allocation9 + $0xe0] sm:$0xff]
    %v855 = vld [vmem:[#allocation9 + $0xe8] sm:$0xff]
    %v856 = vld [vmem:[#allocation9 + $0xf0] sm:$0xff]
    %v857 = vld [vmem:[#allocation9 + $0xf8] sm:$0xff]
    %v858 = vld [vmem:[#allocation9 + $0x100] sm:$0xff]
    %v859 = vld [vmem:[#allocation9 + $0x108] sm:$0xff]
    %v860 = vld [vmem:[#allocation9 + $0x110] sm:$0xff]
    %v861 = vld [vmem:[#allocation9 + $0x118] sm:$0xff]
    %v862 = vld [vmem:[#allocation9 + $0x120] sm:$0xff]
    %v863 = vld [vmem:[#allocation9 + $0x128] sm:$0xff]
    %v864 = vld [vmem:[#allocation9 + $0x130] sm:$0xff]
    %v865 = vld [vmem:[#allocation9 + $0x138] sm:$0xff]
    %v866 = vld [vmem:[#allocation9 + $0x140] sm:$0xff]
    %v867 = vld [vmem:[#allocation9 + $0x148] sm:$0xff]
    %v868 = vld [vmem:[#allocation9 + $0x150] sm:$0xff]
    %v869 = vld [vmem:[#allocation9 + $0x158] sm:$0xff]
    %v870 = vld [vmem:[#allocation9 + $0x160] sm:$0xff]
    %v871 = vld [vmem:[#allocation9 + $0x168] sm:$0xff]
    %v872 = vld [vmem:[#allocation9 + $0x170] sm:$0xff]
    %v873 = vld [vmem:[#allocation9 + $0x178] sm:$0xff]
    %v874 = vld [vmem:[#allocation9 + $0x180] sm:$0xff]
    %v875 = vld [vmem:[#allocation9 + $0x188] sm:$0xff]
    %v876 = vld [vmem:[#allocation9 + $0x190] sm:$0xff]
    %v877 = vld [vmem:[#allocation9 + $0x198] sm:$0xff]
    %v878 = vld [vmem:[#allocation9 + $0x1a0] sm:$0xff]
    %v879 = vld [vmem:[#allocation9 + $0x1a8] sm:$0xff]
    %v880 = vld [vmem:[#allocation9 + $0x1b0] sm:$0xff]
    %v881 = vld [vmem:[#allocation9 + $0x1b8] sm:$0xff]
    %v882 = vld [vmem:[#allocation9 + $0x1c0] sm:$0xff]
    %v883 = vld [vmem:[#allocation9 + $0x1c8] sm:$0xff]
    %v884 = vld [vmem:[#allocation9 + $0x1d0] sm:$0xff]
    %v885 = vld [vmem:[#allocation9 + $0x1d8] sm:$0xff]
    %v886 = vld [vmem:[#allocation9 + $0x1e0] sm:$0xff]
    %v887 = vld [vmem:[#allocation9 + $0x1e8] sm:$0xff]
    %v888 = vld [vmem:[#allocation9 + $0x1f0] sm:$0xff]
    %v889 = vld [vmem:[#allocation9 + $0x1f8] sm:$0xff]
    %890 = vmatpush.msra.mxu0 %v886
    %891 = vmatpush.msra.mxu0 %v882
    %892 = vmatpush.msra.mxu0 %v878
    %893 = vmatpush.msra.mxu0 %v874
    %894 = vmatpush.msra.mxu0 %v870
    %895 = vmatpush.msra.mxu0 %v866
    %896 = vmatpush.msra.mxu0 %v862
    %897 = vmatpush.msra.mxu0 %v858
    %898 = vmatpush.msra.mxu0 %v854
    %899 = vmatpush.msra.mxu0 %v850
    %900 = vmatpush.msra.mxu0 %v846
    %901 = vmatpush.msra.mxu0 %v842
    %902 = vmatpush.msra.mxu0 %v838
    %903 = vmatpush.msra.mxu0 %v834
    %904 = vmatpush.msra.mxu0 %v830
    %905 = vmatpush.msra.mxu0 %v826
    %906 = vmatmul.f32.gmra.mxu0 %v818
    %v907 = vpop.f32.mrf.mxu0
    %v908 = vadd.f32 0.0, %v907
    %909 = vdwg.mxu0
    %910 = vmatpush.msra.mxu0 %v887
    %911 = vmatpush.msra.mxu0 %v883
    %912 = vmatpush.msra.mxu0 %v879
    %913 = vmatpush.msra.mxu0 %v875
    %914 = vmatpush.msra.mxu0 %v871
    %915 = vmatpush.msra.mxu0 %v867
    %916 = vmatpush.msra.mxu0 %v863
    %917 = vmatpush.msra.mxu0 %v859
    %918 = vmatpush.msra.mxu0 %v855
    %919 = vmatpush.msra.mxu0 %v851
    %920 = vmatpush.msra.mxu0 %v847
    %921 = vmatpush.msra.mxu0 %v843
    %922 = vmatpush.msra.mxu0 %v839
    %923 = vmatpush.msra.mxu0 %v835
    %924 = vmatpush.msra.mxu0 %v831
    %925 = vmatpush.msra.mxu0 %v827
    %926 = vmatmul.f32.gmra.mxu0 %v818
    %v927 = vpop.f32.mrf.mxu0
    %v928 = vadd.f32 0.0, %v927
    %929 = vdwg.mxu0
    %930 = vmatpush.msra.mxu0 %v888
    %931 = vmatpush.msra.mxu0 %v884
    %932 = vmatpush.msra.mxu0 %v880
    %933 = vmatpush.msra.mxu0 %v876
    %934 = vmatpush.msra.mxu0 %v872
    %935 = vmatpush.msra.mxu0 %v868
    %936 = vmatpush.msra.mxu0 %v864
    %937 = vmatpush.msra.mxu0 %v860
    %938 = vmatpush.msra.mxu0 %v856
    %939 = vmatpush.msra.mxu0 %v852
    %940 = vmatpush.msra.mxu0 %v848
    %941 = vmatpush.msra.mxu0 %v844
    %942 = vmatpush.msra.mxu0 %v840
    %943 = vmatpush.msra.mxu0 %v836
    %944 = vmatpush.msra.mxu0 %v832
    %945 = vmatpush.msra.mxu0 %v828
    %946 = vmatmul.f32.gmra.mxu0 %v818
    %v947 = vpop.f32.mrf.mxu0
    %v948 = vadd.f32 0.0, %v947
    %949 = vdwg.mxu0
    %950 = vmatpush.msra.mxu0 %v889
    %951 = vmatpush.msra.mxu0 %v885
    %952 = vmatpush.msra.mxu0 %v881
    %953 = vmatpush.msra.mxu0 %v877
    %954 = vmatpush.msra.mxu0 %v873
    %955 = vmatpush.msra.mxu0 %v869
    %956 = vmatpush.msra.mxu0 %v865
    %957 = vmatpush.msra.mxu0 %v861
    %958 = vmatpush.msra.mxu0 %v857
    %959 = vmatpush.msra.mxu0 %v853
    %960 = vmatpush.msra.mxu0 %v849
    %961 = vmatpush.msra.mxu0 %v845
    %962 = vmatpush.msra.mxu0 %v841
    %963 = vmatpush.msra.mxu0 %v837
    %964 = vmatpush.msra.mxu0 %v833
    %965 = vmatpush.msra.mxu0 %v829
    %966 = vmatmul.f32.gmra.mxu0 %v818
    %v967 = vpop.f32.mrf.mxu0
    %v968 = vadd.f32 0.0, %v967
    %969 = vdwg.mxu0
    %v970 = vadd.f32 %v822, %v908
    %v971 = vadd.f32 %v823, %v928
    %v972 = vadd.f32 %v824, %v948
    %v973 = vadd.f32 %v825, %v968
    %v974 = vxor.u32 %v970, 2147483648
    %v975 = vmul.f32 %v974, 1.442695
    %v976 = vpow.pop %v975
    %v977 = vadd.f32 %v976, 1.0
    %v978 = vrcp.pop %v977
    %v979 = vmul.f32 %v977, %v978
    %v980 = vsub.f32 1.0, %v979
    %v981 = vmul.f32 %v978, %v980
    %v982 = vadd.f32 %v978, %v981
    %vm983 = vweird.f32 %v977
    %vm984 = vweird.f32 %v978
    %vm985 = vmor %vm983, %vm984
    %v986 = vsel %vm985, %v978, %v982
    %v987 = vand.u32 2147483647, %v977
    %vm988 = vcmp.eq.f32.partialorder %v987, 8.507059e+37
    %v989 = vand.u32 %v977, 2147483648
    %v990 = vor.u32 1.1754944e-38, %v989
    %v991 = vsel %vm988, %v990, %v986
    %v992 = vmul.f32 1.0, %v991
    %v993 = vxor.u32 %v971, 2147483648
    %v994 = vmul.f32 %v993, 1.442695
    %v995 = vpow.pop %v994
    %v996 = vadd.f32 %v995, 1.0
    %v997 = vrcp.pop %v996
    %v998 = vmul.f32 %v996, %v997
    %v999 = vsub.f32 1.0, %v998
    %v1000 = vmul.f32 %v997, %v999
    %v1001 = vadd.f32 %v997, %v1000
    %vm1002 = vweird.f32 %v996
    %vm1003 = vweird.f32 %v997
    %vm1004 = vmor %vm1002, %vm1003
    %v1005 = vsel %vm1004, %v997, %v1001
    %v1006 = vand.u32 2147483647, %v996
    %vm1007 = vcmp.eq.f32.partialorder %v1006, 8.507059e+37
    %v1008 = vand.u32 %v996, 2147483648
    %v1009 = vor.u32 1.1754944e-38, %v1008
    %v1010 = vsel %vm1007, %v1009, %v1005
    %v1011 = vmul.f32 1.0, %v1010
    %v1012 = vtanh.pop %v972
    %v1013 = vxor.u32 %v973, 2147483648
    %v1014 = vmul.f32 %v1013, 1.442695
    %v1015 = vpow.pop %v1014
    %v1016 = vadd.f32 %v1015, 1.0
    %v1017 = vrcp.pop %v1016
    %v1018 = vmul.f32 %v1016, %v1017
    %v1019 = vsub.f32 1.0, %v1018
    %v1020 = vmul.f32 %v1017, %v1019
    %v1021 = vadd.f32 %v1017, %v1020
    %vm1022 = vweird.f32 %v1016
    %vm1023 = vweird.f32 %v1017
    %vm1024 = vmor %vm1022, %vm1023
    %v1025 = vsel %vm1024, %v1017, %v1021
    %v1026 = vand.u32 2147483647, %v1016
    %vm1027 = vcmp.eq.f32.partialorder %v1026, 8.507059e+37
    %v1028 = vand.u32 %v1016, 2147483648
    %v1029 = vor.u32 1.1754944e-38, %v1028
    %v1030 = vsel %vm1027, %v1029, %v1025
    %v1031 = vmul.f32 1.0, %v1030
    %v1032 = vmul.f32 %v1011, %v816
    %v1033 = vmul.f32 %v992, %v1012
    %v1034 = vadd.f32 %v1032, %v1033
    %v1035 = vtanh.pop %v1034
    %v1036 = vmul.f32 %v1031, %v1035
    %s1037 = scalar_lea.vmem [#allocation3], 16
    %1038 = vst [vmem:[%s1037] sm:$0xff] %v1036
    %s1039 = scalar_lea.vmem [#allocation2], 96
    %v1040 = vld [vmem:[%s1039] sm:$0xff]
    %v1041 = vld [vmem:[%s1039 + $0x8] sm:$0xff]
    %v1042 = vld [vmem:[%s1039 + $0x10] sm:$0xff]
    %v1043 = vld [vmem:[%s1039 + $0x18] sm:$0xff]
    %v1044 = vld [vmem:[#allocation9] sm:$0xff]
    %v1045 = vld [vmem:[#allocation9 + $0x8] sm:$0xff]
    %v1046 = vld [vmem:[#allocation9 + $0x10] sm:$0xff]
    %v1047 = vld [vmem:[#allocation9 + $0x18] sm:$0xff]
    %v1048 = vld [vmem:[#allocation9 + $0x20] sm:$0xff]
    %v1049 = vld [vmem:[#allocation9 + $0x28] sm:$0xff]
    %v1050 = vld [vmem:[#allocation9 + $0x30] sm:$0xff]
    %v1051 = vld [vmem:[#allocation9 + $0x38] sm:$0xff]
    %v1052 = vld [vmem:[#allocation9 + $0x40] sm:$0xff]
    %v1053 = vld [vmem:[#allocation9 + $0x48] sm:$0xff]
    %v1054 = vld [vmem:[#allocation9 + $0x50] sm:$0xff]
    %v1055 = vld [vmem:[#allocation9 + $0x58] sm:$0xff]
    %v1056 = vld [vmem:[#allocation9 + $0x60] sm:$0xff]
    %v1057 = vld [vmem:[#allocation9 + $0x68] sm:$0xff]
    %v1058 = vld [vmem:[#allocation9 + $0x70] sm:$0xff]
    %v1059 = vld [vmem:[#allocation9 + $0x78] sm:$0xff]
    %v1060 = vld [vmem:[#allocation9 + $0x80] sm:$0xff]
    %v1061 = vld [vmem:[#allocation9 + $0x88] sm:$0xff]
    %v1062 = vld [vmem:[#allocation9 + $0x90] sm:$0xff]
    %v1063 = vld [vmem:[#allocation9 + $0x98] sm:$0xff]
    %v1064 = vld [vmem:[#allocation9 + $0xa0] sm:$0xff]
    %v1065 = vld [vmem:[#allocation9 + $0xa8] sm:$0xff]
    %v1066 = vld [vmem:[#allocation9 + $0xb0] sm:$0xff]
    %v1067 = vld [vmem:[#allocation9 + $0xb8] sm:$0xff]
    %v1068 = vld [vmem:[#allocation9 + $0xc0] sm:$0xff]
    %v1069 = vld [vmem:[#allocation9 + $0xc8] sm:$0xff]
    %v1070 = vld [vmem:[#allocation9 + $0xd0] sm:$0xff]
    %v1071 = vld [vmem:[#allocation9 + $0xd8] sm:$0xff]
    %v1072 = vld [vmem:[#allocation9 + $0xe0] sm:$0xff]
    %v1073 = vld [vmem:[#allocation9 + $0xe8] sm:$0xff]
    %v1074 = vld [vmem:[#allocation9 + $0xf0] sm:$0xff]
    %v1075 = vld [vmem:[#allocation9 + $0xf8] sm:$0xff]
    %v1076 = vld [vmem:[#allocation9 + $0x100] sm:$0xff]
    %v1077 = vld [vmem:[#allocation9 + $0x108] sm:$0xff]
    %v1078 = vld [vmem:[#allocation9 + $0x110] sm:$0xff]
    %v1079 = vld [vmem:[#allocation9 + $0x118] sm:$0xff]
    %v1080 = vld [vmem:[#allocation9 + $0x120] sm:$0xff]
    %v1081 = vld [vmem:[#allocation9 + $0x128] sm:$0xff]
    %v1082 = vld [vmem:[#allocation9 + $0x130] sm:$0xff]
    %v1083 = vld [vmem:[#allocation9 + $0x138] sm:$0xff]
    %v1084 = vld [vmem:[#allocation9 + $0x140] sm:$0xff]
    %v1085 = vld [vmem:[#allocation9 + $0x148] sm:$0xff]
    %v1086 = vld [vmem:[#allocation9 + $0x150] sm:$0xff]
    %v1087 = vld [vmem:[#allocation9 + $0x158] sm:$0xff]
    %v1088 = vld [vmem:[#allocation9 + $0x160] sm:$0xff]
    %v1089 = vld [vmem:[#allocation9 + $0x168] sm:$0xff]
    %v1090 = vld [vmem:[#allocation9 + $0x170] sm:$0xff]
    %v1091 = vld [vmem:[#allocation9 + $0x178] sm:$0xff]
    %v1092 = vld [vmem:[#allocation9 + $0x180] sm:$0xff]
    %v1093 = vld [vmem:[#allocation9 + $0x188] sm:$0xff]
    %v1094 = vld [vmem:[#allocation9 + $0x190] sm:$0xff]
    %v1095 = vld [vmem:[#allocation9 + $0x198] sm:$0xff]
    %v1096 = vld [vmem:[#allocation9 + $0x1a0] sm:$0xff]
    %v1097 = vld [vmem:[#allocation9 + $0x1a8] sm:$0xff]
    %v1098 = vld [vmem:[#allocation9 + $0x1b0] sm:$0xff]
    %v1099 = vld [vmem:[#allocation9 + $0x1b8] sm:$0xff]
    %v1100 = vld [vmem:[#allocation9 + $0x1c0] sm:$0xff]
    %v1101 = vld [vmem:[#allocation9 + $0x1c8] sm:$0xff]
    %v1102 = vld [vmem:[#allocation9 + $0x1d0] sm:$0xff]
    %v1103 = vld [vmem:[#allocation9 + $0x1d8] sm:$0xff]
    %v1104 = vld [vmem:[#allocation9 + $0x1e0] sm:$0xff]
    %v1105 = vld [vmem:[#allocation9 + $0x1e8] sm:$0xff]
    %v1106 = vld [vmem:[#allocation9 + $0x1f0] sm:$0xff]
    %v1107 = vld [vmem:[#allocation9 + $0x1f8] sm:$0xff]
    %1108 = vmatpush.msra.mxu0 %v1104
    %1109 = vmatpush.msra.mxu0 %v1100
    %1110 = vmatpush.msra.mxu0 %v1096
    %1111 = vmatpush.msra.mxu0 %v1092
    %1112 = vmatpush.msra.mxu0 %v1088
    %1113 = vmatpush.msra.mxu0 %v1084
    %1114 = vmatpush.msra.mxu0 %v1080
    %1115 = vmatpush.msra.mxu0 %v1076
    %1116 = vmatpush.msra.mxu0 %v1072
    %1117 = vmatpush.msra.mxu0 %v1068
    %1118 = vmatpush.msra.mxu0 %v1064
    %1119 = vmatpush.msra.mxu0 %v1060
    %1120 = vmatpush.msra.mxu0 %v1056
    %1121 = vmatpush.msra.mxu0 %v1052
    %1122 = vmatpush.msra.mxu0 %v1048
    %1123 = vmatpush.msra.mxu0 %v1044
    %1124 = vmatmul.f32.gmra.mxu0 %v1036
    %v1125 = vpop.f32.mrf.mxu0
    %v1126 = vadd.f32 0.0, %v1125
    %1127 = vdwg.mxu0
    %1128 = vmatpush.msra.mxu0 %v1105
    %1129 = vmatpush.msra.mxu0 %v1101
    %1130 = vmatpush.msra.mxu0 %v1097
    %1131 = vmatpush.msra.mxu0 %v1093
    %1132 = vmatpush.msra.mxu0 %v1089
    %1133 = vmatpush.msra.mxu0 %v1085
    %1134 = vmatpush.msra.mxu0 %v1081
    %1135 = vmatpush.msra.mxu0 %v1077
    %1136 = vmatpush.msra.mxu0 %v1073
    %1137 = vmatpush.msra.mxu0 %v1069
    %1138 = vmatpush.msra.mxu0 %v1065
    %1139 = vmatpush.msra.mxu0 %v1061
    %1140 = vmatpush.msra.mxu0 %v1057
    %1141 = vmatpush.msra.mxu0 %v1053
    %1142 = vmatpush.msra.mxu0 %v1049
    %1143 = vmatpush.msra.mxu0 %v1045
    %1144 = vmatmul.f32.gmra.mxu0 %v1036
    %v1145 = vpop.f32.mrf.mxu0
    %v1146 = vadd.f32 0.0, %v1145
    %1147 = vdwg.mxu0
    %1148 = vmatpush.msra.mxu0 %v1106
    %1149 = vmatpush.msra.mxu0 %v1102
    %1150 = vmatpush.msra.mxu0 %v1098
    %1151 = vmatpush.msra.mxu0 %v1094
    %1152 = vmatpush.msra.mxu0 %v1090
    %1153 = vmatpush.msra.mxu0 %v1086
    %1154 = vmatpush.msra.mxu0 %v1082
    %1155 = vmatpush.msra.mxu0 %v1078
    %1156 = vmatpush.msra.mxu0 %v1074
    %1157 = vmatpush.msra.mxu0 %v1070
    %1158 = vmatpush.msra.mxu0 %v1066
    %1159 = vmatpush.msra.mxu0 %v1062
    %1160 = vmatpush.msra.mxu0 %v1058
    %1161 = vmatpush.msra.mxu0 %v1054
    %1162 = vmatpush.msra.mxu0 %v1050
    %1163 = vmatpush.msra.mxu0 %v1046
    %1164 = vmatmul.f32.gmra.mxu0 %v1036
    %v1165 = vpop.f32.mrf.mxu0
    %v1166 = vadd.f32 0.0, %v1165
    %1167 = vdwg.mxu0
    %1168 = vmatpush.msra.mxu0 %v1107
    %1169 = vmatpush.msra.mxu0 %v1103
    %1170 = vmatpush.msra.mxu0 %v1099
    %1171 = vmatpush.msra.mxu0 %v1095
    %1172 = vmatpush.msra.mxu0 %v1091
    %1173 = vmatpush.msra.mxu0 %v1087
    %1174 = vmatpush.msra.mxu0 %v1083
    %1175 = vmatpush.msra.mxu0 %v1079
    %1176 = vmatpush.msra.mxu0 %v1075
    %1177 = vmatpush.msra.mxu0 %v1071
    %1178 = vmatpush.msra.mxu0 %v1067
    %1179 = vmatpush.msra.mxu0 %v1063
    %1180 = vmatpush.msra.mxu0 %v1059
    %1181 = vmatpush.msra.mxu0 %v1055
    %1182 = vmatpush.msra.mxu0 %v1051
    %1183 = vmatpush.msra.mxu0 %v1047
    %1184 = vmatmul.f32.gmra.mxu0 %v1036
    %v1185 = vpop.f32.mrf.mxu0
    %v1186 = vadd.f32 0.0, %v1185
    %1187 = vdwg.mxu0
    %v1188 = vadd.f32 %v1040, %v1126
    %v1189 = vadd.f32 %v1041, %v1146
    %v1190 = vadd.f32 %v1042, %v1166
    %v1191 = vadd.f32 %v1043, %v1186
    %v1192 = vxor.u32 %v1188, 2147483648
    %v1193 = vmul.f32 %v1192, 1.442695
    %v1194 = vpow.pop %v1193
    %v1195 = vadd.f32 %v1194, 1.0
    %v1196 = vrcp.pop %v1195
    %v1197 = vmul.f32 %v1195, %v1196
    %v1198 = vsub.f32 1.0, %v1197
    %v1199 = vmul.f32 %v1196, %v1198
    %v1200 = vadd.f32 %v1196, %v1199
    %vm1201 = vweird.f32 %v1195
    %vm1202 = vweird.f32 %v1196
    %vm1203 = vmor %vm1201, %vm1202
    %v1204 = vsel %vm1203, %v1196, %v1200
    %v1205 = vand.u32 2147483647, %v1195
    %vm1206 = vcmp.eq.f32.partialorder %v1205, 8.507059e+37
    %v1207 = vand.u32 %v1195, 2147483648
    %v1208 = vor.u32 1.1754944e-38, %v1207
    %v1209 = vsel %vm1206, %v1208, %v1204
    %v1210 = vmul.f32 1.0, %v1209
    %v1211 = vxor.u32 %v1189, 2147483648
    %v1212 = vmul.f32 %v1211, 1.442695
    %v1213 = vpow.pop %v1212
    %v1214 = vadd.f32 %v1213, 1.0
    %v1215 = vrcp.pop %v1214
    %v1216 = vmul.f32 %v1214, %v1215
    %v1217 = vsub.f32 1.0, %v1216
    %v1218 = vmul.f32 %v1215, %v1217
    %v1219 = vadd.f32 %v1215, %v1218
    %vm1220 = vweird.f32 %v1214
    %vm1221 = vweird.f32 %v1215
    %vm1222 = vmor %vm1220, %vm1221
    %v1223 = vsel %vm1222, %v1215, %v1219
    %v1224 = vand.u32 2147483647, %v1214
    %vm1225 = vcmp.eq.f32.partialorder %v1224, 8.507059e+37
    %v1226 = vand.u32 %v1214, 2147483648
    %v1227 = vor.u32 1.1754944e-38, %v1226
    %v1228 = vsel %vm1225, %v1227, %v1223
    %v1229 = vmul.f32 1.0, %v1228
    %v1230 = vtanh.pop %v1190
    %v1231 = vxor.u32 %v1191, 2147483648
    %v1232 = vmul.f32 %v1231, 1.442695
    %v1233 = vpow.pop %v1232
    %v1234 = vadd.f32 %v1233, 1.0
    %v1235 = vrcp.pop %v1234
    %v1236 = vmul.f32 %v1234, %v1235
    %v1237 = vsub.f32 1.0, %v1236
    %v1238 = vmul.f32 %v1235, %v1237
    %v1239 = vadd.f32 %v1235, %v1238
    %vm1240 = vweird.f32 %v1234
    %vm1241 = vweird.f32 %v1235
    %vm1242 = vmor %vm1240, %vm1241
    %v1243 = vsel %vm1242, %v1235, %v1239
    %v1244 = vand.u32 2147483647, %v1234
    %vm1245 = vcmp.eq.f32.partialorder %v1244, 8.507059e+37
    %v1246 = vand.u32 %v1234, 2147483648
    %v1247 = vor.u32 1.1754944e-38, %v1246
    %v1248 = vsel %vm1245, %v1247, %v1243
    %v1249 = vmul.f32 1.0, %v1248
    %v1250 = vmul.f32 %v1229, %v1034
    %v1251 = vmul.f32 %v1210, %v1230
    %v1252 = vadd.f32 %v1250, %v1251
    %v1253 = vtanh.pop %v1252
    %v1254 = vmul.f32 %v1249, %v1253
    %s1255 = scalar_lea.vmem [#allocation3], 24
    %1256 = vst [vmem:[%s1255] sm:$0xff] %v1254
    %s1257 = scalar_lea.vmem [#allocation2], 128
    %v1258 = vld [vmem:[%s1257] sm:$0xff]
    %v1259 = vld [vmem:[%s1257 + $0x8] sm:$0xff]
    %v1260 = vld [vmem:[%s1257 + $0x10] sm:$0xff]
    %v1261 = vld [vmem:[%s1257 + $0x18] sm:$0xff]
    %v1262 = vld [vmem:[#allocation9] sm:$0xff]
    %v1263 = vld [vmem:[#allocation9 + $0x8] sm:$0xff]
    %v1264 = vld [vmem:[#allocation9 + $0x10] sm:$0xff]
    %v1265 = vld [vmem:[#allocation9 + $0x18] sm:$0xff]
    %v1266 = vld [vmem:[#allocation9 + $0x20] sm:$0xff]
    %v1267 = vld [vmem:[#allocation9 + $0x28] sm:$0xff]
    %v1268 = vld [vmem:[#allocation9 + $0x30] sm:$0xff]
    %v1269 = vld [vmem:[#allocation9 + $0x38] sm:$0xff]
    %v1270 = vld [vmem:[#allocation9 + $0x40] sm:$0xff]
    %v1271 = vld [vmem:[#allocation9 + $0x48] sm:$0xff]
    %v1272 = vld [vmem:[#allocation9 + $0x50] sm:$0xff]
    %v1273 = vld [vmem:[#allocation9 + $0x58] sm:$0xff]
    %v1274 = vld [vmem:[#allocation9 + $0x60] sm:$0xff]
    %v1275 = vld [vmem:[#allocation9 + $0x68] sm:$0xff]
    %v1276 = vld [vmem:[#allocation9 + $0x70] sm:$0xff]
    %v1277 = vld [vmem:[#allocation9 + $0x78] sm:$0xff]
    %v1278 = vld [vmem:[#allocation9 + $0x80] sm:$0xff]
    %v1279 = vld [vmem:[#allocation9 + $0x88] sm:$0xff]
    %v1280 = vld [vmem:[#allocation9 + $0x90] sm:$0xff]
    %v1281 = vld [vmem:[#allocation9 + $0x98] sm:$0xff]
    %v1282 = vld [vmem:[#allocation9 + $0xa0] sm:$0xff]
    %v1283 = vld [vmem:[#allocation9 + $0xa8] sm:$0xff]
    %v1284 = vld [vmem:[#allocation9 + $0xb0] sm:$0xff]
    %v1285 = vld [vmem:[#allocation9 + $0xb8] sm:$0xff]
    %v1286 = vld [vmem:[#allocation9 + $0xc0] sm:$0xff]
    %v1287 = vld [vmem:[#allocation9 + $0xc8] sm:$0xff]
    %v1288 = vld [vmem:[#allocation9 + $0xd0] sm:$0xff]
    %v1289 = vld [vmem:[#allocation9 + $0xd8] sm:$0xff]
    %v1290 = vld [vmem:[#allocation9 + $0xe0] sm:$0xff]
    %v1291 = vld [vmem:[#allocation9 + $0xe8] sm:$0xff]
    %v1292 = vld [vmem:[#allocation9 + $0xf0] sm:$0xff]
    %v1293 = vld [vmem:[#allocation9 + $0xf8] sm:$0xff]
    %v1294 = vld [vmem:[#allocation9 + $0x100] sm:$0xff]
    %v1295 = vld [vmem:[#allocation9 + $0x108] sm:$0xff]
    %v1296 = vld [vmem:[#allocation9 + $0x110] sm:$0xff]
    %v1297 = vld [vmem:[#allocation9 + $0x118] sm:$0xff]
    %v1298 = vld [vmem:[#allocation9 + $0x120] sm:$0xff]
    %v1299 = vld [vmem:[#allocation9 + $0x128] sm:$0xff]
    %v1300 = vld [vmem:[#allocation9 + $0x130] sm:$0xff]
    %v1301 = vld [vmem:[#allocation9 + $0x138] sm:$0xff]
    %v1302 = vld [vmem:[#allocation9 + $0x140] sm:$0xff]
    %v1303 = vld [vmem:[#allocation9 + $0x148] sm:$0xff]
    %v1304 = vld [vmem:[#allocation9 + $0x150] sm:$0xff]
    %v1305 = vld [vmem:[#allocation9 + $0x158] sm:$0xff]
    %v1306 = vld [vmem:[#allocation9 + $0x160] sm:$0xff]
    %v1307 = vld [vmem:[#allocation9 + $0x168] sm:$0xff]
    %v1308 = vld [vmem:[#allocation9 + $0x170] sm:$0xff]
    %v1309 = vld [vmem:[#allocation9 + $0x178] sm:$0xff]
    %v1310 = vld [vmem:[#allocation9 + $0x180] sm:$0xff]
    %v1311 = vld [vmem:[#allocation9 + $0x188] sm:$0xff]
    %v1312 = vld [vmem:[#allocation9 + $0x190] sm:$0xff]
    %v1313 = vld [vmem:[#allocation9 + $0x198] sm:$0xff]
    %v1314 = vld [vmem:[#allocation9 + $0x1a0] sm:$0xff]
    %v1315 = vld [vmem:[#allocation9 + $0x1a8] sm:$0xff]
    %v1316 = vld [vmem:[#allocation9 + $0x1b0] sm:$0xff]
    %v1317 = vld [vmem:[#allocation9 + $0x1b8] sm:$0xff]
    %v1318 = vld [vmem:[#allocation9 + $0x1c0] sm:$0xff]
    %v1319 = vld [vmem:[#allocation9 + $0x1c8] sm:$0xff]
    %v1320 = vld [vmem:[#allocation9 + $0x1d0] sm:$0xff]
    %v1321 = vld [vmem:[#allocation9 + $0x1d8] sm:$0xff]
    %v1322 = vld [vmem:[#allocation9 + $0x1e0] sm:$0xff]
    %v1323 = vld [vmem:[#allocation9 + $0x1e8] sm:$0xff]
    %v1324 = vld [vmem:[#allocation9 + $0x1f0] sm:$0xff]
    %v1325 = vld [vmem:[#allocation9 + $0x1f8] sm:$0xff]
    %1326 = vmatpush.msra.mxu0 %v1322
    %1327 = vmatpush.msra.mxu0 %v1318
    %1328 = vmatpush.msra.mxu0 %v1314
    %1329 = vmatpush.msra.mxu0 %v1310
    %1330 = vmatpush.msra.mxu0 %v1306
    %1331 = vmatpush.msra.mxu0 %v1302
    %1332 = vmatpush.msra.mxu0 %v1298
    %1333 = vmatpush.msra.mxu0 %v1294
    %1334 = vmatpush.msra.mxu0 %v1290
    %1335 = vmatpush.msra.mxu0 %v1286
    %1336 = vmatpush.msra.mxu0 %v1282
    %1337 = vmatpush.msra.mxu0 %v1278
    %1338 = vmatpush.msra.mxu0 %v1274
    %1339 = vmatpush.msra.mxu0 %v1270
    %1340 = vmatpush.msra.mxu0 %v1266
    %1341 = vmatpush.msra.mxu0 %v1262
    %1342 = vmatmul.f32.gmra.mxu0 %v1254
    %v1343 = vpop.f32.mrf.mxu0
    %v1344 = vadd.f32 0.0, %v1343
    %1345 = vdwg.mxu0
    %1346 = vmatpush.msra.mxu0 %v1323
    %1347 = vmatpush.msra.mxu0 %v1319
    %1348 = vmatpush.msra.mxu0 %v1315
    %1349 = vmatpush.msra.mxu0 %v1311
    %1350 = vmatpush.msra.mxu0 %v1307
    %1351 = vmatpush.msra.mxu0 %v1303
    %1352 = vmatpush.msra.mxu0 %v1299
    %1353 = vmatpush.msra.mxu0 %v1295
    %1354 = vmatpush.msra.mxu0 %v1291
    %1355 = vmatpush.msra.mxu0 %v1287
    %1356 = vmatpush.msra.mxu0 %v1283
    %1357 = vmatpush.msra.mxu0 %v1279
    %1358 = vmatpush.msra.mxu0 %v1275
    %1359 = vmatpush.msra.mxu0 %v1271
    %1360 = vmatpush.msra.mxu0 %v1267
    %1361 = vmatpush.msra.mxu0 %v1263
    %1362 = vmatmul.f32.gmra.mxu0 %v1254
    %v1363 = vpop.f32.mrf.mxu0
    %v1364 = vadd.f32 0.0, %v1363
    %1365 = vdwg.mxu0
    %1366 = vmatpush.msra.mxu0 %v1324
    %1367 = vmatpush.msra.mxu0 %v1320
    %1368 = vmatpush.msra.mxu0 %v1316
    %1369 = vmatpush.msra.mxu0 %v1312
    %1370 = vmatpush.msra.mxu0 %v1308
    %1371 = vmatpush.msra.mxu0 %v1304
    %1372 = vmatpush.msra.mxu0 %v1300
    %1373 = vmatpush.msra.mxu0 %v1296
    %1374 = vmatpush.msra.mxu0 %v1292
    %1375 = vmatpush.msra.mxu0 %v1288
    %1376 = vmatpush.msra.mxu0 %v1284
    %1377 = vmatpush.msra.mxu0 %v1280
    %1378 = vmatpush.msra.mxu0 %v1276
    %1379 = vmatpush.msra.mxu0 %v1272
    %1380 = vmatpush.msra.mxu0 %v1268
    %1381 = vmatpush.msra.mxu0 %v1264
    %1382 = vmatmul.f32.gmra.mxu0 %v1254
    %v1383 = vpop.f32.mrf.mxu0
    %v1384 = vadd.f32 0.0, %v1383
    %1385 = vdwg.mxu0
    %1386 = vmatpush.msra.mxu0 %v1325
    %1387 = vmatpush.msra.mxu0 %v1321
    %1388 = vmatpush.msra.mxu0 %v1317
    %1389 = vmatpush.msra.mxu0 %v1313
    %1390 = vmatpush.msra.mxu0 %v1309
    %1391 = vmatpush.msra.mxu0 %v1305
    %1392 = vmatpush.msra.mxu0 %v1301
    %1393 = vmatpush.msra.mxu0 %v1297
    %1394 = vmatpush.msra.mxu0 %v1293
    %1395 = vmatpush.msra.mxu0 %v1289
    %1396 = vmatpush.msra.mxu0 %v1285
    %1397 = vmatpush.msra.mxu0 %v1281
    %1398 = vmatpush.msra.mxu0 %v1277
    %1399 = vmatpush.msra.mxu0 %v1273
    %1400 = vmatpush.msra.mxu0 %v1269
    %1401 = vmatpush.msra.mxu0 %v1265
    %1402 = vmatmul.f32.gmra.mxu0 %v1254
    %v1403 = vpop.f32.mrf.mxu0
    %v1404 = vadd.f32 0.0, %v1403
    %1405 = vdwg.mxu0
    %v1406 = vadd.f32 %v1258, %v1344
    %v1407 = vadd.f32 %v1259, %v1364
    %v1408 = vadd.f32 %v1260, %v1384
    %v1409 = vadd.f32 %v1261, %v1404
    %v1410 = vxor.u32 %v1406, 2147483648
    %v1411 = vmul.f32 %v1410, 1.442695
    %v1412 = vpow.pop %v1411
    %v1413 = vadd.f32 %v1412, 1.0
    %v1414 = vrcp.pop %v1413
    %v1415 = vmul.f32 %v1413, %v1414
    %v1416 = vsub.f32 1.0, %v1415
    %v1417 = vmul.f32 %v1414, %v1416
    %v1418 = vadd.f32 %v1414, %v1417
    %vm1419 = vweird.f32 %v1413
    %vm1420 = vweird.f32 %v1414
    %vm1421 = vmor %vm1419, %vm1420
    %v1422 = vsel %vm1421, %v1414, %v1418
    %v1423 = vand.u32 2147483647, %v1413
    %vm1424 = vcmp.eq.f32.partialorder %v1423, 8.507059e+37
    %v1425 = vand.u32 %v1413, 2147483648
    %v1426 = vor.u32 1.1754944e-38, %v1425
    %v1427 = vsel %vm1424, %v1426, %v1422
    %v1428 = vmul.f32 1.0, %v1427
    %v1429 = vxor.u32 %v1407, 2147483648
    %v1430 = vmul.f32 %v1429, 1.442695
    %v1431 = vpow.pop %v1430
    %v1432 = vadd.f32 %v1431, 1.0
    %v1433 = vrcp.pop %v1432
    %v1434 = vmul.f32 %v1432, %v1433
    %v1435 = vsub.f32 1.0, %v1434
    %v1436 = vmul.f32 %v1433, %v1435
    %v1437 = vadd.f32 %v1433, %v1436
    %vm1438 = vweird.f32 %v1432
    %vm1439 = vweird.f32 %v1433
    %vm1440 = vmor %vm1438, %vm1439
    %v1441 = vsel %vm1440, %v1433, %v1437
    %v1442 = vand.u32 2147483647, %v1432
    %vm1443 = vcmp.eq.f32.partialorder %v1442, 8.507059e+37
    %v1444 = vand.u32 %v1432, 2147483648
    %v1445 = vor.u32 1.1754944e-38, %v1444
    %v1446 = vsel %vm1443, %v1445, %v1441
    %v1447 = vmul.f32 1.0, %v1446
    %v1448 = vtanh.pop %v1408
    %v1449 = vxor.u32 %v1409, 2147483648
    %v1450 = vmul.f32 %v1449, 1.442695
    %v1451 = vpow.pop %v1450
    %v1452 = vadd.f32 %v1451, 1.0
    %v1453 = vrcp.pop %v1452
    %v1454 = vmul.f32 %v1452, %v1453
    %v1455 = vsub.f32 1.0, %v1454
    %v1456 = vmul.f32 %v1453, %v1455
    %v1457 = vadd.f32 %v1453, %v1456
    %vm1458 = vweird.f32 %v1452
    %vm1459 = vweird.f32 %v1453
    %vm1460 = vmor %vm1458, %vm1459
    %v1461 = vsel %vm1460, %v1453, %v1457
    %v1462 = vand.u32 2147483647, %v1452
    %vm1463 = vcmp.eq.f32.partialorder %v1462, 8.507059e+37
    %v1464 = vand.u32 %v1452, 2147483648
    %v1465 = vor.u32 1.1754944e-38, %v1464
    %v1466 = vsel %vm1463, %v1465, %v1461
    %v1467 = vmul.f32 1.0, %v1466
    %v1468 = vmul.f32 %v1447, %v1252
    %v1469 = vmul.f32 %v1428, %v1448
    %v1470 = vadd.f32 %v1468, %v1469
    %v1471 = vtanh.pop %v1470
    %v1472 = vmul.f32 %v1467, %v1471
    %s1473 = scalar_lea.vmem [#allocation3], 32
    %1474 = vst [vmem:[%s1473] sm:$0xff] %v1472
    %s1475 = scalar_lea.vmem [#allocation2], 160
    %v1476 = vld [vmem:[%s1475] sm:$0xff]
    %v1477 = vld [vmem:[%s1475 + $0x8] sm:$0xff]
    %v1478 = vld [vmem:[%s1475 + $0x10] sm:$0xff]
    %v1479 = vld [vmem:[%s1475 + $0x18] sm:$0xff]
    %v1480 = vld [vmem:[#allocation9] sm:$0xff]
    %v1481 = vld [vmem:[#allocation9 + $0x8] sm:$0xff]
    %v1482 = vld [vmem:[#allocation9 + $0x10] sm:$0xff]
    %v1483 = vld [vmem:[#allocation9 + $0x18] sm:$0xff]
    %v1484 = vld [vmem:[#allocation9 + $0x20] sm:$0xff]
    %v1485 = vld [vmem:[#allocation9 + $0x28] sm:$0xff]
    %v1486 = vld [vmem:[#allocation9 + $0x30] sm:$0xff]
    %v1487 = vld [vmem:[#allocation9 + $0x38] sm:$0xff]
    %v1488 = vld [vmem:[#allocation9 + $0x40] sm:$0xff]
    %v1489 = vld [vmem:[#allocation9 + $0x48] sm:$0xff]
    %v1490 = vld [vmem:[#allocation9 + $0x50] sm:$0xff]
    %v1491 = vld [vmem:[#allocation9 + $0x58] sm:$0xff]
    %v1492 = vld [vmem:[#allocation9 + $0x60] sm:$0xff]
    %v1493 = vld [vmem:[#allocation9 + $0x68] sm:$0xff]
    %v1494 = vld [vmem:[#allocation9 + $0x70] sm:$0xff]
    %v1495 = vld [vmem:[#allocation9 + $0x78] sm:$0xff]
    %v1496 = vld [vmem:[#allocation9 + $0x80] sm:$0xff]
    %v1497 = vld [vmem:[#allocation9 + $0x88] sm:$0xff]
    %v1498 = vld [vmem:[#allocation9 + $0x90] sm:$0xff]
    %v1499 = vld [vmem:[#allocation9 + $0x98] sm:$0xff]
    %v1500 = vld [vmem:[#allocation9 + $0xa0] sm:$0xff]
    %v1501 = vld [vmem:[#allocation9 + $0xa8] sm:$0xff]
    %v1502 = vld [vmem:[#allocation9 + $0xb0] sm:$0xff]
    %v1503 = vld [vmem:[#allocation9 + $0xb8] sm:$0xff]
    %v1504 = vld [vmem:[#allocation9 + $0xc0] sm:$0xff]
    %v1505 = vld [vmem:[#allocation9 + $0xc8] sm:$0xff]
    %v1506 = vld [vmem:[#allocation9 + $0xd0] sm:$0xff]
    %v1507 = vld [vmem:[#allocation9 + $0xd8] sm:$0xff]
    %v1508 = vld [vmem:[#allocation9 + $0xe0] sm:$0xff]
    %v1509 = vld [vmem:[#allocation9 + $0xe8] sm:$0xff]
    %v1510 = vld [vmem:[#allocation9 + $0xf0] sm:$0xff]
    %v1511 = vld [vmem:[#allocation9 + $0xf8] sm:$0xff]
    %v1512 = vld [vmem:[#allocation9 + $0x100] sm:$0xff]
    %v1513 = vld [vmem:[#allocation9 + $0x108] sm:$0xff]
    %v1514 = vld [vmem:[#allocation9 + $0x110] sm:$0xff]
    %v1515 = vld [vmem:[#allocation9 + $0x118] sm:$0xff]
    %v1516 = vld [vmem:[#allocation9 + $0x120] sm:$0xff]
    %v1517 = vld [vmem:[#allocation9 + $0x128] sm:$0xff]
    %v1518 = vld [vmem:[#allocation9 + $0x130] sm:$0xff]
    %v1519 = vld [vmem:[#allocation9 + $0x138] sm:$0xff]
    %v1520 = vld [vmem:[#allocation9 + $0x140] sm:$0xff]
    %v1521 = vld [vmem:[#allocation9 + $0x148] sm:$0xff]
    %v1522 = vld [vmem:[#allocation9 + $0x150] sm:$0xff]
    %v1523 = vld [vmem:[#allocation9 + $0x158] sm:$0xff]
    %v1524 = vld [vmem:[#allocation9 + $0x160] sm:$0xff]
    %v1525 = vld [vmem:[#allocation9 + $0x168] sm:$0xff]
    %v1526 = vld [vmem:[#allocation9 + $0x170] sm:$0xff]
    %v1527 = vld [vmem:[#allocation9 + $0x178] sm:$0xff]
    %v1528 = vld [vmem:[#allocation9 + $0x180] sm:$0xff]
    %v1529 = vld [vmem:[#allocation9 + $0x188] sm:$0xff]
    %v1530 = vld [vmem:[#allocation9 + $0x190] sm:$0xff]
    %v1531 = vld [vmem:[#allocation9 + $0x198] sm:$0xff]
    %v1532 = vld [vmem:[#allocation9 + $0x1a0] sm:$0xff]
    %v1533 = vld [vmem:[#allocation9 + $0x1a8] sm:$0xff]
    %v1534 = vld [vmem:[#allocation9 + $0x1b0] sm:$0xff]
    %v1535 = vld [vmem:[#allocation9 + $0x1b8] sm:$0xff]
    %v1536 = vld [vmem:[#allocation9 + $0x1c0] sm:$0xff]
    %v1537 = vld [vmem:[#allocation9 + $0x1c8] sm:$0xff]
    %v1538 = vld [vmem:[#allocation9 + $0x1d0] sm:$0xff]
    %v1539 = vld [vmem:[#allocation9 + $0x1d8] sm:$0xff]
    %v1540 = vld [vmem:[#allocation9 + $0x1e0] sm:$0xff]
    %v1541 = vld [vmem:[#allocation9 + $0x1e8] sm:$0xff]
    %v1542 = vld [vmem:[#allocation9 + $0x1f0] sm:$0xff]
    %v1543 = vld [vmem:[#allocation9 + $0x1f8] sm:$0xff]
    %1544 = vmatpush.msra.mxu0 %v1540
    %1545 = vmatpush.msra.mxu0 %v1536
    %1546 = vmatpush.msra.mxu0 %v1532
    %1547 = vmatpush.msra.mxu0 %v1528
    %1548 = vmatpush.msra.mxu0 %v1524
    %1549 = vmatpush.msra.mxu0 %v1520
    %1550 = vmatpush.msra.mxu0 %v1516
    %1551 = vmatpush.msra.mxu0 %v1512
    %1552 = vmatpush.msra.mxu0 %v1508
    %1553 = vmatpush.msra.mxu0 %v1504
    %1554 = vmatpush.msra.mxu0 %v1500
    %1555 = vmatpush.msra.mxu0 %v1496
    %1556 = vmatpush.msra.mxu0 %v1492
    %1557 = vmatpush.msra.mxu0 %v1488
    %1558 = vmatpush.msra.mxu0 %v1484
    %1559 = vmatpush.msra.mxu0 %v1480
    %1560 = vmatmul.f32.gmra.mxu0 %v1472
    %v1561 = vpop.f32.mrf.mxu0
    %v1562 = vadd.f32 0.0, %v1561
    %1563 = vdwg.mxu0
    %1564 = vmatpush.msra.mxu0 %v1541
    %1565 = vmatpush.msra.mxu0 %v1537
    %1566 = vmatpush.msra.mxu0 %v1533
    %1567 = vmatpush.msra.mxu0 %v1529
    %1568 = vmatpush.msra.mxu0 %v1525
    %1569 = vmatpush.msra.mxu0 %v1521
    %1570 = vmatpush.msra.mxu0 %v1517
    %1571 = vmatpush.msra.mxu0 %v1513
    %1572 = vmatpush.msra.mxu0 %v1509
    %1573 = vmatpush.msra.mxu0 %v1505
    %1574 = vmatpush.msra.mxu0 %v1501
    %1575 = vmatpush.msra.mxu0 %v1497
    %1576 = vmatpush.msra.mxu0 %v1493
    %1577 = vmatpush.msra.mxu0 %v1489
    %1578 = vmatpush.msra.mxu0 %v1485
    %1579 = vmatpush.msra.mxu0 %v1481
    %1580 = vmatmul.f32.gmra.mxu0 %v1472
    %v1581 = vpop.f32.mrf.mxu0
    %v1582 = vadd.f32 0.0, %v1581
    %1583 = vdwg.mxu0
    %1584 = vmatpush.msra.mxu0 %v1542
    %1585 = vmatpush.msra.mxu0 %v1538
    %1586 = vmatpush.msra.mxu0 %v1534
    %1587 = vmatpush.msra.mxu0 %v1530
    %1588 = vmatpush.msra.mxu0 %v1526
    %1589 = vmatpush.msra.mxu0 %v1522
    %1590 = vmatpush.msra.mxu0 %v1518
    %1591 = vmatpush.msra.mxu0 %v1514
    %1592 = vmatpush.msra.mxu0 %v1510
    %1593 = vmatpush.msra.mxu0 %v1506
    %1594 = vmatpush.msra.mxu0 %v1502
    %1595 = vmatpush.msra.mxu0 %v1498
    %1596 = vmatpush.msra.mxu0 %v1494
    %1597 = vmatpush.msra.mxu0 %v1490
    %1598 = vmatpush.msra.mxu0 %v1486
    %1599 = vmatpush.msra.mxu0 %v1482
    %1600 = vmatmul.f32.gmra.mxu0 %v1472
    %v1601 = vpop.f32.mrf.mxu0
    %v1602 = vadd.f32 0.0, %v1601
    %1603 = vdwg.mxu0
    %1604 = vmatpush.msra.mxu0 %v1543
    %1605 = vmatpush.msra.mxu0 %v1539
    %1606 = vmatpush.msra.mxu0 %v1535
    %1607 = vmatpush.msra.mxu0 %v1531
    %1608 = vmatpush.msra.mxu0 %v1527
    %1609 = vmatpush.msra.mxu0 %v1523
    %1610 = vmatpush.msra.mxu0 %v1519
    %1611 = vmatpush.msra.mxu0 %v1515
    %1612 = vmatpush.msra.mxu0 %v1511
    %1613 = vmatpush.msra.mxu0 %v1507
    %1614 = vmatpush.msra.mxu0 %v1503
    %1615 = vmatpush.msra.mxu0 %v1499
    %1616 = vmatpush.msra.mxu0 %v1495
    %1617 = vmatpush.msra.mxu0 %v1491
    %1618 = vmatpush.msra.mxu0 %v1487
    %1619 = vmatpush.msra.mxu0 %v1483
    %1620 = vmatmul.f32.gmra.mxu0 %v1472
    %v1621 = vpop.f32.mrf.mxu0
    %v1622 = vadd.f32 0.0, %v1621
    %1623 = vdwg.mxu0
    %v1624 = vadd.f32 %v1476, %v1562
    %v1625 = vadd.f32 %v1477, %v1582
    %v1626 = vadd.f32 %v1478, %v1602
    %v1627 = vadd.f32 %v1479, %v1622
    %v1628 = vxor.u32 %v1624, 2147483648
    %v1629 = vmul.f32 %v1628, 1.442695
    %v1630 = vpow.pop %v1629
    %v1631 = vadd.f32 %v1630, 1.0
    %v1632 = vrcp.pop %v1631
    %v1633 = vmul.f32 %v1631, %v1632
    %v1634 = vsub.f32 1.0, %v1633
    %v1635 = vmul.f32 %v1632, %v1634
    %v1636 = vadd.f32 %v1632, %v1635
    %vm1637 = vweird.f32 %v1631
    %vm1638 = vweird.f32 %v1632
    %vm1639 = vmor %vm1637, %vm1638
    %v1640 = vsel %vm1639, %v1632, %v1636
    %v1641 = vand.u32 2147483647, %v1631
    %vm1642 = vcmp.eq.f32.partialorder %v1641, 8.507059e+37
    %v1643 = vand.u32 %v1631, 2147483648
    %v1644 = vor.u32 1.1754944e-38, %v1643
    %v1645 = vsel %vm1642, %v1644, %v1640
    %v1646 = vmul.f32 1.0, %v1645
    %v1647 = vxor.u32 %v1625, 2147483648
    %v1648 = vmul.f32 %v1647, 1.442695
    %v1649 = vpow.pop %v1648
    %v1650 = vadd.f32 %v1649, 1.0
    %v1651 = vrcp.pop %v1650
    %v1652 = vmul.f32 %v1650, %v1651
    %v1653 = vsub.f32 1.0, %v1652
    %v1654 = vmul.f32 %v1651, %v1653
    %v1655 = vadd.f32 %v1651, %v1654
    %vm1656 = vweird.f32 %v1650
    %vm1657 = vweird.f32 %v1651
    %vm1658 = vmor %vm1656, %vm1657
    %v1659 = vsel %vm1658, %v1651, %v1655
    %v1660 = vand.u32 2147483647, %v1650
    %vm1661 = vcmp.eq.f32.partialorder %v1660, 8.507059e+37
    %v1662 = vand.u32 %v1650, 2147483648
    %v1663 = vor.u32 1.1754944e-38, %v1662
    %v1664 = vsel %vm1661, %v1663, %v1659
    %v1665 = vmul.f32 1.0, %v1664
    %v1666 = vtanh.pop %v1626
    %v1667 = vxor.u32 %v1627, 2147483648
    %v1668 = vmul.f32 %v1667, 1.442695
    %v1669 = vpow.pop %v1668
    %v1670 = vadd.f32 %v1669, 1.0
    %v1671 = vrcp.pop %v1670
    %v1672 = vmul.f32 %v1670, %v1671
    %v1673 = vsub.f32 1.0, %v1672
    %v1674 = vmul.f32 %v1671, %v1673
    %v1675 = vadd.f32 %v1671, %v1674
    %vm1676 = vweird.f32 %v1670
    %vm1677 = vweird.f32 %v1671
    %vm1678 = vmor %vm1676, %vm1677
    %v1679 = vsel %vm1678, %v1671, %v1675
    %v1680 = vand.u32 2147483647, %v1670
    %vm1681 = vcmp.eq.f32.partialorder %v1680, 8.507059e+37
    %v1682 = vand.u32 %v1670, 2147483648
    %v1683 = vor.u32 1.1754944e-38, %v1682
    %v1684 = vsel %vm1681, %v1683, %v1679
    %v1685 = vmul.f32 1.0, %v1684
    %v1686 = vmul.f32 %v1665, %v1470
    %v1687 = vmul.f32 %v1646, %v1666
    %v1688 = vadd.f32 %v1686, %v1687
    %v1689 = vtanh.pop %v1688
    %v1690 = vmul.f32 %v1685, %v1689
    %s1691 = scalar_lea.vmem [#allocation3], 40
    %1692 = vst [vmem:[%s1691] sm:$0xff] %v1690
    %s1693 = scalar_lea.vmem [#allocation2], 192
    %v1694 = vld [vmem:[%s1693] sm:$0xff]
    %v1695 = vld [vmem:[%s1693 + $0x8] sm:$0xff]
    %v1696 = vld [vmem:[%s1693 + $0x10] sm:$0xff]
    %v1697 = vld [vmem:[%s1693 + $0x18] sm:$0xff]
    %v1698 = vld [vmem:[#allocation9] sm:$0xff]
    %v1699 = vld [vmem:[#allocation9 + $0x8] sm:$0xff]
    %v1700 = vld [vmem:[#allocation9 + $0x10] sm:$0xff]
    %v1701 = vld [vmem:[#allocation9 + $0x18] sm:$0xff]
    %v1702 = vld [vmem:[#allocation9 + $0x20] sm:$0xff]
    %v1703 = vld [vmem:[#allocation9 + $0x28] sm:$0xff]
    %v1704 = vld [vmem:[#allocation9 + $0x30] sm:$0xff]
    %v1705 = vld [vmem:[#allocation9 + $0x38] sm:$0xff]
    %v1706 = vld [vmem:[#allocation9 + $0x40] sm:$0xff]
    %v1707 = vld [vmem:[#allocation9 + $0x48] sm:$0xff]
    %v1708 = vld [vmem:[#allocation9 + $0x50] sm:$0xff]
    %v1709 = vld [vmem:[#allocation9 + $0x58] sm:$0xff]
    %v1710 = vld [vmem:[#allocation9 + $0x60] sm:$0xff]
    %v1711 = vld [vmem:[#allocation9 + $0x68] sm:$0xff]
    %v1712 = vld [vmem:[#allocation9 + $0x70] sm:$0xff]
    %v1713 = vld [vmem:[#allocation9 + $0x78] sm:$0xff]
    %v1714 = vld [vmem:[#allocation9 + $0x80] sm:$0xff]
    %v1715 = vld [vmem:[#allocation9 + $0x88] sm:$0xff]
    %v1716 = vld [vmem:[#allocation9 + $0x90] sm:$0xff]
    %v1717 = vld [vmem:[#allocation9 + $0x98] sm:$0xff]
    %v1718 = vld [vmem:[#allocation9 + $0xa0] sm:$0xff]
    %v1719 = vld [vmem:[#allocation9 + $0xa8] sm:$0xff]
    %v1720 = vld [vmem:[#allocation9 + $0xb0] sm:$0xff]
    %v1721 = vld [vmem:[#allocation9 + $0xb8] sm:$0xff]
    %v1722 = vld [vmem:[#allocation9 + $0xc0] sm:$0xff]
    %v1723 = vld [vmem:[#allocation9 + $0xc8] sm:$0xff]
    %v1724 = vld [vmem:[#allocation9 + $0xd0] sm:$0xff]
    %v1725 = vld [vmem:[#allocation9 + $0xd8] sm:$0xff]
    %v1726 = vld [vmem:[#allocation9 + $0xe0] sm:$0xff]
    %v1727 = vld [vmem:[#allocation9 + $0xe8] sm:$0xff]
    %v1728 = vld [vmem:[#allocation9 + $0xf0] sm:$0xff]
    %v1729 = vld [vmem:[#allocation9 + $0xf8] sm:$0xff]
    %v1730 = vld [vmem:[#allocation9 + $0x100] sm:$0xff]
    %v1731 = vld [vmem:[#allocation9 + $0x108] sm:$0xff]
    %v1732 = vld [vmem:[#allocation9 + $0x110] sm:$0xff]
    %v1733 = vld [vmem:[#allocation9 + $0x118] sm:$0xff]
    %v1734 = vld [vmem:[#allocation9 + $0x120] sm:$0xff]
    %v1735 = vld [vmem:[#allocation9 + $0x128] sm:$0xff]
    %v1736 = vld [vmem:[#allocation9 + $0x130] sm:$0xff]
    %v1737 = vld [vmem:[#allocation9 + $0x138] sm:$0xff]
    %v1738 = vld [vmem:[#allocation9 + $0x140] sm:$0xff]
    %v1739 = vld [vmem:[#allocation9 + $0x148] sm:$0xff]
    %v1740 = vld [vmem:[#allocation9 + $0x150] sm:$0xff]
    %v1741 = vld [vmem:[#allocation9 + $0x158] sm:$0xff]
    %v1742 = vld [vmem:[#allocation9 + $0x160] sm:$0xff]
    %v1743 = vld [vmem:[#allocation9 + $0x168] sm:$0xff]
    %v1744 = vld [vmem:[#allocation9 + $0x170] sm:$0xff]
    %v1745 = vld [vmem:[#allocation9 + $0x178] sm:$0xff]
    %v1746 = vld [vmem:[#allocation9 + $0x180] sm:$0xff]
    %v1747 = vld [vmem:[#allocation9 + $0x188] sm:$0xff]
    %v1748 = vld [vmem:[#allocation9 + $0x190] sm:$0xff]
    %v1749 = vld [vmem:[#allocation9 + $0x198] sm:$0xff]
    %v1750 = vld [vmem:[#allocation9 + $0x1a0] sm:$0xff]
    %v1751 = vld [vmem:[#allocation9 + $0x1a8] sm:$0xff]
    %v1752 = vld [vmem:[#allocation9 + $0x1b0] sm:$0xff]
    %v1753 = vld [vmem:[#allocation9 + $0x1b8] sm:$0xff]
    %v1754 = vld [vmem:[#allocation9 + $0x1c0] sm:$0xff]
    %v1755 = vld [vmem:[#allocation9 + $0x1c8] sm:$0xff]
    %v1756 = vld [vmem:[#allocation9 + $0x1d0] sm:$0xff]
    %v1757 = vld [vmem:[#allocation9 + $0x1d8] sm:$0xff]
    %v1758 = vld [vmem:[#allocation9 + $0x1e0] sm:$0xff]
    %v1759 = vld [vmem:[#allocation9 + $0x1e8] sm:$0xff]
    %v1760 = vld [vmem:[#allocation9 + $0x1f0] sm:$0xff]
    %v1761 = vld [vmem:[#allocation9 + $0x1f8] sm:$0xff]
    %1762 = vmatpush.msra.mxu0 %v1758
    %1763 = vmatpush.msra.mxu0 %v1754
    %1764 = vmatpush.msra.mxu0 %v1750
    %1765 = vmatpush.msra.mxu0 %v1746
    %1766 = vmatpush.msra.mxu0 %v1742
    %1767 = vmatpush.msra.mxu0 %v1738
    %1768 = vmatpush.msra.mxu0 %v1734
    %1769 = vmatpush.msra.mxu0 %v1730
    %1770 = vmatpush.msra.mxu0 %v1726
    %1771 = vmatpush.msra.mxu0 %v1722
    %1772 = vmatpush.msra.mxu0 %v1718
    %1773 = vmatpush.msra.mxu0 %v1714
    %1774 = vmatpush.msra.mxu0 %v1710
    %1775 = vmatpush.msra.mxu0 %v1706
    %1776 = vmatpush.msra.mxu0 %v1702
    %1777 = vmatpush.msra.mxu0 %v1698
    %1778 = vmatmul.f32.gmra.mxu0 %v1690
    %v1779 = vpop.f32.mrf.mxu0
    %v1780 = vadd.f32 0.0, %v1779
    %1781 = vdwg.mxu0
    %1782 = vmatpush.msra.mxu0 %v1759
    %1783 = vmatpush.msra.mxu0 %v1755
    %1784 = vmatpush.msra.mxu0 %v1751
    %1785 = vmatpush.msra.mxu0 %v1747
    %1786 = vmatpush.msra.mxu0 %v1743
    %1787 = vmatpush.msra.mxu0 %v1739
    %1788 = vmatpush.msra.mxu0 %v1735
    %1789 = vmatpush.msra.mxu0 %v1731
    %1790 = vmatpush.msra.mxu0 %v1727
    %1791 = vmatpush.msra.mxu0 %v1723
    %1792 = vmatpush.msra.mxu0 %v1719
    %1793 = vmatpush.msra.mxu0 %v1715
    %1794 = vmatpush.msra.mxu0 %v1711
    %1795 = vmatpush.msra.mxu0 %v1707
    %1796 = vmatpush.msra.mxu0 %v1703
    %1797 = vmatpush.msra.mxu0 %v1699
    %1798 = vmatmul.f32.gmra.mxu0 %v1690
    %v1799 = vpop.f32.mrf.mxu0
    %v1800 = vadd.f32 0.0, %v1799
    %1801 = vdwg.mxu0
    %1802 = vmatpush.msra.mxu0 %v1760
    %1803 = vmatpush.msra.mxu0 %v1756
    %1804 = vmatpush.msra.mxu0 %v1752
    %1805 = vmatpush.msra.mxu0 %v1748
    %1806 = vmatpush.msra.mxu0 %v1744
    %1807 = vmatpush.msra.mxu0 %v1740
    %1808 = vmatpush.msra.mxu0 %v1736
    %1809 = vmatpush.msra.mxu0 %v1732
    %1810 = vmatpush.msra.mxu0 %v1728
    %1811 = vmatpush.msra.mxu0 %v1724
    %1812 = vmatpush.msra.mxu0 %v1720
    %1813 = vmatpush.msra.mxu0 %v1716
    %1814 = vmatpush.msra.mxu0 %v1712
    %1815 = vmatpush.msra.mxu0 %v1708
    %1816 = vmatpush.msra.mxu0 %v1704
    %1817 = vmatpush.msra.mxu0 %v1700
    %1818 = vmatmul.f32.gmra.mxu0 %v1690
    %v1819 = vpop.f32.mrf.mxu0
    %v1820 = vadd.f32 0.0, %v1819
    %1821 = vdwg.mxu0
    %1822 = vmatpush.msra.mxu0 %v1761
    %1823 = vmatpush.msra.mxu0 %v1757
    %1824 = vmatpush.msra.mxu0 %v1753
    %1825 = vmatpush.msra.mxu0 %v1749
    %1826 = vmatpush.msra.mxu0 %v1745
    %1827 = vmatpush.msra.mxu0 %v1741
    %1828 = vmatpush.msra.mxu0 %v1737
    %1829 = vmatpush.msra.mxu0 %v1733
    %1830 = vmatpush.msra.mxu0 %v1729
    %1831 = vmatpush.msra.mxu0 %v1725
    %1832 = vmatpush.msra.mxu0 %v1721
    %1833 = vmatpush.msra.mxu0 %v1717
    %1834 = vmatpush.msra.mxu0 %v1713
    %1835 = vmatpush.msra.mxu0 %v1709
    %1836 = vmatpush.msra.mxu0 %v1705
    %1837 = vmatpush.msra.mxu0 %v1701
    %1838 = vmatmul.f32.gmra.mxu0 %v1690
    %v1839 = vpop.f32.mrf.mxu0
    %v1840 = vadd.f32 0.0, %v1839
    %1841 = vdwg.mxu0
    %v1842 = vadd.f32 %v1694, %v1780
    %v1843 = vadd.f32 %v1695, %v1800
    %v1844 = vadd.f32 %v1696, %v1820
    %v1845 = vadd.f32 %v1697, %v1840
    %v1846 = vxor.u32 %v1842, 2147483648
    %v1847 = vmul.f32 %v1846, 1.442695
    %v1848 = vpow.pop %v1847
    %v1849 = vadd.f32 %v1848, 1.0
    %v1850 = vrcp.pop %v1849
    %v1851 = vmul.f32 %v1849, %v1850
    %v1852 = vsub.f32 1.0, %v1851
    %v1853 = vmul.f32 %v1850, %v1852
    %v1854 = vadd.f32 %v1850, %v1853
    %vm1855 = vweird.f32 %v1849
    %vm1856 = vweird.f32 %v1850
    %vm1857 = vmor %vm1855, %vm1856
    %v1858 = vsel %vm1857, %v1850, %v1854
    %v1859 = vand.u32 2147483647, %v1849
    %vm1860 = vcmp.eq.f32.partialorder %v1859, 8.507059e+37
    %v1861 = vand.u32 %v1849, 2147483648
    %v1862 = vor.u32 1.1754944e-38, %v1861
    %v1863 = vsel %vm1860, %v1862, %v1858
    %v1864 = vmul.f32 1.0, %v1863
    %v1865 = vxor.u32 %v1843, 2147483648
    %v1866 = vmul.f32 %v1865, 1.442695
    %v1867 = vpow.pop %v1866
    %v1868 = vadd.f32 %v1867, 1.0
    %v1869 = vrcp.pop %v1868
    %v1870 = vmul.f32 %v1868, %v1869
    %v1871 = vsub.f32 1.0, %v1870
    %v1872 = vmul.f32 %v1869, %v1871
    %v1873 = vadd.f32 %v1869, %v1872
    %vm1874 = vweird.f32 %v1868
    %vm1875 = vweird.f32 %v1869
    %vm1876 = vmor %vm1874, %vm1875
    %v1877 = vsel %vm1876, %v1869, %v1873
    %v1878 = vand.u32 2147483647, %v1868
    %vm1879 = vcmp.eq.f32.partialorder %v1878, 8.507059e+37
    %v1880 = vand.u32 %v1868, 2147483648
    %v1881 = vor.u32 1.1754944e-38, %v1880
    %v1882 = vsel %vm1879, %v1881, %v1877
    %v1883 = vmul.f32 1.0, %v1882
    %v1884 = vtanh.pop %v1844
    %v1885 = vxor.u32 %v1845, 2147483648
    %v1886 = vmul.f32 %v1885, 1.442695
    %v1887 = vpow.pop %v1886
    %v1888 = vadd.f32 %v1887, 1.0
    %v1889 = vrcp.pop %v1888
    %v1890 = vmul.f32 %v1888, %v1889
    %v1891 = vsub.f32 1.0, %v1890
    %v1892 = vmul.f32 %v1889, %v1891
    %v1893 = vadd.f32 %v1889, %v1892
    %vm1894 = vweird.f32 %v1888
    %vm1895 = vweird.f32 %v1889
    %vm1896 = vmor %vm1894, %vm1895
    %v1897 = vsel %vm1896, %v1889, %v1893
    %v1898 = vand.u32 2147483647, %v1888
    %vm1899 = vcmp.eq.f32.partialorder %v1898, 8.507059e+37
    %v1900 = vand.u32 %v1888, 2147483648
    %v1901 = vor.u32 1.1754944e-38, %v1900
    %v1902 = vsel %vm1899, %v1901, %v1897
    %v1903 = vmul.f32 1.0, %v1902
    %v1904 = vmul.f32 %v1883, %v1688
    %v1905 = vmul.f32 %v1864, %v1884
    %v1906 = vadd.f32 %v1904, %v1905
    %v1907 = vtanh.pop %v1906
    %v1908 = vmul.f32 %v1903, %v1907
    %s1909 = scalar_lea.vmem [#allocation3], 48
    %1910 = vst [vmem:[%s1909] sm:$0xff] %v1908
    %s1911 = scalar_lea.vmem [#allocation2], 224
    %v1912 = vld [vmem:[%s1911] sm:$0xff]
    %v1913 = vld [vmem:[%s1911 + $0x8] sm:$0xff]
    %v1914 = vld [vmem:[%s1911 + $0x10] sm:$0xff]
    %v1915 = vld [vmem:[%s1911 + $0x18] sm:$0xff]
    %v1916 = vld [vmem:[#allocation9] sm:$0xff]
    %v1917 = vld [vmem:[#allocation9 + $0x8] sm:$0xff]
    %v1918 = vld [vmem:[#allocation9 + $0x10] sm:$0xff]
    %v1919 = vld [vmem:[#allocation9 + $0x18] sm:$0xff]
    %v1920 = vld [vmem:[#allocation9 + $0x20] sm:$0xff]
    %v1921 = vld [vmem:[#allocation9 + $0x28] sm:$0xff]
    %v1922 = vld [vmem:[#allocation9 + $0x30] sm:$0xff]
    %v1923 = vld [vmem:[#allocation9 + $0x38] sm:$0xff]
    %v1924 = vld [vmem:[#allocation9 + $0x40] sm:$0xff]
    %v1925 = vld [vmem:[#allocation9 + $0x48] sm:$0xff]
    %v1926 = vld [vmem:[#allocation9 + $0x50] sm:$0xff]
    %v1927 = vld [vmem:[#allocation9 + $0x58] sm:$0xff]
    %v1928 = vld [vmem:[#allocation9 + $0x60] sm:$0xff]
    %v1929 = vld [vmem:[#allocation9 + $0x68] sm:$0xff]
    %v1930 = vld [vmem:[#allocation9 + $0x70] sm:$0xff]
    %v1931 = vld [vmem:[#allocation9 + $0x78] sm:$0xff]
    %v1932 = vld [vmem:[#allocation9 + $0x80] sm:$0xff]
    %v1933 = vld [vmem:[#allocation9 + $0x88] sm:$0xff]
    %v1934 = vld [vmem:[#allocation9 + $0x90] sm:$0xff]
    %v1935 = vld [vmem:[#allocation9 + $0x98] sm:$0xff]
    %v1936 = vld [vmem:[#allocation9 + $0xa0] sm:$0xff]
    %v1937 = vld [vmem:[#allocation9 + $0xa8] sm:$0xff]
    %v1938 = vld [vmem:[#allocation9 + $0xb0] sm:$0xff]
    %v1939 = vld [vmem:[#allocation9 + $0xb8] sm:$0xff]
    %v1940 = vld [vmem:[#allocation9 + $0xc0] sm:$0xff]
    %v1941 = vld [vmem:[#allocation9 + $0xc8] sm:$0xff]
    %v1942 = vld [vmem:[#allocation9 + $0xd0] sm:$0xff]
    %v1943 = vld [vmem:[#allocation9 + $0xd8] sm:$0xff]
    %v1944 = vld [vmem:[#allocation9 + $0xe0] sm:$0xff]
    %v1945 = vld [vmem:[#allocation9 + $0xe8] sm:$0xff]
    %v1946 = vld [vmem:[#allocation9 + $0xf0] sm:$0xff]
    %v1947 = vld [vmem:[#allocation9 + $0xf8] sm:$0xff]
    %v1948 = vld [vmem:[#allocation9 + $0x100] sm:$0xff]
    %v1949 = vld [vmem:[#allocation9 + $0x108] sm:$0xff]
    %v1950 = vld [vmem:[#allocation9 + $0x110] sm:$0xff]
    %v1951 = vld [vmem:[#allocation9 + $0x118] sm:$0xff]
    %v1952 = vld [vmem:[#allocation9 + $0x120] sm:$0xff]
    %v1953 = vld [vmem:[#allocation9 + $0x128] sm:$0xff]
    %v1954 = vld [vmem:[#allocation9 + $0x130] sm:$0xff]
    %v1955 = vld [vmem:[#allocation9 + $0x138] sm:$0xff]
    %v1956 = vld [vmem:[#allocation9 + $0x140] sm:$0xff]
    %v1957 = vld [vmem:[#allocation9 + $0x148] sm:$0xff]
    %v1958 = vld [vmem:[#allocation9 + $0x150] sm:$0xff]
    %v1959 = vld [vmem:[#allocation9 + $0x158] sm:$0xff]
    %v1960 = vld [vmem:[#allocation9 + $0x160] sm:$0xff]
    %v1961 = vld [vmem:[#allocation9 + $0x168] sm:$0xff]
    %v1962 = vld [vmem:[#allocation9 + $0x170] sm:$0xff]
    %v1963 = vld [vmem:[#allocation9 + $0x178] sm:$0xff]
    %v1964 = vld [vmem:[#allocation9 + $0x180] sm:$0xff]
    %v1965 = vld [vmem:[#allocation9 + $0x188] sm:$0xff]
    %v1966 = vld [vmem:[#allocation9 + $0x190] sm:$0xff]
    %v1967 = vld [vmem:[#allocation9 + $0x198] sm:$0xff]
    %v1968 = vld [vmem:[#allocation9 + $0x1a0] sm:$0xff]
    %v1969 = vld [vmem:[#allocation9 + $0x1a8] sm:$0xff]
    %v1970 = vld [vmem:[#allocation9 + $0x1b0] sm:$0xff]
    %v1971 = vld [vmem:[#allocation9 + $0x1b8] sm:$0xff]
    %v1972 = vld [vmem:[#allocation9 + $0x1c0] sm:$0xff]
    %v1973 = vld [vmem:[#allocation9 + $0x1c8] sm:$0xff]
    %v1974 = vld [vmem:[#allocation9 + $0x1d0] sm:$0xff]
    %v1975 = vld [vmem:[#allocation9 + $0x1d8] sm:$0xff]
    %v1976 = vld [vmem:[#allocation9 + $0x1e0] sm:$0xff]
    %v1977 = vld [vmem:[#allocation9 + $0x1e8] sm:$0xff]
    %v1978 = vld [vmem:[#allocation9 + $0x1f0] sm:$0xff]
    %v1979 = vld [vmem:[#allocation9 + $0x1f8] sm:$0xff]
    %1980 = vmatpush.msra.mxu0 %v1976
    %1981 = vmatpush.msra.mxu0 %v1972
    %1982 = vmatpush.msra.mxu0 %v1968
    %1983 = vmatpush.msra.mxu0 %v1964
    %1984 = vmatpush.msra.mxu0 %v1960
    %1985 = vmatpush.msra.mxu0 %v1956
    %1986 = vmatpush.msra.mxu0 %v1952
    %1987 = vmatpush.msra.mxu0 %v1948
    %1988 = vmatpush.msra.mxu0 %v1944
    %1989 = vmatpush.msra.mxu0 %v1940
    %1990 = vmatpush.msra.mxu0 %v1936
    %1991 = vmatpush.msra.mxu0 %v1932
    %1992 = vmatpush.msra.mxu0 %v1928
    %1993 = vmatpush.msra.mxu0 %v1924
    %1994 = vmatpush.msra.mxu0 %v1920
    %1995 = vmatpush.msra.mxu0 %v1916
    %1996 = vmatmul.f32.gmra.mxu0 %v1908
    %v1997 = vpop.f32.mrf.mxu0
    %v1998 = vadd.f32 0.0, %v1997
    %1999 = vdwg.mxu0
    %2000 = vmatpush.msra.mxu0 %v1977
    %2001 = vmatpush.msra.mxu0 %v1973
    %2002 = vmatpush.msra.mxu0 %v1969
    %2003 = vmatpush.msra.mxu0 %v1965
    %2004 = vmatpush.msra.mxu0 %v1961
    %2005 = vmatpush.msra.mxu0 %v1957
    %2006 = vmatpush.msra.mxu0 %v1953
    %2007 = vmatpush.msra.mxu0 %v1949
    %2008 = vmatpush.msra.mxu0 %v1945
    %2009 = vmatpush.msra.mxu0 %v1941
    %2010 = vmatpush.msra.mxu0 %v1937
    %2011 = vmatpush.msra.mxu0 %v1933
    %2012 = vmatpush.msra.mxu0 %v1929
    %2013 = vmatpush.msra.mxu0 %v1925
    %2014 = vmatpush.msra.mxu0 %v1921
    %2015 = vmatpush.msra.mxu0 %v1917
    %2016 = vmatmul.f32.gmra.mxu0 %v1908
    %v2017 = vpop.f32.mrf.mxu0
    %v2018 = vadd.f32 0.0, %v2017
    %2019 = vdwg.mxu0
    %2020 = vmatpush.msra.mxu0 %v1978
    %2021 = vmatpush.msra.mxu0 %v1974
    %2022 = vmatpush.msra.mxu0 %v1970
    %2023 = vmatpush.msra.mxu0 %v1966
    %2024 = vmatpush.msra.mxu0 %v1962
    %2025 = vmatpush.msra.mxu0 %v1958
    %2026 = vmatpush.msra.mxu0 %v1954
    %2027 = vmatpush.msra.mxu0 %v1950
    %2028 = vmatpush.msra.mxu0 %v1946
    %2029 = vmatpush.msra.mxu0 %v1942
    %2030 = vmatpush.msra.mxu0 %v1938
    %2031 = vmatpush.msra.mxu0 %v1934
    %2032 = vmatpush.msra.mxu0 %v1930
    %2033 = vmatpush.msra.mxu0 %v1926
    %2034 = vmatpush.msra.mxu0 %v1922
    %2035 = vmatpush.msra.mxu0 %v1918
    %2036 = vmatmul.f32.gmra.mxu0 %v1908
    %v2037 = vpop.f32.mrf.mxu0
    %v2038 = vadd.f32 0.0, %v2037
    %2039 = vdwg.mxu0
    %2040 = vmatpush.msra.mxu0 %v1979
    %2041 = vmatpush.msra.mxu0 %v1975
    %2042 = vmatpush.msra.mxu0 %v1971
    %2043 = vmatpush.msra.mxu0 %v1967
    %2044 = vmatpush.msra.mxu0 %v1963
    %2045 = vmatpush.msra.mxu0 %v1959
    %2046 = vmatpush.msra.mxu0 %v1955
    %2047 = vmatpush.msra.mxu0 %v1951
    %2048 = vmatpush.msra.mxu0 %v1947
    %2049 = vmatpush.msra.mxu0 %v1943
    %2050 = vmatpush.msra.mxu0 %v1939
    %2051 = vmatpush.msra.mxu0 %v1935
    %2052 = vmatpush.msra.mxu0 %v1931
    %2053 = vmatpush.msra.mxu0 %v1927
    %2054 = vmatpush.msra.mxu0 %v1923
    %2055 = vmatpush.msra.mxu0 %v1919
    %2056 = vmatmul.f32.gmra.mxu0 %v1908
    %v2057 = vpop.f32.mrf.mxu0
    %v2058 = vadd.f32 0.0, %v2057
    %2059 = vdwg.mxu0
    %v2060 = vadd.f32 %v1912, %v1998
    %v2061 = vadd.f32 %v1913, %v2018
    %v2062 = vadd.f32 %v1914, %v2038
    %v2063 = vadd.f32 %v1915, %v2058
    %v2064 = vxor.u32 %v2060, 2147483648
    %v2065 = vmul.f32 %v2064, 1.442695
    %v2066 = vpow.pop %v2065
    %v2067 = vadd.f32 %v2066, 1.0
    %v2068 = vrcp.pop %v2067
    %v2069 = vmul.f32 %v2067, %v2068
    %v2070 = vsub.f32 1.0, %v2069
    %v2071 = vmul.f32 %v2068, %v2070
    %v2072 = vadd.f32 %v2068, %v2071
    %vm2073 = vweird.f32 %v2067
    %vm2074 = vweird.f32 %v2068
    %vm2075 = vmor %vm2073, %vm2074
    %v2076 = vsel %vm2075, %v2068, %v2072
    %v2077 = vand.u32 2147483647, %v2067
    %vm2078 = vcmp.eq.f32.partialorder %v2077, 8.507059e+37
    %v2079 = vand.u32 %v2067, 2147483648
    %v2080 = vor.u32 1.1754944e-38, %v2079
    %v2081 = vsel %vm2078, %v2080, %v2076
    %v2082 = vmul.f32 1.0, %v2081
    %v2083 = vxor.u32 %v2061, 2147483648
    %v2084 = vmul.f32 %v2083, 1.442695
    %v2085 = vpow.pop %v2084
    %v2086 = vadd.f32 %v2085, 1.0
    %v2087 = vrcp.pop %v2086
    %v2088 = vmul.f32 %v2086, %v2087
    %v2089 = vsub.f32 1.0, %v2088
    %v2090 = vmul.f32 %v2087, %v2089
    %v2091 = vadd.f32 %v2087, %v2090
    %vm2092 = vweird.f32 %v2086
    %vm2093 = vweird.f32 %v2087
    %vm2094 = vmor %vm2092, %vm2093
    %v2095 = vsel %vm2094, %v2087, %v2091
    %v2096 = vand.u32 2147483647, %v2086
    %vm2097 = vcmp.eq.f32.partialorder %v2096, 8.507059e+37
    %v2098 = vand.u32 %v2086, 2147483648
    %v2099 = vor.u32 1.1754944e-38, %v2098
    %v2100 = vsel %vm2097, %v2099, %v2095
    %v2101 = vmul.f32 1.0, %v2100
    %v2102 = vtanh.pop %v2062
    %v2103 = vxor.u32 %v2063, 2147483648
    %v2104 = vmul.f32 %v2103, 1.442695
    %v2105 = vpow.pop %v2104
    %v2106 = vadd.f32 %v2105, 1.0
    %v2107 = vrcp.pop %v2106
    %v2108 = vmul.f32 %v2106, %v2107
    %v2109 = vsub.f32 1.0, %v2108
    %v2110 = vmul.f32 %v2107, %v2109
    %v2111 = vadd.f32 %v2107, %v2110
    %vm2112 = vweird.f32 %v2106
    %vm2113 = vweird.f32 %v2107
    %vm2114 = vmor %vm2112, %vm2113
    %v2115 = vsel %vm2114, %v2107, %v2111
    %v2116 = vand.u32 2147483647, %v2106
    %vm2117 = vcmp.eq.f32.partialorder %v2116, 8.507059e+37
    %v2118 = vand.u32 %v2106, 2147483648
    %v2119 = vor.u32 1.1754944e-38, %v2118
    %v2120 = vsel %vm2117, %v2119, %v2115
    %v2121 = vmul.f32 1.0, %v2120
    %v2122 = vmul.f32 %v2101, %v1906
    %v2123 = vmul.f32 %v2082, %v2102
    %v2124 = vadd.f32 %v2122, %v2123
    %v2125 = vtanh.pop %v2124
    %v2126 = vmul.f32 %v2121, %v2125
    %s2127 = scalar_lea.vmem [#allocation3], 56
    %2128 = vst [vmem:[%s2127] sm:$0xff] %v2126
    %v2129 = vld [vmem:[#allocation3] sm:$0xff]
    %v2130 = vld [vmem:[#allocation3 + $0x8] sm:$0xff]
    %v2131 = vld [vmem:[#allocation3 + $0x10] sm:$0xff]
    %v2132 = vld [vmem:[#allocation3 + $0x18] sm:$0xff]
    %v2133 = vld [vmem:[#allocation3 + $0x20] sm:$0xff]
    %v2134 = vld [vmem:[#allocation3 + $0x28] sm:$0xff]
    %v2135 = vld [vmem:[#allocation3 + $0x30] sm:$0xff]
    %v2136 = vld [vmem:[#allocation3 + $0x38] sm:$0xff]
    %v2137 = vld [vmem:[#allocation12] sm:$0xff]
    %v2138 = vld [vmem:[#allocation12 + $0x8] sm:$0xff]
    %v2139 = vld [vmem:[#allocation12 + $0x10] sm:$0xff]
    %v2140 = vld [vmem:[#allocation12 + $0x18] sm:$0xff]
    %v2141 = vld [vmem:[#allocation12 + $0x20] sm:$0xff]
    %v2142 = vld [vmem:[#allocation12 + $0x28] sm:$0xff]
    %v2143 = vld [vmem:[#allocation12 + $0x30] sm:$0xff]
    %v2144 = vld [vmem:[#allocation12 + $0x38] sm:$0xff]
    %v2145 = vld [vmem:[#allocation12 + $0x40] sm:$0xff]
    %v2146 = vld [vmem:[#allocation12 + $0x48] sm:$0xff]
    %v2147 = vld [vmem:[#allocation12 + $0x50] sm:$0xff]
    %v2148 = vld [vmem:[#allocation12 + $0x58] sm:$0xff]
    %v2149 = vld [vmem:[#allocation12 + $0x60] sm:$0xff]
    %v2150 = vld [vmem:[#allocation12 + $0x68] sm:$0xff]
    %v2151 = vld [vmem:[#allocation12 + $0x70] sm:$0xff]
    %v2152 = vld [vmem:[#allocation12 + $0x78] sm:$0xff]
    %v2153 = vld [vmem:[#allocation12 + $0x80] sm:$0xff]
    %v2154 = vld [vmem:[#allocation12 + $0x88] sm:$0xff]
    %v2155 = vld [vmem:[#allocation12 + $0x90] sm:$0xff]
    %v2156 = vld [vmem:[#allocation12 + $0x98] sm:$0xff]
    %v2157 = vld [vmem:[#allocation12 + $0xa0] sm:$0xff]
    %v2158 = vld [vmem:[#allocation12 + $0xa8] sm:$0xff]
    %v2159 = vld [vmem:[#allocation12 + $0xb0] sm:$0xff]
    %v2160 = vld [vmem:[#allocation12 + $0xb8] sm:$0xff]
    %v2161 = vld [vmem:[#allocation12 + $0xc0] sm:$0xff]
    %v2162 = vld [vmem:[#allocation12 + $0xc8] sm:$0xff]
    %v2163 = vld [vmem:[#allocation12 + $0xd0] sm:$0xff]
    %v2164 = vld [vmem:[#allocation12 + $0xd8] sm:$0xff]
    %v2165 = vld [vmem:[#allocation12 + $0xe0] sm:$0xff]
    %v2166 = vld [vmem:[#allocation12 + $0xe8] sm:$0xff]
    %v2167 = vld [vmem:[#allocation12 + $0xf0] sm:$0xff]
    %v2168 = vld [vmem:[#allocation12 + $0xf8] sm:$0xff]
    %v2169 = vld [vmem:[#allocation12 + $0x100] sm:$0xff]
    %v2170 = vld [vmem:[#allocation12 + $0x108] sm:$0xff]
    %v2171 = vld [vmem:[#allocation12 + $0x110] sm:$0xff]
    %v2172 = vld [vmem:[#allocation12 + $0x118] sm:$0xff]
    %v2173 = vld [vmem:[#allocation12 + $0x120] sm:$0xff]
    %v2174 = vld [vmem:[#allocation12 + $0x128] sm:$0xff]
    %v2175 = vld [vmem:[#allocation12 + $0x130] sm:$0xff]
    %v2176 = vld [vmem:[#allocation12 + $0x138] sm:$0xff]
    %v2177 = vld [vmem:[#allocation12 + $0x140] sm:$0xff]
    %v2178 = vld [vmem:[#allocation12 + $0x148] sm:$0xff]
    %v2179 = vld [vmem:[#allocation12 + $0x150] sm:$0xff]
    %v2180 = vld [vmem:[#allocation12 + $0x158] sm:$0xff]
    %v2181 = vld [vmem:[#allocation12 + $0x160] sm:$0xff]
    %v2182 = vld [vmem:[#allocation12 + $0x168] sm:$0xff]
    %v2183 = vld [vmem:[#allocation12 + $0x170] sm:$0xff]
    %v2184 = vld [vmem:[#allocation12 + $0x178] sm:$0xff]
    %v2185 = vld [vmem:[#allocation12 + $0x180] sm:$0xff]
    %v2186 = vld [vmem:[#allocation12 + $0x188] sm:$0xff]
    %v2187 = vld [vmem:[#allocation12 + $0x190] sm:$0xff]
    %v2188 = vld [vmem:[#allocation12 + $0x198] sm:$0xff]
    %v2189 = vld [vmem:[#allocation12 + $0x1a0] sm:$0xff]
    %v2190 = vld [vmem:[#allocation12 + $0x1a8] sm:$0xff]
    %v2191 = vld [vmem:[#allocation12 + $0x1b0] sm:$0xff]
    %v2192 = vld [vmem:[#allocation12 + $0x1b8] sm:$0xff]
    %v2193 = vld [vmem:[#allocation12 + $0x1c0] sm:$0xff]
    %v2194 = vld [vmem:[#allocation12 + $0x1c8] sm:$0xff]
    %v2195 = vld [vmem:[#allocation12 + $0x1d0] sm:$0xff]
    %v2196 = vld [vmem:[#allocation12 + $0x1d8] sm:$0xff]
    %v2197 = vld [vmem:[#allocation12 + $0x1e0] sm:$0xff]
    %v2198 = vld [vmem:[#allocation12 + $0x1e8] sm:$0xff]
    %v2199 = vld [vmem:[#allocation12 + $0x1f0] sm:$0xff]
    %v2200 = vld [vmem:[#allocation12 + $0x1f8] sm:$0xff]
    %v2201 = vld [vmem:[%s6] sm:$0xf]
    %v2203 = vperm.slane %v2201, 0
    %v2204 = vperm.slane %v2201, 1
    %v2205 = vperm.slane %v2201, 2
    %v2206 = vperm.slane %v2201, 3
    %2211 = vmatpush.msra.mxu0 %v2197
    %2212 = vmatpush.msra.mxu0 %v2193
    %2213 = vmatpush.msra.mxu0 %v2189
    %2214 = vmatpush.msra.mxu0 %v2185
    %2215 = vmatpush.msra.mxu0 %v2181
    %2216 = vmatpush.msra.mxu0 %v2177
    %2217 = vmatpush.msra.mxu0 %v2173
    %2218 = vmatpush.msra.mxu0 %v2169
    %2219 = vmatpush.msra.mxu0 %v2165
    %2220 = vmatpush.msra.mxu0 %v2161
    %2221 = vmatpush.msra.mxu0 %v2157
    %2222 = vmatpush.msra.mxu0 %v2153
    %2223 = vmatpush.msra.mxu0 %v2149
    %2224 = vmatpush.msra.mxu0 %v2145
    %2225 = vmatpush.msra.mxu0 %v2141
    %2226 = vmatpush.msra.mxu0 %v2137
    %2227 = vmatmul.f32.gmra.mxu0 %v2129
    %v2228 = vpop.f32.mrf.mxu0
    %v2229 = vadd.f32 %v2203, %v2228
    %2230 = vmatmul.f32.gmra.mxu0 %v2130
    %v2231 = vpop.f32.mrf.mxu0
    %v2232 = vadd.f32 %v2203, %v2231
    %2233 = vmatmul.f32.gmra.mxu0 %v2131
    %v2234 = vpop.f32.mrf.mxu0
    %v2235 = vadd.f32 %v2203, %v2234
    %2236 = vmatmul.f32.gmra.mxu0 %v2132
    %v2237 = vpop.f32.mrf.mxu0
    %v2238 = vadd.f32 %v2203, %v2237
    %2239 = vmatmul.f32.gmra.mxu0 %v2133
    %v2240 = vpop.f32.mrf.mxu0
    %v2241 = vadd.f32 %v2203, %v2240
    %2242 = vmatmul.f32.gmra.mxu0 %v2134
    %v2243 = vpop.f32.mrf.mxu0
    %v2244 = vadd.f32 %v2203, %v2243
    %2245 = vmatmul.f32.gmra.mxu0 %v2135
    %v2246 = vpop.f32.mrf.mxu0
    %v2247 = vadd.f32 %v2203, %v2246
    %2248 = vmatmul.f32.gmra.mxu0 %v2136
    %v2249 = vpop.f32.mrf.mxu0
    %v2250 = vadd.f32 %v2203, %v2249
    %2251 = vdwg.mxu0
    %2252 = vmatpush.msra.mxu0 %v2198
    %2253 = vmatpush.msra.mxu0 %v2194
    %2254 = vmatpush.msra.mxu0 %v2190
    %2255 = vmatpush.msra.mxu0 %v2186
    %2256 = vmatpush.msra.mxu0 %v2182
    %2257 = vmatpush.msra.mxu0 %v2178
    %2258 = vmatpush.msra.mxu0 %v2174
    %2259 = vmatpush.msra.mxu0 %v2170
    %2260 = vmatpush.msra.mxu0 %v2166
    %2261 = vmatpush.msra.mxu0 %v2162
    %2262 = vmatpush.msra.mxu0 %v2158
    %2263 = vmatpush.msra.mxu0 %v2154
    %2264 = vmatpush.msra.mxu0 %v2150
    %2265 = vmatpush.msra.mxu0 %v2146
    %2266 = vmatpush.msra.mxu0 %v2142
    %2267 = vmatpush.msra.mxu0 %v2138
    %2268 = vmatmul.f32.gmra.mxu0 %v2129
    %v2269 = vpop.f32.mrf.mxu0
    %v2270 = vadd.f32 %v2204, %v2269
    %2271 = vmatmul.f32.gmra.mxu0 %v2130
    %v2272 = vpop.f32.mrf.mxu0
    %v2273 = vadd.f32 %v2204, %v2272
    %2274 = vmatmul.f32.gmra.mxu0 %v2131
    %v2275 = vpop.f32.mrf.mxu0
    %v2276 = vadd.f32 %v2204, %v2275
    %2277 = vmatmul.f32.gmra.mxu0 %v2132
    %v2278 = vpop.f32.mrf.mxu0
    %v2279 = vadd.f32 %v2204, %v2278
    %2280 = vmatmul.f32.gmra.mxu0 %v2133
    %v2281 = vpop.f32.mrf.mxu0
    %v2282 = vadd.f32 %v2204, %v2281
    %2283 = vmatmul.f32.gmra.mxu0 %v2134
    %v2284 = vpop.f32.mrf.mxu0
    %v2285 = vadd.f32 %v2204, %v2284
    %2286 = vmatmul.f32.gmra.mxu0 %v2135
    %v2287 = vpop.f32.mrf.mxu0
    %v2288 = vadd.f32 %v2204, %v2287
    %2289 = vmatmul.f32.gmra.mxu0 %v2136
    %v2290 = vpop.f32.mrf.mxu0
    %v2291 = vadd.f32 %v2204, %v2290
    %2292 = vdwg.mxu0
    %2293 = vmatpush.msra.mxu0 %v2199
    %2294 = vmatpush.msra.mxu0 %v2195
    %2295 = vmatpush.msra.mxu0 %v2191
    %2296 = vmatpush.msra.mxu0 %v2187
    %2297 = vmatpush.msra.mxu0 %v2183
    %2298 = vmatpush.msra.mxu0 %v2179
    %2299 = vmatpush.msra.mxu0 %v2175
    %2300 = vmatpush.msra.mxu0 %v2171
    %2301 = vmatpush.msra.mxu0 %v2167
    %2302 = vmatpush.msra.mxu0 %v2163
    %2303 = vmatpush.msra.mxu0 %v2159
    %2304 = vmatpush.msra.mxu0 %v2155
    %2305 = vmatpush.msra.mxu0 %v2151
    %2306 = vmatpush.msra.mxu0 %v2147
    %2307 = vmatpush.msra.mxu0 %v2143
    %2308 = vmatpush.msra.mxu0 %v2139
    %2309 = vmatmul.f32.gmra.mxu0 %v2129
    %v2310 = vpop.f32.mrf.mxu0
    %v2311 = vadd.f32 %v2205, %v2310
    %2312 = vmatmul.f32.gmra.mxu0 %v2130
    %v2313 = vpop.f32.mrf.mxu0
    %v2314 = vadd.f32 %v2205, %v2313
    %2315 = vmatmul.f32.gmra.mxu0 %v2131
    %v2316 = vpop.f32.mrf.mxu0
    %v2317 = vadd.f32 %v2205, %v2316
    %2318 = vmatmul.f32.gmra.mxu0 %v2132
    %v2319 = vpop.f32.mrf.mxu0
    %v2320 = vadd.f32 %v2205, %v2319
    %2321 = vmatmul.f32.gmra.mxu0 %v2133
    %v2322 = vpop.f32.mrf.mxu0
    %v2323 = vadd.f32 %v2205, %v2322
    %2324 = vmatmul.f32.gmra.mxu0 %v2134
    %v2325 = vpop.f32.mrf.mxu0
    %v2326 = vadd.f32 %v2205, %v2325
    %2327 = vmatmul.f32.gmra.mxu0 %v2135
    %v2328 = vpop.f32.mrf.mxu0
    %v2329 = vadd.f32 %v2205, %v2328
    %2330 = vmatmul.f32.gmra.mxu0 %v2136
    %v2331 = vpop.f32.mrf.mxu0
    %v2332 = vadd.f32 %v2205, %v2331
    %2333 = vdwg.mxu0
    %2334 = vmatpush.msra.mxu0 %v2200
    %2335 = vmatpush.msra.mxu0 %v2196
    %2336 = vmatpush.msra.mxu0 %v2192
    %2337 = vmatpush.msra.mxu0 %v2188
    %2338 = vmatpush.msra.mxu0 %v2184
    %2339 = vmatpush.msra.mxu0 %v2180
    %2340 = vmatpush.msra.mxu0 %v2176
    %2341 = vmatpush.msra.mxu0 %v2172
    %2342 = vmatpush.msra.mxu0 %v2168
    %2343 = vmatpush.msra.mxu0 %v2164
    %2344 = vmatpush.msra.mxu0 %v2160
    %2345 = vmatpush.msra.mxu0 %v2156
    %2346 = vmatpush.msra.mxu0 %v2152
    %2347 = vmatpush.msra.mxu0 %v2148
    %2348 = vmatpush.msra.mxu0 %v2144
    %2349 = vmatpush.msra.mxu0 %v2140
    %2350 = vmatmul.f32.gmra.mxu0 %v2129
    %v2351 = vpop.f32.mrf.mxu0
    %v2352 = vadd.f32 %v2206, %v2351
    %2353 = vmatmul.f32.gmra.mxu0 %v2130
    %v2354 = vpop.f32.mrf.mxu0
    %v2355 = vadd.f32 %v2206, %v2354
    %2356 = vmatmul.f32.gmra.mxu0 %v2131
    %v2357 = vpop.f32.mrf.mxu0
    %v2358 = vadd.f32 %v2206, %v2357
    %2359 = vmatmul.f32.gmra.mxu0 %v2132
    %v2360 = vpop.f32.mrf.mxu0
    %v2361 = vadd.f32 %v2206, %v2360
    %2362 = vmatmul.f32.gmra.mxu0 %v2133
    %v2363 = vpop.f32.mrf.mxu0
    %v2364 = vadd.f32 %v2206, %v2363
    %2365 = vmatmul.f32.gmra.mxu0 %v2134
    %v2366 = vpop.f32.mrf.mxu0
    %v2367 = vadd.f32 %v2206, %v2366
    %2368 = vmatmul.f32.gmra.mxu0 %v2135
    %v2369 = vpop.f32.mrf.mxu0
    %v2370 = vadd.f32 %v2206, %v2369
    %2371 = vmatmul.f32.gmra.mxu0 %v2136
    %v2372 = vpop.f32.mrf.mxu0
    %v2373 = vadd.f32 %v2206, %v2372
    %2374 = vdwg.mxu0
    %2375 = vst [vmem:[#allocation2] sm:$0xff] %v2229
    %2376 = vst [vmem:[#allocation2 + $0x8] sm:$0xff] %v2270
    %2377 = vst [vmem:[#allocation2 + $0x10] sm:$0xff] %v2311
    %2378 = vst [vmem:[#allocation2 + $0x18] sm:$0xff] %v2352
    %2379 = vst [vmem:[#allocation2 + $0x20] sm:$0xff] %v2232
    %2380 = vst [vmem:[#allocation2 + $0x28] sm:$0xff] %v2273
    %2381 = vst [vmem:[#allocation2 + $0x30] sm:$0xff] %v2314
    %2382 = vst [vmem:[#allocation2 + $0x38] sm:$0xff] %v2355
    %2383 = vst [vmem:[#allocation2 + $0x40] sm:$0xff] %v2235
    %2384 = vst [vmem:[#allocation2 + $0x48] sm:$0xff] %v2276
    %2385 = vst [vmem:[#allocation2 + $0x50] sm:$0xff] %v2317
    %2386 = vst [vmem:[#allocation2 + $0x58] sm:$0xff] %v2358
    %2387 = vst [vmem:[#allocation2 + $0x60] sm:$0xff] %v2238
    %2388 = vst [vmem:[#allocation2 + $0x68] sm:$0xff] %v2279
    %2389 = vst [vmem:[#allocation2 + $0x70] sm:$0xff] %v2320
    %2390 = vst [vmem:[#allocation2 + $0x78] sm:$0xff] %v2361
    %2391 = vst [vmem:[#allocation2 + $0x80] sm:$0xff] %v2241
    %2392 = vst [vmem:[#allocation2 + $0x88] sm:$0xff] %v2282
    %2393 = vst [vmem:[#allocation2 + $0x90] sm:$0xff] %v2323
    %2394 = vst [vmem:[#allocation2 + $0x98] sm:$0xff] %v2364
    %2395 = vst [vmem:[#allocation2 + $0xa0] sm:$0xff] %v2244
    %2396 = vst [vmem:[#allocation2 + $0xa8] sm:$0xff] %v2285
    %2397 = vst [vmem:[#allocation2 + $0xb0] sm:$0xff] %v2326
    %2398 = vst [vmem:[#allocation2 + $0xb8] sm:$0xff] %v2367
    %2399 = vst [vmem:[#allocation2 + $0xc0] sm:$0xff] %v2247
    %2400 = vst [vmem:[#allocation2 + $0xc8] sm:$0xff] %v2288
    %2401 = vst [vmem:[#allocation2 + $0xd0] sm:$0xff] %v2329
    %2402 = vst [vmem:[#allocation2 + $0xd8] sm:$0xff] %v2370
    %2403 = vst [vmem:[#allocation2 + $0xe0] sm:$0xff] %v2250
    %2404 = vst [vmem:[#allocation2 + $0xe8] sm:$0xff] %v2291
    %2405 = vst [vmem:[#allocation2 + $0xf0] sm:$0xff] %v2332
    %2406 = vst [vmem:[#allocation2 + $0xf8] sm:$0xff] %v2373
    %v2407 = vld [vmem:[#allocation2] sm:$0xff]
    %v2408 = vld [vmem:[#allocation2 + $0x8] sm:$0xff]
    %v2409 = vld [vmem:[#allocation2 + $0x10] sm:$0xff]
    %v2410 = vld [vmem:[#allocation2 + $0x18] sm:$0xff]
    %v2411 = vld [vmem:[#allocation13] sm:$0xff]
    %v2412 = vld [vmem:[#allocation13 + $0x8] sm:$0xff]
    %v2413 = vld [vmem:[#allocation13 + $0x10] sm:$0xff]
    %v2414 = vld [vmem:[#allocation13 + $0x18] sm:$0xff]
    %v2415 = vld [vmem:[#allocation13 + $0x20] sm:$0xff]
    %v2416 = vld [vmem:[#allocation13 + $0x28] sm:$0xff]
    %v2417 = vld [vmem:[#allocation13 + $0x30] sm:$0xff]
    %v2418 = vld [vmem:[#allocation13 + $0x38] sm:$0xff]
    %v2419 = vld [vmem:[#allocation13 + $0x40] sm:$0xff]
    %v2420 = vld [vmem:[#allocation13 + $0x48] sm:$0xff]
    %v2421 = vld [vmem:[#allocation13 + $0x50] sm:$0xff]
    %v2422 = vld [vmem:[#allocation13 + $0x58] sm:$0xff]
    %v2423 = vld [vmem:[#allocation13 + $0x60] sm:$0xff]
    %v2424 = vld [vmem:[#allocation13 + $0x68] sm:$0xff]
    %v2425 = vld [vmem:[#allocation13 + $0x70] sm:$0xff]
    %v2426 = vld [vmem:[#allocation13 + $0x78] sm:$0xff]
    %v2427 = vld [vmem:[#allocation13 + $0x80] sm:$0xff]
    %v2428 = vld [vmem:[#allocation13 + $0x88] sm:$0xff]
    %v2429 = vld [vmem:[#allocation13 + $0x90] sm:$0xff]
    %v2430 = vld [vmem:[#allocation13 + $0x98] sm:$0xff]
    %v2431 = vld [vmem:[#allocation13 + $0xa0] sm:$0xff]
    %v2432 = vld [vmem:[#allocation13 + $0xa8] sm:$0xff]
    %v2433 = vld [vmem:[#allocation13 + $0xb0] sm:$0xff]
    %v2434 = vld [vmem:[#allocation13 + $0xb8] sm:$0xff]
    %v2435 = vld [vmem:[#allocation13 + $0xc0] sm:$0xff]
    %v2436 = vld [vmem:[#allocation13 + $0xc8] sm:$0xff]
    %v2437 = vld [vmem:[#allocation13 + $0xd0] sm:$0xff]
    %v2438 = vld [vmem:[#allocation13 + $0xd8] sm:$0xff]
    %v2439 = vld [vmem:[#allocation13 + $0xe0] sm:$0xff]
    %v2440 = vld [vmem:[#allocation13 + $0xe8] sm:$0xff]
    %v2441 = vld [vmem:[#allocation13 + $0xf0] sm:$0xff]
    %v2442 = vld [vmem:[#allocation13 + $0xf8] sm:$0xff]
    %v2443 = vld [vmem:[#allocation13 + $0x100] sm:$0xff]
    %v2444 = vld [vmem:[#allocation13 + $0x108] sm:$0xff]
    %v2445 = vld [vmem:[#allocation13 + $0x110] sm:$0xff]
    %v2446 = vld [vmem:[#allocation13 + $0x118] sm:$0xff]
    %v2447 = vld [vmem:[#allocation13 + $0x120] sm:$0xff]
    %v2448 = vld [vmem:[#allocation13 + $0x128] sm:$0xff]
    %v2449 = vld [vmem:[#allocation13 + $0x130] sm:$0xff]
    %v2450 = vld [vmem:[#allocation13 + $0x138] sm:$0xff]
    %v2451 = vld [vmem:[#allocation13 + $0x140] sm:$0xff]
    %v2452 = vld [vmem:[#allocation13 + $0x148] sm:$0xff]
    %v2453 = vld [vmem:[#allocation13 + $0x150] sm:$0xff]
    %v2454 = vld [vmem:[#allocation13 + $0x158] sm:$0xff]
    %v2455 = vld [vmem:[#allocation13 + $0x160] sm:$0xff]
    %v2456 = vld [vmem:[#allocation13 + $0x168] sm:$0xff]
    %v2457 = vld [vmem:[#allocation13 + $0x170] sm:$0xff]
    %v2458 = vld [vmem:[#allocation13 + $0x178] sm:$0xff]
    %v2459 = vld [vmem:[#allocation13 + $0x180] sm:$0xff]
    %v2460 = vld [vmem:[#allocation13 + $0x188] sm:$0xff]
    %v2461 = vld [vmem:[#allocation13 + $0x190] sm:$0xff]
    %v2462 = vld [vmem:[#allocation13 + $0x198] sm:$0xff]
    %v2463 = vld [vmem:[#allocation13 + $0x1a0] sm:$0xff]
    %v2464 = vld [vmem:[#allocation13 + $0x1a8] sm:$0xff]
    %v2465 = vld [vmem:[#allocation13 + $0x1b0] sm:$0xff]
    %v2466 = vld [vmem:[#allocation13 + $0x1b8] sm:$0xff]
    %v2467 = vld [vmem:[#allocation13 + $0x1c0] sm:$0xff]
    %v2468 = vld [vmem:[#allocation13 + $0x1c8] sm:$0xff]
    %v2469 = vld [vmem:[#allocation13 + $0x1d0] sm:$0xff]
    %v2470 = vld [vmem:[#allocation13 + $0x1d8] sm:$0xff]
    %v2471 = vld [vmem:[#allocation13 + $0x1e0] sm:$0xff]
    %v2472 = vld [vmem:[#allocation13 + $0x1e8] sm:$0xff]
    %v2473 = vld [vmem:[#allocation13 + $0x1f0] sm:$0xff]
    %v2474 = vld [vmem:[#allocation13 + $0x1f8] sm:$0xff]
    %2475 = vmatpush.msra.mxu0 %v2471
    %2476 = vmatpush.msra.mxu0 %v2467
    %2477 = vmatpush.msra.mxu0 %v2463
    %2478 = vmatpush.msra.mxu0 %v2459
    %2479 = vmatpush.msra.mxu0 %v2455
    %2480 = vmatpush.msra.mxu0 %v2451
    %2481 = vmatpush.msra.mxu0 %v2447
    %2482 = vmatpush.msra.mxu0 %v2443
    %2483 = vmatpush.msra.mxu0 %v2439
    %2484 = vmatpush.msra.mxu0 %v2435
    %2485 = vmatpush.msra.mxu0 %v2431
    %2486 = vmatpush.msra.mxu0 %v2427
    %2487 = vmatpush.msra.mxu0 %v2423
    %2488 = vmatpush.msra.mxu0 %v2419
    %2489 = vmatpush.msra.mxu0 %v2415
    %2490 = vmatpush.msra.mxu0 %v2411
    %2491 = vmatmul.f32.gmra.mxu0 0.0
    %v2492 = vpop.f32.mrf.mxu0
    %v2493 = vadd.f32 0.0, %v2492
    %2494 = vdwg.mxu0
    %2495 = vmatpush.msra.mxu0 %v2472
    %2496 = vmatpush.msra.mxu0 %v2468
    %2497 = vmatpush.msra.mxu0 %v2464
    %2498 = vmatpush.msra.mxu0 %v2460
    %2499 = vmatpush.msra.mxu0 %v2456
    %2500 = vmatpush.msra.mxu0 %v2452
    %2501 = vmatpush.msra.mxu0 %v2448
    %2502 = vmatpush.msra.mxu0 %v2444
    %2503 = vmatpush.msra.mxu0 %v2440
    %2504 = vmatpush.msra.mxu0 %v2436
    %2505 = vmatpush.msra.mxu0 %v2432
    %2506 = vmatpush.msra.mxu0 %v2428
    %2507 = vmatpush.msra.mxu0 %v2424
    %2508 = vmatpush.msra.mxu0 %v2420
    %2509 = vmatpush.msra.mxu0 %v2416
    %2510 = vmatpush.msra.mxu0 %v2412
    %2511 = vmatmul.f32.gmra.mxu0 0.0
    %v2512 = vpop.f32.mrf.mxu0
    %v2513 = vadd.f32 0.0, %v2512
    %2514 = vdwg.mxu0
    %2515 = vmatpush.msra.mxu0 %v2473
    %2516 = vmatpush.msra.mxu0 %v2469
    %2517 = vmatpush.msra.mxu0 %v2465
    %2518 = vmatpush.msra.mxu0 %v2461
    %2519 = vmatpush.msra.mxu0 %v2457
    %2520 = vmatpush.msra.mxu0 %v2453
    %2521 = vmatpush.msra.mxu0 %v2449
    %2522 = vmatpush.msra.mxu0 %v2445
    %2523 = vmatpush.msra.mxu0 %v2441
    %2524 = vmatpush.msra.mxu0 %v2437
    %2525 = vmatpush.msra.mxu0 %v2433
    %2526 = vmatpush.msra.mxu0 %v2429
    %2527 = vmatpush.msra.mxu0 %v2425
    %2528 = vmatpush.msra.mxu0 %v2421
    %2529 = vmatpush.msra.mxu0 %v2417
    %2530 = vmatpush.msra.mxu0 %v2413
    %2531 = vmatmul.f32.gmra.mxu0 0.0
    %v2532 = vpop.f32.mrf.mxu0
    %v2533 = vadd.f32 0.0, %v2532
    %2534 = vdwg.mxu0
    %2535 = vmatpush.msra.mxu0 %v2474
    %2536 = vmatpush.msra.mxu0 %v2470
    %2537 = vmatpush.msra.mxu0 %v2466
    %2538 = vmatpush.msra.mxu0 %v2462
    %2539 = vmatpush.msra.mxu0 %v2458
    %2540 = vmatpush.msra.mxu0 %v2454
    %2541 = vmatpush.msra.mxu0 %v2450
    %2542 = vmatpush.msra.mxu0 %v2446
    %2543 = vmatpush.msra.mxu0 %v2442
    %2544 = vmatpush.msra.mxu0 %v2438
    %2545 = vmatpush.msra.mxu0 %v2434
    %2546 = vmatpush.msra.mxu0 %v2430
    %2547 = vmatpush.msra.mxu0 %v2426
    %2548 = vmatpush.msra.mxu0 %v2422
    %2549 = vmatpush.msra.mxu0 %v2418
    %2550 = vmatpush.msra.mxu0 %v2414
    %2551 = vmatmul.f32.gmra.mxu0 0.0
    %v2552 = vpop.f32.mrf.mxu0
    %v2553 = vadd.f32 0.0, %v2552
    %2554 = vdwg.mxu0
    %v2555 = vadd.f32 %v2407, %v2493
    %v2556 = vadd.f32 %v2408, %v2513
    %v2557 = vadd.f32 %v2409, %v2533
    %v2558 = vadd.f32 %v2410, %v2553
    %v2559 = vxor.u32 %v2555, 2147483648
    %v2560 = vmul.f32 %v2559, 1.442695
    %v2561 = vpow.pop %v2560
    %v2562 = vadd.f32 %v2561, 1.0
    %v2563 = vrcp.pop %v2562
    %v2564 = vmul.f32 %v2562, %v2563
    %v2565 = vsub.f32 1.0, %v2564
    %v2566 = vmul.f32 %v2563, %v2565
    %v2567 = vadd.f32 %v2563, %v2566
    %vm2568 = vweird.f32 %v2562
    %vm2569 = vweird.f32 %v2563
    %vm2570 = vmor %vm2568, %vm2569
    %v2571 = vsel %vm2570, %v2563, %v2567
    %v2572 = vand.u32 2147483647, %v2562
    %vm2573 = vcmp.eq.f32.partialorder %v2572, 8.507059e+37
    %v2574 = vand.u32 %v2562, 2147483648
    %v2575 = vor.u32 1.1754944e-38, %v2574
    %v2576 = vsel %vm2573, %v2575, %v2571
    %v2577 = vmul.f32 1.0, %v2576
    %v2578 = vxor.u32 %v2556, 2147483648
    %v2579 = vmul.f32 %v2578, 1.442695
    %v2580 = vpow.pop %v2579
    %v2581 = vadd.f32 %v2580, 1.0
    %v2582 = vrcp.pop %v2581
    %v2583 = vmul.f32 %v2581, %v2582
    %v2584 = vsub.f32 1.0, %v2583
    %v2585 = vmul.f32 %v2582, %v2584
    %v2586 = vadd.f32 %v2582, %v2585
    %vm2587 = vweird.f32 %v2581
    %vm2588 = vweird.f32 %v2582
    %vm2589 = vmor %vm2587, %vm2588
    %v2590 = vsel %vm2589, %v2582, %v2586
    %v2591 = vand.u32 2147483647, %v2581
    %vm2592 = vcmp.eq.f32.partialorder %v2591, 8.507059e+37
    %v2593 = vand.u32 %v2581, 2147483648
    %v2594 = vor.u32 1.1754944e-38, %v2593
    %v2595 = vsel %vm2592, %v2594, %v2590
    %v2596 = vmul.f32 1.0, %v2595
    %v2597 = vtanh.pop %v2557
    %v2598 = vxor.u32 %v2558, 2147483648
    %v2599 = vmul.f32 %v2598, 1.442695
    %v2600 = vpow.pop %v2599
    %v2601 = vadd.f32 %v2600, 1.0
    %v2602 = vrcp.pop %v2601
    %v2603 = vmul.f32 %v2601, %v2602
    %v2604 = vsub.f32 1.0, %v2603
    %v2605 = vmul.f32 %v2602, %v2604
    %v2606 = vadd.f32 %v2602, %v2605
    %vm2607 = vweird.f32 %v2601
    %vm2608 = vweird.f32 %v2602
    %vm2609 = vmor %vm2607, %vm2608
    %v2610 = vsel %vm2609, %v2602, %v2606
    %v2611 = vand.u32 2147483647, %v2601
    %vm2612 = vcmp.eq.f32.partialorder %v2611, 8.507059e+37
    %v2613 = vand.u32 %v2601, 2147483648
    %v2614 = vor.u32 1.1754944e-38, %v2613
    %v2615 = vsel %vm2612, %v2614, %v2610
    %v2616 = vmul.f32 1.0, %v2615
    %v2617 = vmul.f32 %v2596, 0.0
    %v2618 = vmul.f32 %v2577, %v2597
    %v2619 = vadd.f32 %v2617, %v2618
    %v2620 = vtanh.pop %v2619
    %v2621 = vmul.f32 %v2616, %v2620
    %v2622 = vld [vmem:[%s603] sm:$0xff]
    %v2623 = vld [vmem:[%s603 + $0x8] sm:$0xff]
    %v2624 = vld [vmem:[%s603 + $0x10] sm:$0xff]
    %v2625 = vld [vmem:[%s603 + $0x18] sm:$0xff]
    %2626 = vmatpush.msra.mxu0 %v2471
    %2627 = vmatpush.msra.mxu0 %v2467
    %2628 = vmatpush.msra.mxu0 %v2463
    %2629 = vmatpush.msra.mxu0 %v2459
    %2630 = vmatpush.msra.mxu0 %v2455
    %2631 = vmatpush.msra.mxu0 %v2451
    %2632 = vmatpush.msra.mxu0 %v2447
    %2633 = vmatpush.msra.mxu0 %v2443
    %2634 = vmatpush.msra.mxu0 %v2439
    %2635 = vmatpush.msra.mxu0 %v2435
    %2636 = vmatpush.msra.mxu0 %v2431
    %2637 = vmatpush.msra.mxu0 %v2427
    %2638 = vmatpush.msra.mxu0 %v2423
    %2639 = vmatpush.msra.mxu0 %v2419
    %2640 = vmatpush.msra.mxu0 %v2415
    %2641 = vmatpush.msra.mxu0 %v2411
    %2642 = vmatmul.f32.gmra.mxu0 %v2621
    %v2643 = vpop.f32.mrf.mxu0
    %v2644 = vadd.f32 0.0, %v2643
    %2645 = vdwg.mxu0
    %2646 = vmatpush.msra.mxu0 %v2472
    %2647 = vmatpush.msra.mxu0 %v2468
    %2648 = vmatpush.msra.mxu0 %v2464
    %2649 = vmatpush.msra.mxu0 %v2460
    %2650 = vmatpush.msra.mxu0 %v2456
    %2651 = vmatpush.msra.mxu0 %v2452
    %2652 = vmatpush.msra.mxu0 %v2448
    %2653 = vmatpush.msra.mxu0 %v2444
    %2654 = vmatpush.msra.mxu0 %v2440
    %2655 = vmatpush.msra.mxu0 %v2436
    %2656 = vmatpush.msra.mxu0 %v2432
    %2657 = vmatpush.msra.mxu0 %v2428
    %2658 = vmatpush.msra.mxu0 %v2424
    %2659 = vmatpush.msra.mxu0 %v2420
    %2660 = vmatpush.msra.mxu0 %v2416
    %2661 = vmatpush.msra.mxu0 %v2412
    %2662 = vmatmul.f32.gmra.mxu0 %v2621
    %v2663 = vpop.f32.mrf.mxu0
    %v2664 = vadd.f32 0.0, %v2663
    %2665 = vdwg.mxu0
    %2666 = vmatpush.msra.mxu0 %v2473
    %2667 = vmatpush.msra.mxu0 %v2469
    %2668 = vmatpush.msra.mxu0 %v2465
    %2669 = vmatpush.msra.mxu0 %v2461
    %2670 = vmatpush.msra.mxu0 %v2457
    %2671 = vmatpush.msra.mxu0 %v2453
    %2672 = vmatpush.msra.mxu0 %v2449
    %2673 = vmatpush.msra.mxu0 %v2445
    %2674 = vmatpush.msra.mxu0 %v2441
    %2675 = vmatpush.msra.mxu0 %v2437
    %2676 = vmatpush.msra.mxu0 %v2433
    %2677 = vmatpush.msra.mxu0 %v2429
    %2678 = vmatpush.msra.mxu0 %v2425
    %2679 = vmatpush.msra.mxu0 %v2421
    %2680 = vmatpush.msra.mxu0 %v2417
    %2681 = vmatpush.msra.mxu0 %v2413
    %2682 = vmatmul.f32.gmra.mxu0 %v2621
    %v2683 = vpop.f32.mrf.mxu0
    %v2684 = vadd.f32 0.0, %v2683
    %2685 = vdwg.mxu0
    %2686 = vmatpush.msra.mxu0 %v2474
    %2687 = vmatpush.msra.mxu0 %v2470
    %2688 = vmatpush.msra.mxu0 %v2466
    %2689 = vmatpush.msra.mxu0 %v2462
    %2690 = vmatpush.msra.mxu0 %v2458
    %2691 = vmatpush.msra.mxu0 %v2454
    %2692 = vmatpush.msra.mxu0 %v2450
    %2693 = vmatpush.msra.mxu0 %v2446
    %2694 = vmatpush.msra.mxu0 %v2442
    %2695 = vmatpush.msra.mxu0 %v2438
    %2696 = vmatpush.msra.mxu0 %v2434
    %2697 = vmatpush.msra.mxu0 %v2430
    %2698 = vmatpush.msra.mxu0 %v2426
    %2699 = vmatpush.msra.mxu0 %v2422
    %2700 = vmatpush.msra.mxu0 %v2418
    %2701 = vmatpush.msra.mxu0 %v2414
    %2702 = vmatmul.f32.gmra.mxu0 %v2621
    %v2703 = vpop.f32.mrf.mxu0
    %v2704 = vadd.f32 0.0, %v2703
    %2705 = vdwg.mxu0
    %v2706 = vadd.f32 %v2622, %v2644
    %v2707 = vadd.f32 %v2623, %v2664
    %v2708 = vadd.f32 %v2624, %v2684
    %v2709 = vadd.f32 %v2625, %v2704
    %v2710 = vxor.u32 %v2706, 2147483648
    %v2711 = vmul.f32 %v2710, 1.442695
    %v2712 = vpow.pop %v2711
    %v2713 = vadd.f32 %v2712, 1.0
    %v2714 = vrcp.pop %v2713
    %v2715 = vmul.f32 %v2713, %v2714
    %v2716 = vsub.f32 1.0, %v2715
    %v2717 = vmul.f32 %v2714, %v2716
    %v2718 = vadd.f32 %v2714, %v2717
    %vm2719 = vweird.f32 %v2713
    %vm2720 = vweird.f32 %v2714
    %vm2721 = vmor %vm2719, %vm2720
    %v2722 = vsel %vm2721, %v2714, %v2718
    %v2723 = vand.u32 2147483647, %v2713
    %vm2724 = vcmp.eq.f32.partialorder %v2723, 8.507059e+37
    %v2725 = vand.u32 %v2713, 2147483648
    %v2726 = vor.u32 1.1754944e-38, %v2725
    %v2727 = vsel %vm2724, %v2726, %v2722
    %v2728 = vmul.f32 1.0, %v2727
    %v2729 = vxor.u32 %v2707, 2147483648
    %v2730 = vmul.f32 %v2729, 1.442695
    %v2731 = vpow.pop %v2730
    %v2732 = vadd.f32 %v2731, 1.0
    %v2733 = vrcp.pop %v2732
    %v2734 = vmul.f32 %v2732, %v2733
    %v2735 = vsub.f32 1.0, %v2734
    %v2736 = vmul.f32 %v2733, %v2735
    %v2737 = vadd.f32 %v2733, %v2736
    %vm2738 = vweird.f32 %v2732
    %vm2739 = vweird.f32 %v2733
    %vm2740 = vmor %vm2738, %vm2739
    %v2741 = vsel %vm2740, %v2733, %v2737
    %v2742 = vand.u32 2147483647, %v2732
    %vm2743 = vcmp.eq.f32.partialorder %v2742, 8.507059e+37
    %v2744 = vand.u32 %v2732, 2147483648
    %v2745 = vor.u32 1.1754944e-38, %v2744
    %v2746 = vsel %vm2743, %v2745, %v2741
    %v2747 = vmul.f32 1.0, %v2746
    %v2748 = vtanh.pop %v2708
    %v2749 = vxor.u32 %v2709, 2147483648
    %v2750 = vmul.f32 %v2749, 1.442695
    %v2751 = vpow.pop %v2750
    %v2752 = vadd.f32 %v2751, 1.0
    %v2753 = vrcp.pop %v2752
    %v2754 = vmul.f32 %v2752, %v2753
    %v2755 = vsub.f32 1.0, %v2754
    %v2756 = vmul.f32 %v2753, %v2755
    %v2757 = vadd.f32 %v2753, %v2756
    %vm2758 = vweird.f32 %v2752
    %vm2759 = vweird.f32 %v2753
    %vm2760 = vmor %vm2758, %vm2759
    %v2761 = vsel %vm2760, %v2753, %v2757
    %v2762 = vand.u32 2147483647, %v2752
    %vm2763 = vcmp.eq.f32.partialorder %v2762, 8.507059e+37
    %v2764 = vand.u32 %v2752, 2147483648
    %v2765 = vor.u32 1.1754944e-38, %v2764
    %v2766 = vsel %vm2763, %v2765, %v2761
    %v2767 = vmul.f32 1.0, %v2766
    %v2768 = vmul.f32 %v2747, %v2619
    %v2769 = vmul.f32 %v2728, %v2748
    %v2770 = vadd.f32 %v2768, %v2769
    %v2771 = vtanh.pop %v2770
    %v2772 = vmul.f32 %v2767, %v2771
    %v2773 = vld [vmem:[%s821] sm:$0xff]
    %v2774 = vld [vmem:[%s821 + $0x8] sm:$0xff]
    %v2775 = vld [vmem:[%s821 + $0x10] sm:$0xff]
    %v2776 = vld [vmem:[%s821 + $0x18] sm:$0xff]
    %2777 = vmatpush.msra.mxu0 %v2471
    %2778 = vmatpush.msra.mxu0 %v2467
    %2779 = vmatpush.msra.mxu0 %v2463
    %2780 = vmatpush.msra.mxu0 %v2459
    %2781 = vmatpush.msra.mxu0 %v2455
    %2782 = vmatpush.msra.mxu0 %v2451
    %2783 = vmatpush.msra.mxu0 %v2447
    %2784 = vmatpush.msra.mxu0 %v2443
    %2785 = vmatpush.msra.mxu0 %v2439
    %2786 = vmatpush.msra.mxu0 %v2435
    %2787 = vmatpush.msra.mxu0 %v2431
    %2788 = vmatpush.msra.mxu0 %v2427
    %2789 = vmatpush.msra.mxu0 %v2423
    %2790 = vmatpush.msra.mxu0 %v2419
    %2791 = vmatpush.msra.mxu0 %v2415
    %2792 = vmatpush.msra.mxu0 %v2411
    %2793 = vmatmul.f32.gmra.mxu0 %v2772
    %v2794 = vpop.f32.mrf.mxu0
    %v2795 = vadd.f32 0.0, %v2794
    %2796 = vdwg.mxu0
    %2797 = vmatpush.msra.mxu0 %v2472
    %2798 = vmatpush.msra.mxu0 %v2468
    %2799 = vmatpush.msra.mxu0 %v2464
    %2800 = vmatpush.msra.mxu0 %v2460
    %2801 = vmatpush.msra.mxu0 %v2456
    %2802 = vmatpush.msra.mxu0 %v2452
    %2803 = vmatpush.msra.mxu0 %v2448
    %2804 = vmatpush.msra.mxu0 %v2444
    %2805 = vmatpush.msra.mxu0 %v2440
    %2806 = vmatpush.msra.mxu0 %v2436
    %2807 = vmatpush.msra.mxu0 %v2432
    %2808 = vmatpush.msra.mxu0 %v2428
    %2809 = vmatpush.msra.mxu0 %v2424
    %2810 = vmatpush.msra.mxu0 %v2420
    %2811 = vmatpush.msra.mxu0 %v2416
    %2812 = vmatpush.msra.mxu0 %v2412
    %2813 = vmatmul.f32.gmra.mxu0 %v2772
    %v2814 = vpop.f32.mrf.mxu0
    %v2815 = vadd.f32 0.0, %v2814
    %2816 = vdwg.mxu0
    %2817 = vmatpush.msra.mxu0 %v2473
    %2818 = vmatpush.msra.mxu0 %v2469
    %2819 = vmatpush.msra.mxu0 %v2465
    %2820 = vmatpush.msra.mxu0 %v2461
    %2821 = vmatpush.msra.mxu0 %v2457
    %2822 = vmatpush.msra.mxu0 %v2453
    %2823 = vmatpush.msra.mxu0 %v2449
    %2824 = vmatpush.msra.mxu0 %v2445
    %2825 = vmatpush.msra.mxu0 %v2441
    %2826 = vmatpush.msra.mxu0 %v2437
    %2827 = vmatpush.msra.mxu0 %v2433
    %2828 = vmatpush.msra.mxu0 %v2429
    %2829 = vmatpush.msra.mxu0 %v2425
    %2830 = vmatpush.msra.mxu0 %v2421
    %2831 = vmatpush.msra.mxu0 %v2417
    %2832 = vmatpush.msra.mxu0 %v2413
    %2833 = vmatmul.f32.gmra.mxu0 %v2772
    %v2834 = vpop.f32.mrf.mxu0
    %v2835 = vadd.f32 0.0, %v2834
    %2836 = vdwg.mxu0
    %2837 = vmatpush.msra.mxu0 %v2474
    %2838 = vmatpush.msra.mxu0 %v2470
    %2839 = vmatpush.msra.mxu0 %v2466
    %2840 = vmatpush.msra.mxu0 %v2462
    %2841 = vmatpush.msra.mxu0 %v2458
    %2842 = vmatpush.msra.mxu0 %v2454
    %2843 = vmatpush.msra.mxu0 %v2450
    %2844 = vmatpush.msra.mxu0 %v2446
    %2845 = vmatpush.msra.mxu0 %v2442
    %2846 = vmatpush.msra.mxu0 %v2438
    %2847 = vmatpush.msra.mxu0 %v2434
    %2848 = vmatpush.msra.mxu0 %v2430
    %2849 = vmatpush.msra.mxu0 %v2426
    %2850 = vmatpush.msra.mxu0 %v2422
    %2851 = vmatpush.msra.mxu0 %v2418
    %2852 = vmatpush.msra.mxu0 %v2414
    %2853 = vmatmul.f32.gmra.mxu0 %v2772
    %v2854 = vpop.f32.mrf.mxu0
    %v2855 = vadd.f32 0.0, %v2854
    %2856 = vdwg.mxu0
    %v2857 = vadd.f32 %v2773, %v2795
    %v2858 = vadd.f32 %v2774, %v2815
    %v2859 = vadd.f32 %v2775, %v2835
    %v2860 = vadd.f32 %v2776, %v2855
    %v2861 = vxor.u32 %v2857, 2147483648
    %v2862 = vmul.f32 %v2861, 1.442695
    %v2863 = vpow.pop %v2862
    %v2864 = vadd.f32 %v2863, 1.0
    %v2865 = vrcp.pop %v2864
    %v2866 = vmul.f32 %v2864, %v2865
    %v2867 = vsub.f32 1.0, %v2866
    %v2868 = vmul.f32 %v2865, %v2867
    %v2869 = vadd.f32 %v2865, %v2868
    %vm2870 = vweird.f32 %v2864
    %vm2871 = vweird.f32 %v2865
    %vm2872 = vmor %vm2870, %vm2871
    %v2873 = vsel %vm2872, %v2865, %v2869
    %v2874 = vand.u32 2147483647, %v2864
    %vm2875 = vcmp.eq.f32.partialorder %v2874, 8.507059e+37
    %v2876 = vand.u32 %v2864, 2147483648
    %v2877 = vor.u32 1.1754944e-38, %v2876
    %v2878 = vsel %vm2875, %v2877, %v2873
    %v2879 = vmul.f32 1.0, %v2878
    %v2880 = vxor.u32 %v2858, 2147483648
    %v2881 = vmul.f32 %v2880, 1.442695
    %v2882 = vpow.pop %v2881
    %v2883 = vadd.f32 %v2882, 1.0
    %v2884 = vrcp.pop %v2883
    %v2885 = vmul.f32 %v2883, %v2884
    %v2886 = vsub.f32 1.0, %v2885
    %v2887 = vmul.f32 %v2884, %v2886
    %v2888 = vadd.f32 %v2884, %v2887
    %vm2889 = vweird.f32 %v2883
    %vm2890 = vweird.f32 %v2884
    %vm2891 = vmor %vm2889, %vm2890
    %v2892 = vsel %vm2891, %v2884, %v2888
    %v2893 = vand.u32 2147483647, %v2883
    %vm2894 = vcmp.eq.f32.partialorder %v2893, 8.507059e+37
    %v2895 = vand.u32 %v2883, 2147483648
    %v2896 = vor.u32 1.1754944e-38, %v2895
    %v2897 = vsel %vm2894, %v2896, %v2892
    %v2898 = vmul.f32 1.0, %v2897
    %v2899 = vtanh.pop %v2859
    %v2900 = vxor.u32 %v2860, 2147483648
    %v2901 = vmul.f32 %v2900, 1.442695
    %v2902 = vpow.pop %v2901
    %v2903 = vadd.f32 %v2902, 1.0
    %v2904 = vrcp.pop %v2903
    %v2905 = vmul.f32 %v2903, %v2904
    %v2906 = vsub.f32 1.0, %v2905
    %v2907 = vmul.f32 %v2904, %v2906
    %v2908 = vadd.f32 %v2904, %v2907
    %vm2909 = vweird.f32 %v2903
    %vm2910 = vweird.f32 %v2904
    %vm2911 = vmor %vm2909, %vm2910
    %v2912 = vsel %vm2911, %v2904, %v2908
    %v2913 = vand.u32 2147483647, %v2903
    %vm2914 = vcmp.eq.f32.partialorder %v2913, 8.507059e+37
    %v2915 = vand.u32 %v2903, 2147483648
    %v2916 = vor.u32 1.1754944e-38, %v2915
    %v2917 = vsel %vm2914, %v2916, %v2912
    %v2918 = vmul.f32 1.0, %v2917
    %v2919 = vmul.f32 %v2898, %v2770
    %v2920 = vmul.f32 %v2879, %v2899
    %v2921 = vadd.f32 %v2919, %v2920
    %v2922 = vtanh.pop %v2921
    %v2923 = vmul.f32 %v2918, %v2922
    %v2924 = vld [vmem:[%s1039] sm:$0xff]
    %v2925 = vld [vmem:[%s1039 + $0x8] sm:$0xff]
    %v2926 = vld [vmem:[%s1039 + $0x10] sm:$0xff]
    %v2927 = vld [vmem:[%s1039 + $0x18] sm:$0xff]
    %2928 = vmatpush.msra.mxu0 %v2471
    %2929 = vmatpush.msra.mxu0 %v2467
    %2930 = vmatpush.msra.mxu0 %v2463
    %2931 = vmatpush.msra.mxu0 %v2459
    %2932 = vmatpush.msra.mxu0 %v2455
    %2933 = vmatpush.msra.mxu0 %v2451
    %2934 = vmatpush.msra.mxu0 %v2447
    %2935 = vmatpush.msra.mxu0 %v2443
    %2936 = vmatpush.msra.mxu0 %v2439
    %2937 = vmatpush.msra.mxu0 %v2435
    %2938 = vmatpush.msra.mxu0 %v2431
    %2939 = vmatpush.msra.mxu0 %v2427
    %2940 = vmatpush.msra.mxu0 %v2423
    %2941 = vmatpush.msra.mxu0 %v2419
    %2942 = vmatpush.msra.mxu0 %v2415
    %2943 = vmatpush.msra.mxu0 %v2411
    %2944 = vmatmul.f32.gmra.mxu0 %v2923
    %v2945 = vpop.f32.mrf.mxu0
    %v2946 = vadd.f32 0.0, %v2945
    %2947 = vdwg.mxu0
    %2948 = vmatpush.msra.mxu0 %v2472
    %2949 = vmatpush.msra.mxu0 %v2468
    %2950 = vmatpush.msra.mxu0 %v2464
    %2951 = vmatpush.msra.mxu0 %v2460
    %2952 = vmatpush.msra.mxu0 %v2456
    %2953 = vmatpush.msra.mxu0 %v2452
    %2954 = vmatpush.msra.mxu0 %v2448
    %2955 = vmatpush.msra.mxu0 %v2444
    %2956 = vmatpush.msra.mxu0 %v2440
    %2957 = vmatpush.msra.mxu0 %v2436
    %2958 = vmatpush.msra.mxu0 %v2432
    %2959 = vmatpush.msra.mxu0 %v2428
    %2960 = vmatpush.msra.mxu0 %v2424
    %2961 = vmatpush.msra.mxu0 %v2420
    %2962 = vmatpush.msra.mxu0 %v2416
    %2963 = vmatpush.msra.mxu0 %v2412
    %2964 = vmatmul.f32.gmra.mxu0 %v2923
    %v2965 = vpop.f32.mrf.mxu0
    %v2966 = vadd.f32 0.0, %v2965
    %2967 = vdwg.mxu0
    %2968 = vmatpush.msra.mxu0 %v2473
    %2969 = vmatpush.msra.mxu0 %v2469
    %2970 = vmatpush.msra.mxu0 %v2465
    %2971 = vmatpush.msra.mxu0 %v2461
    %2972 = vmatpush.msra.mxu0 %v2457
    %2973 = vmatpush.msra.mxu0 %v2453
    %2974 = vmatpush.msra.mxu0 %v2449
    %2975 = vmatpush.msra.mxu0 %v2445
    %2976 = vmatpush.msra.mxu0 %v2441
    %2977 = vmatpush.msra.mxu0 %v2437
    %2978 = vmatpush.msra.mxu0 %v2433
    %2979 = vmatpush.msra.mxu0 %v2429
    %2980 = vmatpush.msra.mxu0 %v2425
    %2981 = vmatpush.msra.mxu0 %v2421
    %2982 = vmatpush.msra.mxu0 %v2417
    %2983 = vmatpush.msra.mxu0 %v2413
    %2984 = vmatmul.f32.gmra.mxu0 %v2923
    %v2985 = vpop.f32.mrf.mxu0
    %v2986 = vadd.f32 0.0, %v2985
    %2987 = vdwg.mxu0
    %2988 = vmatpush.msra.mxu0 %v2474
    %2989 = vmatpush.msra.mxu0 %v2470
    %2990 = vmatpush.msra.mxu0 %v2466
    %2991 = vmatpush.msra.mxu0 %v2462
    %2992 = vmatpush.msra.mxu0 %v2458
    %2993 = vmatpush.msra.mxu0 %v2454
    %2994 = vmatpush.msra.mxu0 %v2450
    %2995 = vmatpush.msra.mxu0 %v2446
    %2996 = vmatpush.msra.mxu0 %v2442
    %2997 = vmatpush.msra.mxu0 %v2438
    %2998 = vmatpush.msra.mxu0 %v2434
    %2999 = vmatpush.msra.mxu0 %v2430
    %3000 = vmatpush.msra.mxu0 %v2426
    %3001 = vmatpush.msra.mxu0 %v2422
    %3002 = vmatpush.msra.mxu0 %v2418
    %3003 = vmatpush.msra.mxu0 %v2414
    %3004 = vmatmul.f32.gmra.mxu0 %v2923
    %v3005 = vpop.f32.mrf.mxu0
    %v3006 = vadd.f32 0.0, %v3005
    %3007 = vdwg.mxu0
    %v3008 = vadd.f32 %v2924, %v2946
    %v3009 = vadd.f32 %v2925, %v2966
    %v3010 = vadd.f32 %v2926, %v2986
    %v3011 = vadd.f32 %v2927, %v3006
    %v3012 = vxor.u32 %v3008, 2147483648
    %v3013 = vmul.f32 %v3012, 1.442695
    %v3014 = vpow.pop %v3013
    %v3015 = vadd.f32 %v3014, 1.0
    %v3016 = vrcp.pop %v3015
    %v3017 = vmul.f32 %v3015, %v3016
    %v3018 = vsub.f32 1.0, %v3017
    %v3019 = vmul.f32 %v3016, %v3018
    %v3020 = vadd.f32 %v3016, %v3019
    %vm3021 = vweird.f32 %v3015
    %vm3022 = vweird.f32 %v3016
    %vm3023 = vmor %vm3021, %vm3022
    %v3024 = vsel %vm3023, %v3016, %v3020
    %v3025 = vand.u32 2147483647, %v3015
    %vm3026 = vcmp.eq.f32.partialorder %v3025, 8.507059e+37
    %v3027 = vand.u32 %v3015, 2147483648
    %v3028 = vor.u32 1.1754944e-38, %v3027
    %v3029 = vsel %vm3026, %v3028, %v3024
    %v3030 = vmul.f32 1.0, %v3029
    %v3031 = vxor.u32 %v3009, 2147483648
    %v3032 = vmul.f32 %v3031, 1.442695
    %v3033 = vpow.pop %v3032
    %v3034 = vadd.f32 %v3033, 1.0
    %v3035 = vrcp.pop %v3034
    %v3036 = vmul.f32 %v3034, %v3035
    %v3037 = vsub.f32 1.0, %v3036
    %v3038 = vmul.f32 %v3035, %v3037
    %v3039 = vadd.f32 %v3035, %v3038
    %vm3040 = vweird.f32 %v3034
    %vm3041 = vweird.f32 %v3035
    %vm3042 = vmor %vm3040, %vm3041
    %v3043 = vsel %vm3042, %v3035, %v3039
    %v3044 = vand.u32 2147483647, %v3034
    %vm3045 = vcmp.eq.f32.partialorder %v3044, 8.507059e+37
    %v3046 = vand.u32 %v3034, 2147483648
    %v3047 = vor.u32 1.1754944e-38, %v3046
    %v3048 = vsel %vm3045, %v3047, %v3043
    %v3049 = vmul.f32 1.0, %v3048
    %v3050 = vtanh.pop %v3010
    %v3051 = vxor.u32 %v3011, 2147483648
    %v3052 = vmul.f32 %v3051, 1.442695
    %v3053 = vpow.pop %v3052
    %v3054 = vadd.f32 %v3053, 1.0
    %v3055 = vrcp.pop %v3054
    %v3056 = vmul.f32 %v3054, %v3055
    %v3057 = vsub.f32 1.0, %v3056
    %v3058 = vmul.f32 %v3055, %v3057
    %v3059 = vadd.f32 %v3055, %v3058
    %vm3060 = vweird.f32 %v3054
    %vm3061 = vweird.f32 %v3055
    %vm3062 = vmor %vm3060, %vm3061
    %v3063 = vsel %vm3062, %v3055, %v3059
    %v3064 = vand.u32 2147483647, %v3054
    %vm3065 = vcmp.eq.f32.partialorder %v3064, 8.507059e+37
    %v3066 = vand.u32 %v3054, 2147483648
    %v3067 = vor.u32 1.1754944e-38, %v3066
    %v3068 = vsel %vm3065, %v3067, %v3063
    %v3069 = vmul.f32 1.0, %v3068
    %v3070 = vmul.f32 %v3049, %v2921
    %v3071 = vmul.f32 %v3030, %v3050
    %v3072 = vadd.f32 %v3070, %v3071
    %v3073 = vtanh.pop %v3072
    %v3074 = vmul.f32 %v3069, %v3073
    %v3075 = vld [vmem:[%s1257] sm:$0xff]
    %v3076 = vld [vmem:[%s1257 + $0x8] sm:$0xff]
    %v3077 = vld [vmem:[%s1257 + $0x10] sm:$0xff]
    %v3078 = vld [vmem:[%s1257 + $0x18] sm:$0xff]
    %3079 = vmatpush.msra.mxu0 %v2471
    %3080 = vmatpush.msra.mxu0 %v2467
    %3081 = vmatpush.msra.mxu0 %v2463
    %3082 = vmatpush.msra.mxu0 %v2459
    %3083 = vmatpush.msra.mxu0 %v2455
    %3084 = vmatpush.msra.mxu0 %v2451
    %3085 = vmatpush.msra.mxu0 %v2447
    %3086 = vmatpush.msra.mxu0 %v2443
    %3087 = vmatpush.msra.mxu0 %v2439
    %3088 = vmatpush.msra.mxu0 %v2435
    %3089 = vmatpush.msra.mxu0 %v2431
    %3090 = vmatpush.msra.mxu0 %v2427
    %3091 = vmatpush.msra.mxu0 %v2423
    %3092 = vmatpush.msra.mxu0 %v2419
    %3093 = vmatpush.msra.mxu0 %v2415
    %3094 = vmatpush.msra.mxu0 %v2411
    %3095 = vmatmul.f32.gmra.mxu0 %v3074
    %v3096 = vpop.f32.mrf.mxu0
    %v3097 = vadd.f32 0.0, %v3096
    %3098 = vdwg.mxu0
    %3099 = vmatpush.msra.mxu0 %v2472
    %3100 = vmatpush.msra.mxu0 %v2468
    %3101 = vmatpush.msra.mxu0 %v2464
    %3102 = vmatpush.msra.mxu0 %v2460
    %3103 = vmatpush.msra.mxu0 %v2456
    %3104 = vmatpush.msra.mxu0 %v2452
    %3105 = vmatpush.msra.mxu0 %v2448
    %3106 = vmatpush.msra.mxu0 %v2444
    %3107 = vmatpush.msra.mxu0 %v2440
    %3108 = vmatpush.msra.mxu0 %v2436
    %3109 = vmatpush.msra.mxu0 %v2432
    %3110 = vmatpush.msra.mxu0 %v2428
    %3111 = vmatpush.msra.mxu0 %v2424
    %3112 = vmatpush.msra.mxu0 %v2420
    %3113 = vmatpush.msra.mxu0 %v2416
    %3114 = vmatpush.msra.mxu0 %v2412
    %3115 = vmatmul.f32.gmra.mxu0 %v3074
    %v3116 = vpop.f32.mrf.mxu0
    %v3117 = vadd.f32 0.0, %v3116
    %3118 = vdwg.mxu0
    %3119 = vmatpush.msra.mxu0 %v2473
    %3120 = vmatpush.msra.mxu0 %v2469
    %3121 = vmatpush.msra.mxu0 %v2465
    %3122 = vmatpush.msra.mxu0 %v2461
    %3123 = vmatpush.msra.mxu0 %v2457
    %3124 = vmatpush.msra.mxu0 %v2453
    %3125 = vmatpush.msra.mxu0 %v2449
    %3126 = vmatpush.msra.mxu0 %v2445
    %3127 = vmatpush.msra.mxu0 %v2441
    %3128 = vmatpush.msra.mxu0 %v2437
    %3129 = vmatpush.msra.mxu0 %v2433
    %3130 = vmatpush.msra.mxu0 %v2429
    %3131 = vmatpush.msra.mxu0 %v2425
    %3132 = vmatpush.msra.mxu0 %v2421
    %3133 = vmatpush.msra.mxu0 %v2417
    %3134 = vmatpush.msra.mxu0 %v2413
    %3135 = vmatmul.f32.gmra.mxu0 %v3074
    %v3136 = vpop.f32.mrf.mxu0
    %v3137 = vadd.f32 0.0, %v3136
    %3138 = vdwg.mxu0
    %3139 = vmatpush.msra.mxu0 %v2474
    %3140 = vmatpush.msra.mxu0 %v2470
    %3141 = vmatpush.msra.mxu0 %v2466
    %3142 = vmatpush.msra.mxu0 %v2462
    %3143 = vmatpush.msra.mxu0 %v2458
    %3144 = vmatpush.msra.mxu0 %v2454
    %3145 = vmatpush.msra.mxu0 %v2450
    %3146 = vmatpush.msra.mxu0 %v2446
    %3147 = vmatpush.msra.mxu0 %v2442
    %3148 = vmatpush.msra.mxu0 %v2438
    %3149 = vmatpush.msra.mxu0 %v2434
    %3150 = vmatpush.msra.mxu0 %v2430
    %3151 = vmatpush.msra.mxu0 %v2426
    %3152 = vmatpush.msra.mxu0 %v2422
    %3153 = vmatpush.msra.mxu0 %v2418
    %3154 = vmatpush.msra.mxu0 %v2414
    %3155 = vmatmul.f32.gmra.mxu0 %v3074
    %v3156 = vpop.f32.mrf.mxu0
    %v3157 = vadd.f32 0.0, %v3156
    %3158 = vdwg.mxu0
    %v3159 = vadd.f32 %v3075, %v3097
    %v3160 = vadd.f32 %v3076, %v3117
    %v3161 = vadd.f32 %v3077, %v3137
    %v3162 = vadd.f32 %v3078, %v3157
    %v3163 = vxor.u32 %v3159, 2147483648
    %v3164 = vmul.f32 %v3163, 1.442695
    %v3165 = vpow.pop %v3164
    %v3166 = vadd.f32 %v3165, 1.0
    %v3167 = vrcp.pop %v3166
    %v3168 = vmul.f32 %v3166, %v3167
    %v3169 = vsub.f32 1.0, %v3168
    %v3170 = vmul.f32 %v3167, %v3169
    %v3171 = vadd.f32 %v3167, %v3170
    %vm3172 = vweird.f32 %v3166
    %vm3173 = vweird.f32 %v3167
    %vm3174 = vmor %vm3172, %vm3173
    %v3175 = vsel %vm3174, %v3167, %v3171
    %v3176 = vand.u32 2147483647, %v3166
    %vm3177 = vcmp.eq.f32.partialorder %v3176, 8.507059e+37
    %v3178 = vand.u32 %v3166, 2147483648
    %v3179 = vor.u32 1.1754944e-38, %v3178
    %v3180 = vsel %vm3177, %v3179, %v3175
    %v3181 = vmul.f32 1.0, %v3180
    %v3182 = vxor.u32 %v3160, 2147483648
    %v3183 = vmul.f32 %v3182, 1.442695
    %v3184 = vpow.pop %v3183
    %v3185 = vadd.f32 %v3184, 1.0
    %v3186 = vrcp.pop %v3185
    %v3187 = vmul.f32 %v3185, %v3186
    %v3188 = vsub.f32 1.0, %v3187
    %v3189 = vmul.f32 %v3186, %v3188
    %v3190 = vadd.f32 %v3186, %v3189
    %vm3191 = vweird.f32 %v3185
    %vm3192 = vweird.f32 %v3186
    %vm3193 = vmor %vm3191, %vm3192
    %v3194 = vsel %vm3193, %v3186, %v3190
    %v3195 = vand.u32 2147483647, %v3185
    %vm3196 = vcmp.eq.f32.partialorder %v3195, 8.507059e+37
    %v3197 = vand.u32 %v3185, 2147483648
    %v3198 = vor.u32 1.1754944e-38, %v3197
    %v3199 = vsel %vm3196, %v3198, %v3194
    %v3200 = vmul.f32 1.0, %v3199
    %v3201 = vtanh.pop %v3161
    %v3202 = vxor.u32 %v3162, 2147483648
    %v3203 = vmul.f32 %v3202, 1.442695
    %v3204 = vpow.pop %v3203
    %v3205 = vadd.f32 %v3204, 1.0
    %v3206 = vrcp.pop %v3205
    %v3207 = vmul.f32 %v3205, %v3206
    %v3208 = vsub.f32 1.0, %v3207
    %v3209 = vmul.f32 %v3206, %v3208
    %v3210 = vadd.f32 %v3206, %v3209
    %vm3211 = vweird.f32 %v3205
    %vm3212 = vweird.f32 %v3206
    %vm3213 = vmor %vm3211, %vm3212
    %v3214 = vsel %vm3213, %v3206, %v3210
    %v3215 = vand.u32 2147483647, %v3205
    %vm3216 = vcmp.eq.f32.partialorder %v3215, 8.507059e+37
    %v3217 = vand.u32 %v3205, 2147483648
    %v3218 = vor.u32 1.1754944e-38, %v3217
    %v3219 = vsel %vm3216, %v3218, %v3214
    %v3220 = vmul.f32 1.0, %v3219
    %v3221 = vmul.f32 %v3200, %v3072
    %v3222 = vmul.f32 %v3181, %v3201
    %v3223 = vadd.f32 %v3221, %v3222
    %v3224 = vtanh.pop %v3223
    %v3225 = vmul.f32 %v3220, %v3224
    %v3226 = vld [vmem:[%s1475] sm:$0xff]
    %v3227 = vld [vmem:[%s1475 + $0x8] sm:$0xff]
    %v3228 = vld [vmem:[%s1475 + $0x10] sm:$0xff]
    %v3229 = vld [vmem:[%s1475 + $0x18] sm:$0xff]
    %3230 = vmatpush.msra.mxu0 %v2471
    %3231 = vmatpush.msra.mxu0 %v2467
    %3232 = vmatpush.msra.mxu0 %v2463
    %3233 = vmatpush.msra.mxu0 %v2459
    %3234 = vmatpush.msra.mxu0 %v2455
    %3235 = vmatpush.msra.mxu0 %v2451
    %3236 = vmatpush.msra.mxu0 %v2447
    %3237 = vmatpush.msra.mxu0 %v2443
    %3238 = vmatpush.msra.mxu0 %v2439
    %3239 = vmatpush.msra.mxu0 %v2435
    %3240 = vmatpush.msra.mxu0 %v2431
    %3241 = vmatpush.msra.mxu0 %v2427
    %3242 = vmatpush.msra.mxu0 %v2423
    %3243 = vmatpush.msra.mxu0 %v2419
    %3244 = vmatpush.msra.mxu0 %v2415
    %3245 = vmatpush.msra.mxu0 %v2411
    %3246 = vmatmul.f32.gmra.mxu0 %v3225
    %v3247 = vpop.f32.mrf.mxu0
    %v3248 = vadd.f32 0.0, %v3247
    %3249 = vdwg.mxu0
    %3250 = vmatpush.msra.mxu0 %v2472
    %3251 = vmatpush.msra.mxu0 %v2468
    %3252 = vmatpush.msra.mxu0 %v2464
    %3253 = vmatpush.msra.mxu0 %v2460
    %3254 = vmatpush.msra.mxu0 %v2456
    %3255 = vmatpush.msra.mxu0 %v2452
    %3256 = vmatpush.msra.mxu0 %v2448
    %3257 = vmatpush.msra.mxu0 %v2444
    %3258 = vmatpush.msra.mxu0 %v2440
    %3259 = vmatpush.msra.mxu0 %v2436
    %3260 = vmatpush.msra.mxu0 %v2432
    %3261 = vmatpush.msra.mxu0 %v2428
    %3262 = vmatpush.msra.mxu0 %v2424
    %3263 = vmatpush.msra.mxu0 %v2420
    %3264 = vmatpush.msra.mxu0 %v2416
    %3265 = vmatpush.msra.mxu0 %v2412
    %3266 = vmatmul.f32.gmra.mxu0 %v3225
    %v3267 = vpop.f32.mrf.mxu0
    %v3268 = vadd.f32 0.0, %v3267
    %3269 = vdwg.mxu0
    %3270 = vmatpush.msra.mxu0 %v2473
    %3271 = vmatpush.msra.mxu0 %v2469
    %3272 = vmatpush.msra.mxu0 %v2465
    %3273 = vmatpush.msra.mxu0 %v2461
    %3274 = vmatpush.msra.mxu0 %v2457
    %3275 = vmatpush.msra.mxu0 %v2453
    %3276 = vmatpush.msra.mxu0 %v2449
    %3277 = vmatpush.msra.mxu0 %v2445
    %3278 = vmatpush.msra.mxu0 %v2441
    %3279 = vmatpush.msra.mxu0 %v2437
    %3280 = vmatpush.msra.mxu0 %v2433
    %3281 = vmatpush.msra.mxu0 %v2429
    %3282 = vmatpush.msra.mxu0 %v2425
    %3283 = vmatpush.msra.mxu0 %v2421
    %3284 = vmatpush.msra.mxu0 %v2417
    %3285 = vmatpush.msra.mxu0 %v2413
    %3286 = vmatmul.f32.gmra.mxu0 %v3225
    %v3287 = vpop.f32.mrf.mxu0
    %v3288 = vadd.f32 0.0, %v3287
    %3289 = vdwg.mxu0
    %3290 = vmatpush.msra.mxu0 %v2474
    %3291 = vmatpush.msra.mxu0 %v2470
    %3292 = vmatpush.msra.mxu0 %v2466
    %3293 = vmatpush.msra.mxu0 %v2462
    %3294 = vmatpush.msra.mxu0 %v2458
    %3295 = vmatpush.msra.mxu0 %v2454
    %3296 = vmatpush.msra.mxu0 %v2450
    %3297 = vmatpush.msra.mxu0 %v2446
    %3298 = vmatpush.msra.mxu0 %v2442
    %3299 = vmatpush.msra.mxu0 %v2438
    %3300 = vmatpush.msra.mxu0 %v2434
    %3301 = vmatpush.msra.mxu0 %v2430
    %3302 = vmatpush.msra.mxu0 %v2426
    %3303 = vmatpush.msra.mxu0 %v2422
    %3304 = vmatpush.msra.mxu0 %v2418
    %3305 = vmatpush.msra.mxu0 %v2414
    %3306 = vmatmul.f32.gmra.mxu0 %v3225
    %v3307 = vpop.f32.mrf.mxu0
    %v3308 = vadd.f32 0.0, %v3307
    %3309 = vdwg.mxu0
    %v3310 = vadd.f32 %v3226, %v3248
    %v3311 = vadd.f32 %v3227, %v3268
    %v3312 = vadd.f32 %v3228, %v3288
    %v3313 = vadd.f32 %v3229, %v3308
    %v3314 = vxor.u32 %v3310, 2147483648
    %v3315 = vmul.f32 %v3314, 1.442695
    %v3316 = vpow.pop %v3315
    %v3317 = vadd.f32 %v3316, 1.0
    %v3318 = vrcp.pop %v3317
    %v3319 = vmul.f32 %v3317, %v3318
    %v3320 = vsub.f32 1.0, %v3319
    %v3321 = vmul.f32 %v3318, %v3320
    %v3322 = vadd.f32 %v3318, %v3321
    %vm3323 = vweird.f32 %v3317
    %vm3324 = vweird.f32 %v3318
    %vm3325 = vmor %vm3323, %vm3324
    %v3326 = vsel %vm3325, %v3318, %v3322
    %v3327 = vand.u32 2147483647, %v3317
    %vm3328 = vcmp.eq.f32.partialorder %v3327, 8.507059e+37
    %v3329 = vand.u32 %v3317, 2147483648
    %v3330 = vor.u32 1.1754944e-38, %v3329
    %v3331 = vsel %vm3328, %v3330, %v3326
    %v3332 = vmul.f32 1.0, %v3331
    %v3333 = vxor.u32 %v3311, 2147483648
    %v3334 = vmul.f32 %v3333, 1.442695
    %v3335 = vpow.pop %v3334
    %v3336 = vadd.f32 %v3335, 1.0
    %v3337 = vrcp.pop %v3336
    %v3338 = vmul.f32 %v3336, %v3337
    %v3339 = vsub.f32 1.0, %v3338
    %v3340 = vmul.f32 %v3337, %v3339
    %v3341 = vadd.f32 %v3337, %v3340
    %vm3342 = vweird.f32 %v3336
    %vm3343 = vweird.f32 %v3337
    %vm3344 = vmor %vm3342, %vm3343
    %v3345 = vsel %vm3344, %v3337, %v3341
    %v3346 = vand.u32 2147483647, %v3336
    %vm3347 = vcmp.eq.f32.partialorder %v3346, 8.507059e+37
    %v3348 = vand.u32 %v3336, 2147483648
    %v3349 = vor.u32 1.1754944e-38, %v3348
    %v3350 = vsel %vm3347, %v3349, %v3345
    %v3351 = vmul.f32 1.0, %v3350
    %v3352 = vtanh.pop %v3312
    %v3353 = vxor.u32 %v3313, 2147483648
    %v3354 = vmul.f32 %v3353, 1.442695
    %v3355 = vpow.pop %v3354
    %v3356 = vadd.f32 %v3355, 1.0
    %v3357 = vrcp.pop %v3356
    %v3358 = vmul.f32 %v3356, %v3357
    %v3359 = vsub.f32 1.0, %v3358
    %v3360 = vmul.f32 %v3357, %v3359
    %v3361 = vadd.f32 %v3357, %v3360
    %vm3362 = vweird.f32 %v3356
    %vm3363 = vweird.f32 %v3357
    %vm3364 = vmor %vm3362, %vm3363
    %v3365 = vsel %vm3364, %v3357, %v3361
    %v3366 = vand.u32 2147483647, %v3356
    %vm3367 = vcmp.eq.f32.partialorder %v3366, 8.507059e+37
    %v3368 = vand.u32 %v3356, 2147483648
    %v3369 = vor.u32 1.1754944e-38, %v3368
    %v3370 = vsel %vm3367, %v3369, %v3365
    %v3371 = vmul.f32 1.0, %v3370
    %v3372 = vmul.f32 %v3351, %v3223
    %v3373 = vmul.f32 %v3332, %v3352
    %v3374 = vadd.f32 %v3372, %v3373
    %v3375 = vtanh.pop %v3374
    %v3376 = vmul.f32 %v3371, %v3375
    %v3377 = vld [vmem:[%s1693] sm:$0xff]
    %v3378 = vld [vmem:[%s1693 + $0x8] sm:$0xff]
    %v3379 = vld [vmem:[%s1693 + $0x10] sm:$0xff]
    %v3380 = vld [vmem:[%s1693 + $0x18] sm:$0xff]
    %3381 = vmatpush.msra.mxu0 %v2471
    %3382 = vmatpush.msra.mxu0 %v2467
    %3383 = vmatpush.msra.mxu0 %v2463
    %3384 = vmatpush.msra.mxu0 %v2459
    %3385 = vmatpush.msra.mxu0 %v2455
    %3386 = vmatpush.msra.mxu0 %v2451
    %3387 = vmatpush.msra.mxu0 %v2447
    %3388 = vmatpush.msra.mxu0 %v2443
    %3389 = vmatpush.msra.mxu0 %v2439
    %3390 = vmatpush.msra.mxu0 %v2435
    %3391 = vmatpush.msra.mxu0 %v2431
    %3392 = vmatpush.msra.mxu0 %v2427
    %3393 = vmatpush.msra.mxu0 %v2423
    %3394 = vmatpush.msra.mxu0 %v2419
    %3395 = vmatpush.msra.mxu0 %v2415
    %3396 = vmatpush.msra.mxu0 %v2411
    %3397 = vmatmul.f32.gmra.mxu0 %v3376
    %v3398 = vpop.f32.mrf.mxu0
    %v3399 = vadd.f32 0.0, %v3398
    %3400 = vdwg.mxu0
    %3401 = vmatpush.msra.mxu0 %v2472
    %3402 = vmatpush.msra.mxu0 %v2468
    %3403 = vmatpush.msra.mxu0 %v2464
    %3404 = vmatpush.msra.mxu0 %v2460
    %3405 = vmatpush.msra.mxu0 %v2456
    %3406 = vmatpush.msra.mxu0 %v2452
    %3407 = vmatpush.msra.mxu0 %v2448
    %3408 = vmatpush.msra.mxu0 %v2444
    %3409 = vmatpush.msra.mxu0 %v2440
    %3410 = vmatpush.msra.mxu0 %v2436
    %3411 = vmatpush.msra.mxu0 %v2432
    %3412 = vmatpush.msra.mxu0 %v2428
    %3413 = vmatpush.msra.mxu0 %v2424
    %3414 = vmatpush.msra.mxu0 %v2420
    %3415 = vmatpush.msra.mxu0 %v2416
    %3416 = vmatpush.msra.mxu0 %v2412
    %3417 = vmatmul.f32.gmra.mxu0 %v3376
    %v3418 = vpop.f32.mrf.mxu0
    %v3419 = vadd.f32 0.0, %v3418
    %3420 = vdwg.mxu0
    %3421 = vmatpush.msra.mxu0 %v2473
    %3422 = vmatpush.msra.mxu0 %v2469
    %3423 = vmatpush.msra.mxu0 %v2465
    %3424 = vmatpush.msra.mxu0 %v2461
    %3425 = vmatpush.msra.mxu0 %v2457
    %3426 = vmatpush.msra.mxu0 %v2453
    %3427 = vmatpush.msra.mxu0 %v2449
    %3428 = vmatpush.msra.mxu0 %v2445
    %3429 = vmatpush.msra.mxu0 %v2441
    %3430 = vmatpush.msra.mxu0 %v2437
    %3431 = vmatpush.msra.mxu0 %v2433
    %3432 = vmatpush.msra.mxu0 %v2429
    %3433 = vmatpush.msra.mxu0 %v2425
    %3434 = vmatpush.msra.mxu0 %v2421
    %3435 = vmatpush.msra.mxu0 %v2417
    %3436 = vmatpush.msra.mxu0 %v2413
    %3437 = vmatmul.f32.gmra.mxu0 %v3376
    %v3438 = vpop.f32.mrf.mxu0
    %v3439 = vadd.f32 0.0, %v3438
    %3440 = vdwg.mxu0
    %3441 = vmatpush.msra.mxu0 %v2474
    %3442 = vmatpush.msra.mxu0 %v2470
    %3443 = vmatpush.msra.mxu0 %v2466
    %3444 = vmatpush.msra.mxu0 %v2462
    %3445 = vmatpush.msra.mxu0 %v2458
    %3446 = vmatpush.msra.mxu0 %v2454
    %3447 = vmatpush.msra.mxu0 %v2450
    %3448 = vmatpush.msra.mxu0 %v2446
    %3449 = vmatpush.msra.mxu0 %v2442
    %3450 = vmatpush.msra.mxu0 %v2438
    %3451 = vmatpush.msra.mxu0 %v2434
    %3452 = vmatpush.msra.mxu0 %v2430
    %3453 = vmatpush.msra.mxu0 %v2426
    %3454 = vmatpush.msra.mxu0 %v2422
    %3455 = vmatpush.msra.mxu0 %v2418
    %3456 = vmatpush.msra.mxu0 %v2414
    %3457 = vmatmul.f32.gmra.mxu0 %v3376
    %v3458 = vpop.f32.mrf.mxu0
    %v3459 = vadd.f32 0.0, %v3458
    %3460 = vdwg.mxu0
    %v3461 = vadd.f32 %v3377, %v3399
    %v3462 = vadd.f32 %v3378, %v3419
    %v3463 = vadd.f32 %v3379, %v3439
    %v3464 = vadd.f32 %v3380, %v3459
    %v3465 = vxor.u32 %v3461, 2147483648
    %v3466 = vmul.f32 %v3465, 1.442695
    %v3467 = vpow.pop %v3466
    %v3468 = vadd.f32 %v3467, 1.0
    %v3469 = vrcp.pop %v3468
    %v3470 = vmul.f32 %v3468, %v3469
    %v3471 = vsub.f32 1.0, %v3470
    %v3472 = vmul.f32 %v3469, %v3471
    %v3473 = vadd.f32 %v3469, %v3472
    %vm3474 = vweird.f32 %v3468
    %vm3475 = vweird.f32 %v3469
    %vm3476 = vmor %vm3474, %vm3475
    %v3477 = vsel %vm3476, %v3469, %v3473
    %v3478 = vand.u32 2147483647, %v3468
    %vm3479 = vcmp.eq.f32.partialorder %v3478, 8.507059e+37
    %v3480 = vand.u32 %v3468, 2147483648
    %v3481 = vor.u32 1.1754944e-38, %v3480
    %v3482 = vsel %vm3479, %v3481, %v3477
    %v3483 = vmul.f32 1.0, %v3482
    %v3484 = vxor.u32 %v3462, 2147483648
    %v3485 = vmul.f32 %v3484, 1.442695
    %v3486 = vpow.pop %v3485
    %v3487 = vadd.f32 %v3486, 1.0
    %v3488 = vrcp.pop %v3487
    %v3489 = vmul.f32 %v3487, %v3488
    %v3490 = vsub.f32 1.0, %v3489
    %v3491 = vmul.f32 %v3488, %v3490
    %v3492 = vadd.f32 %v3488, %v3491
    %vm3493 = vweird.f32 %v3487
    %vm3494 = vweird.f32 %v3488
    %vm3495 = vmor %vm3493, %vm3494
    %v3496 = vsel %vm3495, %v3488, %v3492
    %v3497 = vand.u32 2147483647, %v3487
    %vm3498 = vcmp.eq.f32.partialorder %v3497, 8.507059e+37
    %v3499 = vand.u32 %v3487, 2147483648
    %v3500 = vor.u32 1.1754944e-38, %v3499
    %v3501 = vsel %vm3498, %v3500, %v3496
    %v3502 = vmul.f32 1.0, %v3501
    %v3503 = vtanh.pop %v3463
    %v3504 = vxor.u32 %v3464, 2147483648
    %v3505 = vmul.f32 %v3504, 1.442695
    %v3506 = vpow.pop %v3505
    %v3507 = vadd.f32 %v3506, 1.0
    %v3508 = vrcp.pop %v3507
    %v3509 = vmul.f32 %v3507, %v3508
    %v3510 = vsub.f32 1.0, %v3509
    %v3511 = vmul.f32 %v3508, %v3510
    %v3512 = vadd.f32 %v3508, %v3511
    %vm3513 = vweird.f32 %v3507
    %vm3514 = vweird.f32 %v3508
    %vm3515 = vmor %vm3513, %vm3514
    %v3516 = vsel %vm3515, %v3508, %v3512
    %v3517 = vand.u32 2147483647, %v3507
    %vm3518 = vcmp.eq.f32.partialorder %v3517, 8.507059e+37
    %v3519 = vand.u32 %v3507, 2147483648
    %v3520 = vor.u32 1.1754944e-38, %v3519
    %v3521 = vsel %vm3518, %v3520, %v3516
    %v3522 = vmul.f32 1.0, %v3521
    %v3523 = vmul.f32 %v3502, %v3374
    %v3524 = vmul.f32 %v3483, %v3503
    %v3525 = vadd.f32 %v3523, %v3524
    %v3526 = vtanh.pop %v3525
    %v3527 = vmul.f32 %v3522, %v3526
    %v3528 = vld [vmem:[%s1911] sm:$0xff]
    %v3529 = vld [vmem:[%s1911 + $0x8] sm:$0xff]
    %v3530 = vld [vmem:[%s1911 + $0x10] sm:$0xff]
    %v3531 = vld [vmem:[%s1911 + $0x18] sm:$0xff]
    %3532 = vmatpush.msra.mxu0 %v2471
    %3533 = vmatpush.msra.mxu0 %v2467
    %3534 = vmatpush.msra.mxu0 %v2463
    %3535 = vmatpush.msra.mxu0 %v2459
    %3536 = vmatpush.msra.mxu0 %v2455
    %3537 = vmatpush.msra.mxu0 %v2451
    %3538 = vmatpush.msra.mxu0 %v2447
    %3539 = vmatpush.msra.mxu0 %v2443
    %3540 = vmatpush.msra.mxu0 %v2439
    %3541 = vmatpush.msra.mxu0 %v2435
    %3542 = vmatpush.msra.mxu0 %v2431
    %3543 = vmatpush.msra.mxu0 %v2427
    %3544 = vmatpush.msra.mxu0 %v2423
    %3545 = vmatpush.msra.mxu0 %v2419
    %3546 = vmatpush.msra.mxu0 %v2415
    %3547 = vmatpush.msra.mxu0 %v2411
    %3548 = vmatmul.f32.gmra.mxu0 %v3527
    %v3549 = vpop.f32.mrf.mxu0
    %v3550 = vadd.f32 0.0, %v3549
    %3551 = vdwg.mxu0
    %3552 = vmatpush.msra.mxu0 %v2472
    %3553 = vmatpush.msra.mxu0 %v2468
    %3554 = vmatpush.msra.mxu0 %v2464
    %3555 = vmatpush.msra.mxu0 %v2460
    %3556 = vmatpush.msra.mxu0 %v2456
    %3557 = vmatpush.msra.mxu0 %v2452
    %3558 = vmatpush.msra.mxu0 %v2448
    %3559 = vmatpush.msra.mxu0 %v2444
    %3560 = vmatpush.msra.mxu0 %v2440
    %3561 = vmatpush.msra.mxu0 %v2436
    %3562 = vmatpush.msra.mxu0 %v2432
    %3563 = vmatpush.msra.mxu0 %v2428
    %3564 = vmatpush.msra.mxu0 %v2424
    %3565 = vmatpush.msra.mxu0 %v2420
    %3566 = vmatpush.msra.mxu0 %v2416
    %3567 = vmatpush.msra.mxu0 %v2412
    %3568 = vmatmul.f32.gmra.mxu0 %v3527
    %v3569 = vpop.f32.mrf.mxu0
    %v3570 = vadd.f32 0.0, %v3569
    %3571 = vdwg.mxu0
    %3572 = vmatpush.msra.mxu0 %v2473
    %3573 = vmatpush.msra.mxu0 %v2469
    %3574 = vmatpush.msra.mxu0 %v2465
    %3575 = vmatpush.msra.mxu0 %v2461
    %3576 = vmatpush.msra.mxu0 %v2457
    %3577 = vmatpush.msra.mxu0 %v2453
    %3578 = vmatpush.msra.mxu0 %v2449
    %3579 = vmatpush.msra.mxu0 %v2445
    %3580 = vmatpush.msra.mxu0 %v2441
    %3581 = vmatpush.msra.mxu0 %v2437
    %3582 = vmatpush.msra.mxu0 %v2433
    %3583 = vmatpush.msra.mxu0 %v2429
    %3584 = vmatpush.msra.mxu0 %v2425
    %3585 = vmatpush.msra.mxu0 %v2421
    %3586 = vmatpush.msra.mxu0 %v2417
    %3587 = vmatpush.msra.mxu0 %v2413
    %3588 = vmatmul.f32.gmra.mxu0 %v3527
    %v3589 = vpop.f32.mrf.mxu0
    %v3590 = vadd.f32 0.0, %v3589
    %3591 = vdwg.mxu0
    %3592 = vmatpush.msra.mxu0 %v2474
    %3593 = vmatpush.msra.mxu0 %v2470
    %3594 = vmatpush.msra.mxu0 %v2466
    %3595 = vmatpush.msra.mxu0 %v2462
    %3596 = vmatpush.msra.mxu0 %v2458
    %3597 = vmatpush.msra.mxu0 %v2454
    %3598 = vmatpush.msra.mxu0 %v2450
    %3599 = vmatpush.msra.mxu0 %v2446
    %3600 = vmatpush.msra.mxu0 %v2442
    %3601 = vmatpush.msra.mxu0 %v2438
    %3602 = vmatpush.msra.mxu0 %v2434
    %3603 = vmatpush.msra.mxu0 %v2430
    %3604 = vmatpush.msra.mxu0 %v2426
    %3605 = vmatpush.msra.mxu0 %v2422
    %3606 = vmatpush.msra.mxu0 %v2418
    %3607 = vmatpush.msra.mxu0 %v2414
    %3608 = vmatmul.f32.gmra.mxu0 %v3527
    %v3609 = vpop.f32.mrf.mxu0
    %v3610 = vadd.f32 0.0, %v3609
    %3611 = vdwg.mxu0
    %v3612 = vadd.f32 %v3528, %v3550
    %v3613 = vadd.f32 %v3529, %v3570
    %v3614 = vadd.f32 %v3530, %v3590
    %v3615 = vadd.f32 %v3531, %v3610
    %v3616 = vxor.u32 %v3612, 2147483648
    %v3617 = vmul.f32 %v3616, 1.442695
    %v3618 = vpow.pop %v3617
    %v3619 = vadd.f32 %v3618, 1.0
    %v3620 = vrcp.pop %v3619
    %v3621 = vmul.f32 %v3619, %v3620
    %v3622 = vsub.f32 1.0, %v3621
    %v3623 = vmul.f32 %v3620, %v3622
    %v3624 = vadd.f32 %v3620, %v3623
    %vm3625 = vweird.f32 %v3619
    %vm3626 = vweird.f32 %v3620
    %vm3627 = vmor %vm3625, %vm3626
    %v3628 = vsel %vm3627, %v3620, %v3624
    %v3629 = vand.u32 2147483647, %v3619
    %vm3630 = vcmp.eq.f32.partialorder %v3629, 8.507059e+37
    %v3631 = vand.u32 %v3619, 2147483648
    %v3632 = vor.u32 1.1754944e-38, %v3631
    %v3633 = vsel %vm3630, %v3632, %v3628
    %v3634 = vmul.f32 1.0, %v3633
    %v3635 = vxor.u32 %v3613, 2147483648
    %v3636 = vmul.f32 %v3635, 1.442695
    %v3637 = vpow.pop %v3636
    %v3638 = vadd.f32 %v3637, 1.0
    %v3639 = vrcp.pop %v3638
    %v3640 = vmul.f32 %v3638, %v3639
    %v3641 = vsub.f32 1.0, %v3640
    %v3642 = vmul.f32 %v3639, %v3641
    %v3643 = vadd.f32 %v3639, %v3642
    %vm3644 = vweird.f32 %v3638
    %vm3645 = vweird.f32 %v3639
    %vm3646 = vmor %vm3644, %vm3645
    %v3647 = vsel %vm3646, %v3639, %v3643
    %v3648 = vand.u32 2147483647, %v3638
    %vm3649 = vcmp.eq.f32.partialorder %v3648, 8.507059e+37
    %v3650 = vand.u32 %v3638, 2147483648
    %v3651 = vor.u32 1.1754944e-38, %v3650
    %v3652 = vsel %vm3649, %v3651, %v3647
    %v3653 = vmul.f32 1.0, %v3652
    %v3654 = vtanh.pop %v3614
    %v3655 = vxor.u32 %v3615, 2147483648
    %v3656 = vmul.f32 %v3655, 1.442695
    %v3657 = vpow.pop %v3656
    %v3658 = vadd.f32 %v3657, 1.0
    %v3659 = vrcp.pop %v3658
    %v3660 = vmul.f32 %v3658, %v3659
    %v3661 = vsub.f32 1.0, %v3660
    %v3662 = vmul.f32 %v3659, %v3661
    %v3663 = vadd.f32 %v3659, %v3662
    %vm3664 = vweird.f32 %v3658
    %vm3665 = vweird.f32 %v3659
    %vm3666 = vmor %vm3664, %vm3665
    %v3667 = vsel %vm3666, %v3659, %v3663
    %v3668 = vand.u32 2147483647, %v3658
    %vm3669 = vcmp.eq.f32.partialorder %v3668, 8.507059e+37
    %v3670 = vand.u32 %v3658, 2147483648
    %v3671 = vor.u32 1.1754944e-38, %v3670
    %v3672 = vsel %vm3669, %v3671, %v3667
    %v3673 = vmul.f32 1.0, %v3672
    %v3674 = vmul.f32 %v3653, %v3525
    %v3675 = vmul.f32 %v3634, %v3654
    %v3676 = vadd.f32 %v3674, %v3675
    %v3677 = vtanh.pop %v3676
    %v3678 = vmul.f32 %v3673, %v3677
    %v3679 = vld [vmem:[#allocation15] sm:$0xff]
    %v3680 = vld [vmem:[#allocation15 + $0x8] sm:$0xff]
    %v3681 = vld [vmem:[#allocation15 + $0x10] sm:$0xff]
    %v3682 = vld [vmem:[#allocation15 + $0x18] sm:$0xff]
    %v3683 = vld [vmem:[#allocation15 + $0x20] sm:$0xff]
    %v3684 = vld [vmem:[#allocation15 + $0x28] sm:$0xff]
    %v3685 = vld [vmem:[#allocation15 + $0x30] sm:$0xff]
    %v3686 = vld [vmem:[#allocation15 + $0x38] sm:$0xff]
    %v3687 = vld [vmem:[#allocation15 + $0x40] sm:$0xff]
    %v3688 = vld [vmem:[#allocation15 + $0x48] sm:$0xff]
    %v3689 = vld [vmem:[#allocation15 + $0x50] sm:$0xff]
    %v3690 = vld [vmem:[#allocation15 + $0x58] sm:$0xff]
    %v3691 = vld [vmem:[#allocation15 + $0x60] sm:$0xff]
    %v3692 = vld [vmem:[#allocation15 + $0x68] sm:$0xff]
    %v3693 = vld [vmem:[#allocation15 + $0x70] sm:$0xff]
    %v3694 = vld [vmem:[#allocation15 + $0x78] sm:$0xff]
    %v3695 = vld [vmem:[%s8] sm:$0x1]
    %v3697 = vperm.slane %v3695, 0
    %3699 = vmatpush.msra.mxu0 %v3694
    %3700 = vmatpush.msra.mxu0 %v3693
    %3701 = vmatpush.msra.mxu0 %v3692
    %3702 = vmatpush.msra.mxu0 %v3691
    %3703 = vmatpush.msra.mxu0 %v3690
    %3704 = vmatpush.msra.mxu0 %v3689
    %3705 = vmatpush.msra.mxu0 %v3688
    %3706 = vmatpush.msra.mxu0 %v3687
    %3707 = vmatpush.msra.mxu0 %v3686
    %3708 = vmatpush.msra.mxu0 %v3685
    %3709 = vmatpush.msra.mxu0 %v3684
    %3710 = vmatpush.msra.mxu0 %v3683
    %3711 = vmatpush.msra.mxu0 %v3682
    %3712 = vmatpush.msra.mxu0 %v3681
    %3713 = vmatpush.msra.mxu0 %v3680
    %3714 = vmatpush.msra.mxu0 %v3679
    %3715 = vmatmul.f32.gmra.mxu0 %v3678
    %v3716 = vpop.f32.mrf.mxu0
    %v3717 = vadd.f32 %v3697, %v3716
    %3718 = vdwg.mxu0
    %3719 = vst [vmem:[#allocation16] sm:$0xff] %v3717
    // Predicated region
    $region66: #{tpu_custom_call.1} parent=1 // pred_check
      _
    $region67: #{tpu_custom_call.1} parent=1 // pred_check_branch
      %3721 = sbr.rel (0) target = $region69
    $region68: #{tpu_custom_call.1} parent=1 // pred_region
      %3723 = vsyncadd [#allocation6], 0
      %s3725 = sshll.u32 [#allocation16], 4
      %s3726 = int_to_ptr.vmem [resolvable:$true] %s3725
      %s3727 = sshll.u32 %s9, 4
      %s3728 = int_to_ptr.hbm [resolvable:$true] %s3727
      %3730 = dma.vmem_to_hbm [thread:$0]  %s3726, 128, %s3728, [#allocation6]
    $region69: #{tpu_custom_call.1} parent=1 // pred_fallthru
      _
    // Predicated region
    $region70: #{tpu_custom_call.1} parent=1 // pred_check
      _
    $region71: #{tpu_custom_call.1} parent=1 // pred_check_branch
      %3732 = sbr.rel (0) target = $region73
    $region72: #{tpu_custom_call.1} parent=1 // pred_region
      %3734 = dma.done [#allocation6], 128
    $region73: #{tpu_custom_call.1} parent=1 // pred_fallthru
      _
    %3735 = vsyncpa [#allocation5], 1
    %3736 = vsyncpa [#allocation8], 1
    %3737 = vsyncpa [#allocation11], 1
    %3738 = vsyncpa [#allocation14], 1
    %3739 = vsyncpa [#allocation6], 1

</llo_original>
